<compile_context>
chip_gen: v7x
topology: tpu7x:2x2x1
jax: 0.10.0
libtpu: 0.0.40
codegen_flags: <defaults>
</compile_context>

<pallas_src>
import functools

import jax
import jax.numpy as jnp
from jax.experimental import pallas as pl
from jax.experimental.pallas import tpu as pltpu


# ----------------------------------------------------------------------------
# Fused Pallas kernel: `bt` images per grid step, everything in VMEM / vregs.
# ----------------------------------------------------------------------------

def _skblock_kernel(x_ref,                       # (bt*HW, Cin)  f32
                    w1_ref, b1_ref,              # conv1: (Cin,P) bf16, (1,P) f32
                    wdw_ref, bdw_ref,            # dw:   (M,9,P) f32, (M,1,P) f32
                    wf1_ref, bf1_ref,            # fc1:  (P,d) f32, (1,d) f32
                    wf2_ref,                     # fc2:  (d, M*P) f32
                    w3_ref, b3_ref,              # conv3:(P,P*e) bf16, (1,P*e) f32
                    o_ref,                       # (bt*HW, P*e) f32
                    *, bt, H, W, planes, M):
    P = planes
    HW = H * W
    N = bt * HW

    xf = x_ref[...]                                              # (N, Cin) f32

    # ---- conv1 (1x1) + folded BN + ReLU: bf16 MXU, f32 accumulate ----------
    y1 = jnp.dot(xf.astype(jnp.bfloat16), w1_ref[...],
                 preferred_element_type=jnp.float32)
    y1 = jnp.maximum(y1 + b1_ref[...], 0.0)                      # (N, P)

    # ---- per-row coordinates for halo masks (rows ordered (image, h, w)) ---
    # Both iotas run along second-minor (sublane) dims, then merge into rows.
    rimg = jax.lax.broadcasted_iota(jnp.int32, (bt, HW, P), 1).reshape(N, P)
    widx = jax.lax.broadcasted_iota(jnp.int32, (bt * H, W, P), 1).reshape(N, P)

    def shifted(src, rows, mask):
        # zero-padded shift within the block: out[r] = src[r + rows] (masked)
        if rows == 0:
            return src
        out = pltpu.roll(src, (-rows) % N, axis=0)               # XLU
        return jnp.where(mask, out, 0.0)

    # ---- SKConv branches: depthwise 3x3, dilation 1+i, folded BN, ReLU -----
    # TODO(synk): lane-pack the two branches (P=32 -> 64 lanes) to raise VPU
    # lane occupancy further.
    wdw = wdw_ref[...]                                           # (M, 9, P)
    bdw = bdw_ref[...]                                           # (M, 1, P)
    branches = []
    for i in range(M):
        dil = 1 + i
        # halo masks, hoisted per branch (valid iff h+dh in [0,H), w+dw in [0,W))
        hm = {d: (rimg + d * W >= 0) & (rimg + d * W < HW) for d in (-dil, dil)}
        wm = {d: (widx + d >= 0) & (widx + d < W) for d in (-dil, dil)}
        acc = jnp.zeros((N, P), jnp.float32)
        for kh in range(3):
            dh = (kh - 1) * dil
            yh = shifted(y1, dh * W, hm[dh] if dh else None)
            for kw in range(3):
                dw = (kw - 1) * dil
                tap = shifted(yh, dw, wm[dw] if dw else None)
                k = kh * 3 + kw
                acc = acc + tap * wdw[i, k:k + 1, :]
        branches.append(jnp.maximum(acc + bdw[i], 0.0))          # (N, P)
    o1, o2 = branches

    # ---- SK attention: GAP -> fc1(+BN)+ReLU -> fc2 -> 2-way softmax --------
    u3 = (o1 + o2).reshape(bt, HW, P)
    s = jnp.sum(u3, axis=1) * (1.0 / float(HW))                  # (bt, P)
    z = jnp.dot(s, wf1_ref[...], preferred_element_type=jnp.float32)
    z = jnp.maximum(z + bf1_ref[...], 0.0)                       # (bt, d)
    ab = jnp.dot(z, wf2_ref[...], preferred_element_type=jnp.float32)
    a1 = ab[:, :P]
    a2 = ab[:, P:]
    # two-way softmax == sigmoid (exact; weights sum to 1)
    att1 = 1.0 / (1.0 + jnp.exp(a2 - a1))                        # (bt, P)
    att2 = 1.0 - att1
    v = (o1.reshape(bt, HW, P) * att1[:, None, :]
         + o2.reshape(bt, HW, P) * att2[:, None, :]).reshape(N, P)

    # ---- conv3 (1x1) + folded BN + residual + ReLU --------------------------
    y3 = jnp.dot(v.astype(jnp.bfloat16), w3_ref[...],
                 preferred_element_type=jnp.float32)
    o_ref[...] = jnp.maximum(y3 + b3_ref[...] + xf, 0.0).astype(o_ref.dtype)


# ----------------------------------------------------------------------------
# pallas_call plumbing
# ----------------------------------------------------------------------------

def _const_spec(a):
    n = a.ndim
    return pl.BlockSpec(a.shape, lambda b, _n=n: (0,) * _n)


def _pick_block_batch(B, HW):
    # Smallest bt giving bt*HW >= 128 MXU rows while (if possible) keeping
    # >= 2 grid steps for v7x's two TensorCores; fall back gracefully.
    for want_steps in (2, 1):
        for bt in range(1, B + 1):
            if B % bt == 0 and bt * HW >= 128 and (bt * HW) % 8 == 0 \
                    and B // bt >= want_steps:
                return bt
    return B


@functools.partial(jax.jit, static_argnums=(2, 3, 4, 5))
def skblock_forward(x_nchw, params, planes, M=2, expansion=2, block_batch=None):
    B, Cin, H, W = x_nchw.shape
    assert M == 2, "kernel hard-codes M=2 branches"
    assert Cin == planes * expansion, "identity shortcut needs inplanes == planes*expansion"
    assert planes == 32, "SKConv uses groups=32; kernel implements the depthwise case (planes == 32)"
    HW = H * W
    Cout = planes * expansion

    bt = block_batch if block_batch is not None else _pick_block_batch(B, HW)
    assert B % bt == 0
    grid = (B // bt,)

    # NCHW -> (B*HW, C) rows with channels on lanes.
    # TODO(synk): keep the surrounding model NHWC to drop these two transposes.
    xf = jnp.transpose(x_nchw, (0, 2, 3, 1)).reshape(B * HW, Cin)

    weights = (params["w_conv1"], params["b_conv1"],
               params["w_dw"], params["b_dw"],
               params["w_fc1"], params["b_fc1"],
               params["w_fc2"],
               params["w_conv3"], params["b_conv3"])

    kernel = functools.partial(_skblock_kernel, bt=bt, H=H, W=W,
                               planes=planes, M=M)

    out = pl.pallas_call(
        kernel,
        out_shape=jax.ShapeDtypeStruct((B * HW, Cout), jnp.float32),
        grid_spec=pltpu.PrefetchScalarGridSpec(
            num_scalar_prefetch=0,
            grid=grid,
            in_specs=[pl.BlockSpec((bt * HW, Cin), lambda b: (b, 0))]
                     + [_const_spec(w) for w in weights],
            out_specs=pl.BlockSpec((bt * HW, Cout), lambda b: (b, 0)),
        ),
        compiler_params=pltpu.CompilerParams(
            dimension_semantics=("parallel",),
        ),
        input_output_aliases={0: 0},     # reuse residual/input HBM buffer
    )(xf, *weights)

    return jnp.transpose(out.reshape(B, H, W, Cout), (0, 3, 1, 2))


# ----------------------------------------------------------------------------
# Parameters: raw (folded-BN inference) params + one-time kernel prep
# ----------------------------------------------------------------------------

def _folded_bn(key, c, eps=1e-5):
    k1, k2, k3, k4 = jax.random.split(key, 4)
    gamma = jax.random.uniform(k1, (c,), minval=0.5, maxval=1.5)
    beta = 0.1 * jax.random.normal(k2, (c,))
    mean = 0.1 * jax.random.normal(k3, (c,))
    var = jax.random.uniform(k4, (c,), minval=0.5, maxval=1.5)
    scale = gamma / jnp.sqrt(var + eps)
    bias = beta - mean * scale
    return (scale.reshape(1, -1).astype(jnp.float32),
            bias.reshape(1, -1).astype(jnp.float32))


def init_params(key, inplanes, planes, M=2, r=16, L=32, expansion=2):
    d = max(planes // r, L)
    ks = jax.random.split(key, 12)
    p = {}
    p["w_conv1"] = 0.1 * jax.random.normal(ks[0], (inplanes, planes), jnp.float32)
    p["s_conv1"], p["b_conv1"] = _folded_bn(ks[1], planes)
    wdw, sdw, bdw = [], [], []
    for i in range(M):
        wdw.append(0.2 * jax.random.normal(ks[2 + i], (9, planes), jnp.float32))
        s, b = _folded_bn(ks[4 + i], planes)
        sdw.append(s)
        bdw.append(b)
    p["w_dw"] = jnp.stack(wdw)                   # (M, 9, P)
    p["s_dw"] = jnp.stack(sdw)                   # (M, 1, P)
    p["b_dw"] = jnp.stack(bdw)                   # (M, 1, P)
    p["w_fc1"] = 0.2 * jax.random.normal(ks[6], (planes, d), jnp.float32)
    p["s_fc1"], p["b_fc1"] = _folded_bn(ks[7], d)
    p["w_fc2"] = 0.2 * jax.random.normal(ks[8], (d, planes * M), jnp.float32)
    p["w_conv3"] = 0.1 * jax.random.normal(ks[9], (planes, planes * expansion), jnp.float32)
    p["s_conv3"], p["b_conv3"] = _folded_bn(ks[10], planes * expansion)
    return p


def prepare_params(raw):
    """One-time prep (outside jit): fold BN scales into conv weights, pre-cast
    the MXU matmul weights to bf16."""
    return {
        "w_conv1": (raw["w_conv1"] * raw["s_conv1"]).astype(jnp.bfloat16),
        "b_conv1": raw["b_conv1"],
        "w_dw":    raw["w_dw"] * raw["s_dw"],
        "b_dw":    raw["b_dw"],
        "w_fc1":   raw["w_fc1"] * raw["s_fc1"],
        "b_fc1":   raw["b_fc1"],
        "w_fc2":   raw["w_fc2"],
        "w_conv3": (raw["w_conv3"] * raw["s_conv3"]).astype(jnp.bfloat16),
        "b_conv3": raw["b_conv3"],
    }


# ----------------------------------------------------------------------------
# Pure-JAX reference (same bf16-MXU / f32-accumulate policy, prepared params)
# ----------------------------------------------------------------------------

def skblock_reference(x_nchw, p, planes, M=2, expansion=2):
    x = jnp.transpose(x_nchw, (0, 2, 3, 1))
    B, H, W, Cin = x.shape
    HI = jax.lax.Precision.HIGHEST

    def mm_bf16(a, w):
        return jnp.dot(a.astype(jnp.bfloat16), w.astype(jnp.bfloat16),
                       preferred_element_type=jnp.float32)

    y1 = mm_bf16(x.reshape(-1, Cin), p["w_conv1"]).reshape(B, H, W, planes)
    y1 = jnp.maximum(y1 + p["b_conv1"].reshape(1, 1, 1, -1), 0.0)

    outs = []
    for i in range(M):
        dil = 1 + i
        rhs = p["w_dw"][i].reshape(3, 3, 1, planes)              # HWIO depthwise
        c = jax.lax.conv_general_dilated(
            y1, rhs, (1, 1), [(dil, dil), (dil, dil)], rhs_dilation=(dil, dil),
            dimension_numbers=("NHWC", "HWIO", "NHWC"),
            feature_group_count=planes, precision=HI)
        outs.append(jnp.maximum(c + p["b_dw"][i].reshape(1, 1, 1, -1), 0.0))

    U = outs[0] + outs[1]
    s = jnp.mean(U, axis=(1, 2))                                 # (B, P)
    z = jnp.maximum(jnp.dot(s, p["w_fc1"], precision=HI) + p["b_fc1"], 0.0)
    ab = jnp.dot(z, p["w_fc2"], precision=HI)
    a = jax.nn.softmax(ab.reshape(B, M, planes), axis=1)
    V = (outs[0] * a[:, 0][:, None, None, :]
         + outs[1] * a[:, 1][:, None, None, :])
    y3 = mm_bf16(V.reshape(-1, planes), p["w_conv3"]).reshape(B, H, W, -1)
    y3 = y3 + p["b_conv3"].reshape(1, 1, 1, -1)
    out = jnp.maximum(y3 + x, 0.0)
    return jnp.transpose(out, (0, 3, 1, 2))


# ----------------------------------------------------------------------------

if __name__ == "__main__":
    # groups=32 in SKConv -> depthwise when planes == 32; identity shortcut
    # forces inplanes == planes * expansion.  B=4 so the (HW=64) blocks fold
    # bt=2 images per step (128 MXU rows) and still leave 2 parallel steps.
    B, inplanes, Hs, Ws = 4, 64, 8, 8
    planes = 32

    key = jax.random.PRNGKey(0)
    kx, kp = jax.random.split(key)
    x = jax.random.normal(kx, (B, inplanes, Hs, Ws), jnp.float32)
    raw = init_params(kp, inplanes, planes)
    params = prepare_params(raw)

    out = skblock_forward(x, params, planes, 2, 2, None)
    out = jax.block_until_ready(out)
    assert out.shape == (B, inplanes, Hs, Ws)

    ref = skblock_reference(x, params, planes)
    err = float(jnp.max(jnp.abs(out - ref)))
    # kernel and reference share the bf16/f32 policy; only op ordering differs
    assert err < 2e-3, f"max abs error {err}"

    print("KERNEL_OK")
</pallas_src>

<mosaic_0001>
module attributes {stable_mosaic.version = 11 : i64} {
  func.func @_skblock_kernel(%arg0: i32, %arg1: memref<128x64xf32, #tpu.memory_space<vmem>>, %arg2: memref<64x32xbf16, #tpu.memory_space<vmem>>, %arg3: memref<1x32xf32, #tpu.memory_space<vmem>>, %arg4: memref<2x9x32xf32, #tpu.memory_space<vmem>>, %arg5: memref<2x1x32xf32, #tpu.memory_space<vmem>>, %arg6: memref<32x32xf32, #tpu.memory_space<vmem>>, %arg7: memref<1x32xf32, #tpu.memory_space<vmem>>, %arg8: memref<32x64xf32, #tpu.memory_space<vmem>>, %arg9: memref<32x64xbf16, #tpu.memory_space<vmem>>, %arg10: memref<1x64xf32, #tpu.memory_space<vmem>>, %arg11: memref<128x64xf32, #tpu.memory_space<vmem>>) attributes {dimension_semantics = [#tpu.dimension_semantics<parallel>], iteration_bounds = array<i64: 2>, scalar_prefetch = 0 : i64, scratch_operands = 0 : i64, tpu.core_type = #tpu.core_type<tc>, window_params = [{transform_indices = @transform_0, window_bounds = array<i64: 128, 64>}, {pipeline_mode = #tpu.pipeline_mode<synchronous>, transform_indices = @transform_1, window_bounds = array<i64: 64, 32>}, {pipeline_mode = #tpu.pipeline_mode<synchronous>, transform_indices = @transform_2, window_bounds = array<i64: 1, 32>}, {pipeline_mode = #tpu.pipeline_mode<synchronous>, transform_indices = @transform_3, window_bounds = array<i64: 2, 9, 32>}, {pipeline_mode = #tpu.pipeline_mode<synchronous>, transform_indices = @transform_4, window_bounds = array<i64: 2, 1, 32>}, {pipeline_mode = #tpu.pipeline_mode<synchronous>, transform_indices = @transform_5, window_bounds = array<i64: 32, 32>}, {pipeline_mode = #tpu.pipeline_mode<synchronous>, transform_indices = @transform_6, window_bounds = array<i64: 1, 32>}, {pipeline_mode = #tpu.pipeline_mode<synchronous>, transform_indices = @transform_7, window_bounds = array<i64: 32, 64>}, {pipeline_mode = #tpu.pipeline_mode<synchronous>, transform_indices = @transform_8, window_bounds = array<i64: 32, 64>}, {pipeline_mode = #tpu.pipeline_mode<synchronous>, transform_indices = @transform_9, window_bounds = array<i64: 1, 64>}, {transform_indices = @transform_10, window_bounds = array<i64: 128, 64>}]} {
    %c0 = arith.constant 0 : index
    %c0_0 = arith.constant 0 : index
    %0 = vector.load %arg1[%c0, %c0_0] : memref<128x64xf32, #tpu.memory_space<vmem>>, vector<128x64xf32>
    %1 = arith.truncf %0 : vector<128x64xf32> to vector<128x64xbf16>
    %c0_1 = arith.constant 0 : index
    %c0_2 = arith.constant 0 : index
    %2 = vector.load %arg2[%c0_1, %c0_2] : memref<64x32xbf16, #tpu.memory_space<vmem>>, vector<64x32xbf16>
    %cst = arith.constant dense<0.000000e+00> : vector<128x32xf32>
    %3 = tpu.matmul %1, %2, %cst {dimension_numbers = #tpu.dot_dimension_numbers<[1], [0], [0], [1], [0, 0, 1, 1], [], []>} : vector<128x64xbf16>, vector<64x32xbf16>, vector<128x32xf32> -> vector<128x32xf32>
    %c0_3 = arith.constant 0 : index
    %c0_4 = arith.constant 0 : index
    %4 = vector.load %arg3[%c0_3, %c0_4] : memref<1x32xf32, #tpu.memory_space<vmem>>, vector<1x32xf32>
    %5 = vector.broadcast %4 : vector<1x32xf32> to vector<128x32xf32>
    %6 = arith.addf %3, %5 : vector<128x32xf32>
    %cst_5 = arith.constant 0.000000e+00 : f32
    %7 = vector.broadcast %cst_5 : f32 to vector<128x32xf32>
    %8 = arith.maximumf %6, %7 : vector<128x32xf32>
    %9 = tpu.iota {dimensions = array<i32: 1>} : vector<2x64x32xi32>
    %10 = vector.shape_cast %9 : vector<2x64x32xi32> to vector<128x32xi32>
    %11 = tpu.iota {dimensions = array<i32: 1>} : vector<16x8x32xi32>
    %12 = vector.shape_cast %11 : vector<16x8x32xi32> to vector<128x32xi32>
    %c0_6 = arith.constant 0 : index
    %c0_7 = arith.constant 0 : index
    %c0_8 = arith.constant 0 : index
    %13 = vector.load %arg4[%c0_6, %c0_7, %c0_8] : memref<2x9x32xf32, #tpu.memory_space<vmem>>, vector<2x9x32xf32>
    %c0_9 = arith.constant 0 : index
    %c0_10 = arith.constant 0 : index
    %c0_11 = arith.constant 0 : index
    %14 = vector.load %arg5[%c0_9, %c0_10, %c0_11] : memref<2x1x32xf32, #tpu.memory_space<vmem>>, vector<2x1x32xf32>
    %c-8_i32 = arith.constant -8 : i32
    %15 = vector.broadcast %c-8_i32 : i32 to vector<128x32xi32>
    %16 = arith.addi %10, %15 : vector<128x32xi32>
    %c0_i32 = arith.constant 0 : i32
    %17 = vector.broadcast %c0_i32 : i32 to vector<128x32xi32>
    %18 = arith.cmpi sge, %16, %17 : vector<128x32xi32>
    %c-8_i32_12 = arith.constant -8 : i32
    %19 = vector.broadcast %c-8_i32_12 : i32 to vector<128x32xi32>
    %20 = arith.addi %10, %19 : vector<128x32xi32>
    %c64_i32 = arith.constant 64 : i32
    %21 = vector.broadcast %c64_i32 : i32 to vector<128x32xi32>
    %22 = arith.cmpi slt, %20, %21 : vector<128x32xi32>
    %23 = arith.andi %18, %22 : vector<128x32xi1>
    %c8_i32 = arith.constant 8 : i32
    %24 = vector.broadcast %c8_i32 : i32 to vector<128x32xi32>
    %25 = arith.addi %10, %24 : vector<128x32xi32>
    %c0_i32_13 = arith.constant 0 : i32
    %26 = vector.broadcast %c0_i32_13 : i32 to vector<128x32xi32>
    %27 = arith.cmpi sge, %25, %26 : vector<128x32xi32>
    %c8_i32_14 = arith.constant 8 : i32
    %28 = vector.broadcast %c8_i32_14 : i32 to vector<128x32xi32>
    %29 = arith.addi %10, %28 : vector<128x32xi32>
    %c64_i32_15 = arith.constant 64 : i32
    %30 = vector.broadcast %c64_i32_15 : i32 to vector<128x32xi32>
    %31 = arith.cmpi slt, %29, %30 : vector<128x32xi32>
    %32 = arith.andi %27, %31 : vector<128x32xi1>
    %c-1_i32 = arith.constant -1 : i32
    %33 = vector.broadcast %c-1_i32 : i32 to vector<128x32xi32>
    %34 = arith.addi %12, %33 : vector<128x32xi32>
    %c0_i32_16 = arith.constant 0 : i32
    %35 = vector.broadcast %c0_i32_16 : i32 to vector<128x32xi32>
    %36 = arith.cmpi sge, %34, %35 : vector<128x32xi32>
    %c-1_i32_17 = arith.constant -1 : i32
    %37 = vector.broadcast %c-1_i32_17 : i32 to vector<128x32xi32>
    %38 = arith.addi %12, %37 : vector<128x32xi32>
    %c8_i32_18 = arith.constant 8 : i32
    %39 = vector.broadcast %c8_i32_18 : i32 to vector<128x32xi32>
    %40 = arith.cmpi slt, %38, %39 : vector<128x32xi32>
    %41 = arith.andi %36, %40 : vector<128x32xi1>
    %c1_i32 = arith.constant 1 : i32
    %42 = vector.broadcast %c1_i32 : i32 to vector<128x32xi32>
    %43 = arith.addi %12, %42 : vector<128x32xi32>
    %c0_i32_19 = arith.constant 0 : i32
    %44 = vector.broadcast %c0_i32_19 : i32 to vector<128x32xi32>
    %45 = arith.cmpi sge, %43, %44 : vector<128x32xi32>
    %c1_i32_20 = arith.constant 1 : i32
    %46 = vector.broadcast %c1_i32_20 : i32 to vector<128x32xi32>
    %47 = arith.addi %12, %46 : vector<128x32xi32>
    %c8_i32_21 = arith.constant 8 : i32
    %48 = vector.broadcast %c8_i32_21 : i32 to vector<128x32xi32>
    %49 = arith.cmpi slt, %47, %48 : vector<128x32xi32>
    %50 = arith.andi %45, %49 : vector<128x32xi1>
    %cst_22 = arith.constant 0.000000e+00 : f32
    %51 = vector.broadcast %cst_22 : f32 to vector<128x32xf32>
    %c8_i32_23 = arith.constant 8 : i32
    %52 = tpu.dynamic_rotate %8 by %c8_i32_23 dim 0 : vector<128x32xf32>, i32 -> vector<128x32xf32>
    %cst_24 = arith.constant 0.000000e+00 : f32
    %53 = vector.broadcast %cst_24 : f32 to vector<128x32xf32>
    %54 = arith.select %23, %52, %53 : vector<128x32xi1>, vector<128x32xf32>
    %c1_i32_25 = arith.constant 1 : i32
    %55 = tpu.dynamic_rotate %54 by %c1_i32_25 dim 0 : vector<128x32xf32>, i32 -> vector<128x32xf32>
    %cst_26 = arith.constant 0.000000e+00 : f32
    %56 = vector.broadcast %cst_26 : f32 to vector<128x32xf32>
    %57 = arith.select %41, %55, %56 : vector<128x32xi1>, vector<128x32xf32>
    %58 = vector.extract_strided_slice %13 {offsets = [0, 0, 0], sizes = [1, 1, 32], strides = [1, 1, 1]} : vector<2x9x32xf32> to vector<1x1x32xf32>
    %59 = vector.shape_cast %58 : vector<1x1x32xf32> to vector<1x32xf32>
    %60 = vector.broadcast %59 : vector<1x32xf32> to vector<128x32xf32>
    %61 = arith.mulf %57, %60 : vector<128x32xf32>
    %62 = arith.addf %51, %61 : vector<128x32xf32>
    %63 = vector.extract_strided_slice %13 {offsets = [0, 1, 0], sizes = [1, 1, 32], strides = [1, 1, 1]} : vector<2x9x32xf32> to vector<1x1x32xf32>
    %64 = vector.shape_cast %63 : vector<1x1x32xf32> to vector<1x32xf32>
    %65 = vector.broadcast %64 : vector<1x32xf32> to vector<128x32xf32>
    %66 = arith.mulf %54, %65 : vector<128x32xf32>
    %67 = arith.addf %62, %66 : vector<128x32xf32>
    %c127_i32 = arith.constant 127 : i32
    %68 = tpu.dynamic_rotate %54 by %c127_i32 dim 0 : vector<128x32xf32>, i32 -> vector<128x32xf32>
    %cst_27 = arith.constant 0.000000e+00 : f32
    %69 = vector.broadcast %cst_27 : f32 to vector<128x32xf32>
    %70 = arith.select %50, %68, %69 : vector<128x32xi1>, vector<128x32xf32>
    %71 = vector.extract_strided_slice %13 {offsets = [0, 2, 0], sizes = [1, 1, 32], strides = [1, 1, 1]} : vector<2x9x32xf32> to vector<1x1x32xf32>
    %72 = vector.shape_cast %71 : vector<1x1x32xf32> to vector<1x32xf32>
    %73 = vector.broadcast %72 : vector<1x32xf32> to vector<128x32xf32>
    %74 = arith.mulf %70, %73 : vector<128x32xf32>
    %75 = arith.addf %67, %74 : vector<128x32xf32>
    %c1_i32_28 = arith.constant 1 : i32
    %76 = tpu.dynamic_rotate %8 by %c1_i32_28 dim 0 : vector<128x32xf32>, i32 -> vector<128x32xf32>
    %cst_29 = arith.constant 0.000000e+00 : f32
    %77 = vector.broadcast %cst_29 : f32 to vector<128x32xf32>
    %78 = arith.select %41, %76, %77 : vector<128x32xi1>, vector<128x32xf32>
    %79 = vector.extract_strided_slice %13 {offsets = [0, 3, 0], sizes = [1, 1, 32], strides = [1, 1, 1]} : vector<2x9x32xf32> to vector<1x1x32xf32>
    %80 = vector.shape_cast %79 : vector<1x1x32xf32> to vector<1x32xf32>
    %81 = vector.broadcast %80 : vector<1x32xf32> to vector<128x32xf32>
    %82 = arith.mulf %78, %81 : vector<128x32xf32>
    %83 = arith.addf %75, %82 : vector<128x32xf32>
    %84 = vector.extract_strided_slice %13 {offsets = [0, 4, 0], sizes = [1, 1, 32], strides = [1, 1, 1]} : vector<2x9x32xf32> to vector<1x1x32xf32>
    %85 = vector.shape_cast %84 : vector<1x1x32xf32> to vector<1x32xf32>
    %86 = vector.broadcast %85 : vector<1x32xf32> to vector<128x32xf32>
    %87 = arith.mulf %8, %86 : vector<128x32xf32>
    %88 = arith.addf %83, %87 : vector<128x32xf32>
    %c127_i32_30 = arith.constant 127 : i32
    %89 = tpu.dynamic_rotate %8 by %c127_i32_30 dim 0 : vector<128x32xf32>, i32 -> vector<128x32xf32>
    %cst_31 = arith.constant 0.000000e+00 : f32
    %90 = vector.broadcast %cst_31 : f32 to vector<128x32xf32>
    %91 = arith.select %50, %89, %90 : vector<128x32xi1>, vector<128x32xf32>
    %92 = vector.extract_strided_slice %13 {offsets = [0, 5, 0], sizes = [1, 1, 32], strides = [1, 1, 1]} : vector<2x9x32xf32> to vector<1x1x32xf32>
    %93 = vector.shape_cast %92 : vector<1x1x32xf32> to vector<1x32xf32>
    %94 = vector.broadcast %93 : vector<1x32xf32> to vector<128x32xf32>
    %95 = arith.mulf %91, %94 : vector<128x32xf32>
    %96 = arith.addf %88, %95 : vector<128x32xf32>
    %c120_i32 = arith.constant 120 : i32
    %97 = tpu.dynamic_rotate %8 by %c120_i32 dim 0 : vector<128x32xf32>, i32 -> vector<128x32xf32>
    %cst_32 = arith.constant 0.000000e+00 : f32
    %98 = vector.broadcast %cst_32 : f32 to vector<128x32xf32>
    %99 = arith.select %32, %97, %98 : vector<128x32xi1>, vector<128x32xf32>
    %c1_i32_33 = arith.constant 1 : i32
    %100 = tpu.dynamic_rotate %99 by %c1_i32_33 dim 0 : vector<128x32xf32>, i32 -> vector<128x32xf32>
    %cst_34 = arith.constant 0.000000e+00 : f32
    %101 = vector.broadcast %cst_34 : f32 to vector<128x32xf32>
    %102 = arith.select %41, %100, %101 : vector<128x32xi1>, vector<128x32xf32>
    %103 = vector.extract_strided_slice %13 {offsets = [0, 6, 0], sizes = [1, 1, 32], strides = [1, 1, 1]} : vector<2x9x32xf32> to vector<1x1x32xf32>
    %104 = vector.shape_cast %103 : vector<1x1x32xf32> to vector<1x32xf32>
    %105 = vector.broadcast %104 : vector<1x32xf32> to vector<128x32xf32>
    %106 = arith.mulf %102, %105 : vector<128x32xf32>
    %107 = arith.addf %96, %106 : vector<128x32xf32>
    %108 = vector.extract_strided_slice %13 {offsets = [0, 7, 0], sizes = [1, 1, 32], strides = [1, 1, 1]} : vector<2x9x32xf32> to vector<1x1x32xf32>
    %109 = vector.shape_cast %108 : vector<1x1x32xf32> to vector<1x32xf32>
    %110 = vector.broadcast %109 : vector<1x32xf32> to vector<128x32xf32>
    %111 = arith.mulf %99, %110 : vector<128x32xf32>
    %112 = arith.addf %107, %111 : vector<128x32xf32>
    %c127_i32_35 = arith.constant 127 : i32
    %113 = tpu.dynamic_rotate %99 by %c127_i32_35 dim 0 : vector<128x32xf32>, i32 -> vector<128x32xf32>
    %cst_36 = arith.constant 0.000000e+00 : f32
    %114 = vector.broadcast %cst_36 : f32 to vector<128x32xf32>
    %115 = arith.select %50, %113, %114 : vector<128x32xi1>, vector<128x32xf32>
    %116 = vector.extract_strided_slice %13 {offsets = [0, 8, 0], sizes = [1, 1, 32], strides = [1, 1, 1]} : vector<2x9x32xf32> to vector<1x1x32xf32>
    %117 = vector.shape_cast %116 : vector<1x1x32xf32> to vector<1x32xf32>
    %118 = vector.broadcast %117 : vector<1x32xf32> to vector<128x32xf32>
    %119 = arith.mulf %115, %118 : vector<128x32xf32>
    %120 = arith.addf %112, %119 : vector<128x32xf32>
    %121 = vector.extract_strided_slice %14 {offsets = [0, 0, 0], sizes = [1, 1, 32], strides = [1, 1, 1]} : vector<2x1x32xf32> to vector<1x1x32xf32>
    %122 = vector.shape_cast %121 : vector<1x1x32xf32> to vector<1x32xf32>
    %123 = vector.broadcast %122 : vector<1x32xf32> to vector<128x32xf32>
    %124 = arith.addf %120, %123 : vector<128x32xf32>
    %cst_37 = arith.constant 0.000000e+00 : f32
    %125 = vector.broadcast %cst_37 : f32 to vector<128x32xf32>
    %126 = arith.maximumf %124, %125 : vector<128x32xf32>
    %c-16_i32 = arith.constant -16 : i32
    %127 = vector.broadcast %c-16_i32 : i32 to vector<128x32xi32>
    %128 = arith.addi %10, %127 : vector<128x32xi32>
    %c0_i32_38 = arith.constant 0 : i32
    %129 = vector.broadcast %c0_i32_38 : i32 to vector<128x32xi32>
    %130 = arith.cmpi sge, %128, %129 : vector<128x32xi32>
    %c-16_i32_39 = arith.constant -16 : i32
    %131 = vector.broadcast %c-16_i32_39 : i32 to vector<128x32xi32>
    %132 = arith.addi %10, %131 : vector<128x32xi32>
    %c64_i32_40 = arith.constant 64 : i32
    %133 = vector.broadcast %c64_i32_40 : i32 to vector<128x32xi32>
    %134 = arith.cmpi slt, %132, %133 : vector<128x32xi32>
    %135 = arith.andi %130, %134 : vector<128x32xi1>
    %c16_i32 = arith.constant 16 : i32
    %136 = vector.broadcast %c16_i32 : i32 to vector<128x32xi32>
    %137 = arith.addi %10, %136 : vector<128x32xi32>
    %c0_i32_41 = arith.constant 0 : i32
    %138 = vector.broadcast %c0_i32_41 : i32 to vector<128x32xi32>
    %139 = arith.cmpi sge, %137, %138 : vector<128x32xi32>
    %c16_i32_42 = arith.constant 16 : i32
    %140 = vector.broadcast %c16_i32_42 : i32 to vector<128x32xi32>
    %141 = arith.addi %10, %140 : vector<128x32xi32>
    %c64_i32_43 = arith.constant 64 : i32
    %142 = vector.broadcast %c64_i32_43 : i32 to vector<128x32xi32>
    %143 = arith.cmpi slt, %141, %142 : vector<128x32xi32>
    %144 = arith.andi %139, %143 : vector<128x32xi1>
    %c-2_i32 = arith.constant -2 : i32
    %145 = vector.broadcast %c-2_i32 : i32 to vector<128x32xi32>
    %146 = arith.addi %12, %145 : vector<128x32xi32>
    %c0_i32_44 = arith.constant 0 : i32
    %147 = vector.broadcast %c0_i32_44 : i32 to vector<128x32xi32>
    %148 = arith.cmpi sge, %146, %147 : vector<128x32xi32>
    %c-2_i32_45 = arith.constant -2 : i32
    %149 = vector.broadcast %c-2_i32_45 : i32 to vector<128x32xi32>
    %150 = arith.addi %12, %149 : vector<128x32xi32>
    %c8_i32_46 = arith.constant 8 : i32
    %151 = vector.broadcast %c8_i32_46 : i32 to vector<128x32xi32>
    %152 = arith.cmpi slt, %150, %151 : vector<128x32xi32>
    %153 = arith.andi %148, %152 : vector<128x32xi1>
    %c2_i32 = arith.constant 2 : i32
    %154 = vector.broadcast %c2_i32 : i32 to vector<128x32xi32>
    %155 = arith.addi %12, %154 : vector<128x32xi32>
    %c0_i32_47 = arith.constant 0 : i32
    %156 = vector.broadcast %c0_i32_47 : i32 to vector<128x32xi32>
    %157 = arith.cmpi sge, %155, %156 : vector<128x32xi32>
    %c2_i32_48 = arith.constant 2 : i32
    %158 = vector.broadcast %c2_i32_48 : i32 to vector<128x32xi32>
    %159 = arith.addi %12, %158 : vector<128x32xi32>
    %c8_i32_49 = arith.constant 8 : i32
    %160 = vector.broadcast %c8_i32_49 : i32 to vector<128x32xi32>
    %161 = arith.cmpi slt, %159, %160 : vector<128x32xi32>
    %162 = arith.andi %157, %161 : vector<128x32xi1>
    %cst_50 = arith.constant 0.000000e+00 : f32
    %163 = vector.broadcast %cst_50 : f32 to vector<128x32xf32>
    %c16_i32_51 = arith.constant 16 : i32
    %164 = tpu.dynamic_rotate %8 by %c16_i32_51 dim 0 : vector<128x32xf32>, i32 -> vector<128x32xf32>
    %cst_52 = arith.constant 0.000000e+00 : f32
    %165 = vector.broadcast %cst_52 : f32 to vector<128x32xf32>
    %166 = arith.select %135, %164, %165 : vector<128x32xi1>, vector<128x32xf32>
    %c2_i32_53 = arith.constant 2 : i32
    %167 = tpu.dynamic_rotate %166 by %c2_i32_53 dim 0 : vector<128x32xf32>, i32 -> vector<128x32xf32>
    %cst_54 = arith.constant 0.000000e+00 : f32
    %168 = vector.broadcast %cst_54 : f32 to vector<128x32xf32>
    %169 = arith.select %153, %167, %168 : vector<128x32xi1>, vector<128x32xf32>
    %170 = vector.extract_strided_slice %13 {offsets = [1, 0, 0], sizes = [1, 1, 32], strides = [1, 1, 1]} : vector<2x9x32xf32> to vector<1x1x32xf32>
    %171 = vector.shape_cast %170 : vector<1x1x32xf32> to vector<1x32xf32>
    %172 = vector.broadcast %171 : vector<1x32xf32> to vector<128x32xf32>
    %173 = arith.mulf %169, %172 : vector<128x32xf32>
    %174 = arith.addf %163, %173 : vector<128x32xf32>
    %175 = vector.extract_strided_slice %13 {offsets = [1, 1, 0], sizes = [1, 1, 32], strides = [1, 1, 1]} : vector<2x9x32xf32> to vector<1x1x32xf32>
    %176 = vector.shape_cast %175 : vector<1x1x32xf32> to vector<1x32xf32>
    %177 = vector.broadcast %176 : vector<1x32xf32> to vector<128x32xf32>
    %178 = arith.mulf %166, %177 : vector<128x32xf32>
    %179 = arith.addf %174, %178 : vector<128x32xf32>
    %c126_i32 = arith.constant 126 : i32
    %180 = tpu.dynamic_rotate %166 by %c126_i32 dim 0 : vector<128x32xf32>, i32 -> vector<128x32xf32>
    %cst_55 = arith.constant 0.000000e+00 : f32
    %181 = vector.broadcast %cst_55 : f32 to vector<128x32xf32>
    %182 = arith.select %162, %180, %181 : vector<128x32xi1>, vector<128x32xf32>
    %183 = vector.extract_strided_slice %13 {offsets = [1, 2, 0], sizes = [1, 1, 32], strides = [1, 1, 1]} : vector<2x9x32xf32> to vector<1x1x32xf32>
    %184 = vector.shape_cast %183 : vector<1x1x32xf32> to vector<1x32xf32>
    %185 = vector.broadcast %184 : vector<1x32xf32> to vector<128x32xf32>
    %186 = arith.mulf %182, %185 : vector<128x32xf32>
    %187 = arith.addf %179, %186 : vector<128x32xf32>
    %c2_i32_56 = arith.constant 2 : i32
    %188 = tpu.dynamic_rotate %8 by %c2_i32_56 dim 0 : vector<128x32xf32>, i32 -> vector<128x32xf32>
    %cst_57 = arith.constant 0.000000e+00 : f32
    %189 = vector.broadcast %cst_57 : f32 to vector<128x32xf32>
    %190 = arith.select %153, %188, %189 : vector<128x32xi1>, vector<128x32xf32>
    %191 = vector.extract_strided_slice %13 {offsets = [1, 3, 0], sizes = [1, 1, 32], strides = [1, 1, 1]} : vector<2x9x32xf32> to vector<1x1x32xf32>
    %192 = vector.shape_cast %191 : vector<1x1x32xf32> to vector<1x32xf32>
    %193 = vector.broadcast %192 : vector<1x32xf32> to vector<128x32xf32>
    %194 = arith.mulf %190, %193 : vector<128x32xf32>
    %195 = arith.addf %187, %194 : vector<128x32xf32>
    %196 = vector.extract_strided_slice %13 {offsets = [1, 4, 0], sizes = [1, 1, 32], strides = [1, 1, 1]} : vector<2x9x32xf32> to vector<1x1x32xf32>
    %197 = vector.shape_cast %196 : vector<1x1x32xf32> to vector<1x32xf32>
    %198 = vector.broadcast %197 : vector<1x32xf32> to vector<128x32xf32>
    %199 = arith.mulf %8, %198 : vector<128x32xf32>
    %200 = arith.addf %195, %199 : vector<128x32xf32>
    %c126_i32_58 = arith.constant 126 : i32
    %201 = tpu.dynamic_rotate %8 by %c126_i32_58 dim 0 : vector<128x32xf32>, i32 -> vector<128x32xf32>
    %cst_59 = arith.constant 0.000000e+00 : f32
    %202 = vector.broadcast %cst_59 : f32 to vector<128x32xf32>
    %203 = arith.select %162, %201, %202 : vector<128x32xi1>, vector<128x32xf32>
    %204 = vector.extract_strided_slice %13 {offsets = [1, 5, 0], sizes = [1, 1, 32], strides = [1, 1, 1]} : vector<2x9x32xf32> to vector<1x1x32xf32>
    %205 = vector.shape_cast %204 : vector<1x1x32xf32> to vector<1x32xf32>
    %206 = vector.broadcast %205 : vector<1x32xf32> to vector<128x32xf32>
    %207 = arith.mulf %203, %206 : vector<128x32xf32>
    %208 = arith.addf %200, %207 : vector<128x32xf32>
    %c112_i32 = arith.constant 112 : i32
    %209 = tpu.dynamic_rotate %8 by %c112_i32 dim 0 : vector<128x32xf32>, i32 -> vector<128x32xf32>
    %cst_60 = arith.constant 0.000000e+00 : f32
    %210 = vector.broadcast %cst_60 : f32 to vector<128x32xf32>
    %211 = arith.select %144, %209, %210 : vector<128x32xi1>, vector<128x32xf32>
    %c2_i32_61 = arith.constant 2 : i32
    %212 = tpu.dynamic_rotate %211 by %c2_i32_61 dim 0 : vector<128x32xf32>, i32 -> vector<128x32xf32>
    %cst_62 = arith.constant 0.000000e+00 : f32
    %213 = vector.broadcast %cst_62 : f32 to vector<128x32xf32>
    %214 = arith.select %153, %212, %213 : vector<128x32xi1>, vector<128x32xf32>
    %215 = vector.extract_strided_slice %13 {offsets = [1, 6, 0], sizes = [1, 1, 32], strides = [1, 1, 1]} : vector<2x9x32xf32> to vector<1x1x32xf32>
    %216 = vector.shape_cast %215 : vector<1x1x32xf32> to vector<1x32xf32>
    %217 = vector.broadcast %216 : vector<1x32xf32> to vector<128x32xf32>
    %218 = arith.mulf %214, %217 : vector<128x32xf32>
    %219 = arith.addf %208, %218 : vector<128x32xf32>
    %220 = vector.extract_strided_slice %13 {offsets = [1, 7, 0], sizes = [1, 1, 32], strides = [1, 1, 1]} : vector<2x9x32xf32> to vector<1x1x32xf32>
    %221 = vector.shape_cast %220 : vector<1x1x32xf32> to vector<1x32xf32>
    %222 = vector.broadcast %221 : vector<1x32xf32> to vector<128x32xf32>
    %223 = arith.mulf %211, %222 : vector<128x32xf32>
    %224 = arith.addf %219, %223 : vector<128x32xf32>
    %c126_i32_63 = arith.constant 126 : i32
    %225 = tpu.dynamic_rotate %211 by %c126_i32_63 dim 0 : vector<128x32xf32>, i32 -> vector<128x32xf32>
    %cst_64 = arith.constant 0.000000e+00 : f32
    %226 = vector.broadcast %cst_64 : f32 to vector<128x32xf32>
    %227 = arith.select %162, %225, %226 : vector<128x32xi1>, vector<128x32xf32>
    %228 = vector.extract_strided_slice %13 {offsets = [1, 8, 0], sizes = [1, 1, 32], strides = [1, 1, 1]} : vector<2x9x32xf32> to vector<1x1x32xf32>
    %229 = vector.shape_cast %228 : vector<1x1x32xf32> to vector<1x32xf32>
    %230 = vector.broadcast %229 : vector<1x32xf32> to vector<128x32xf32>
    %231 = arith.mulf %227, %230 : vector<128x32xf32>
    %232 = arith.addf %224, %231 : vector<128x32xf32>
    %233 = vector.extract_strided_slice %14 {offsets = [1, 0, 0], sizes = [1, 1, 32], strides = [1, 1, 1]} : vector<2x1x32xf32> to vector<1x1x32xf32>
    %234 = vector.shape_cast %233 : vector<1x1x32xf32> to vector<1x32xf32>
    %235 = vector.broadcast %234 : vector<1x32xf32> to vector<128x32xf32>
    %236 = arith.addf %232, %235 : vector<128x32xf32>
    %cst_65 = arith.constant 0.000000e+00 : f32
    %237 = vector.broadcast %cst_65 : f32 to vector<128x32xf32>
    %238 = arith.maximumf %236, %237 : vector<128x32xf32>
    %239 = arith.addf %126, %238 : vector<128x32xf32>
    %240 = vector.shape_cast %239 : vector<128x32xf32> to vector<2x64x32xf32>
    %cst_66 = arith.constant dense<0.000000e+00> : vector<2x32xf32>
    %241 = vector.multi_reduction <add>, %240, %cst_66 [1] : vector<2x64x32xf32> to vector<2x32xf32>
    %cst_67 = arith.constant 1.562500e-02 : f32
    %242 = vector.broadcast %cst_67 : f32 to vector<2x32xf32>
    %243 = arith.mulf %241, %242 : vector<2x32xf32>
    %c0_68 = arith.constant 0 : index
    %c0_69 = arith.constant 0 : index
    %244 = vector.load %arg6[%c0_68, %c0_69] : memref<32x32xf32, #tpu.memory_space<vmem>>, vector<32x32xf32>
    %cst_70 = arith.constant dense<0.000000e+00> : vector<2x32xf32>
    %245 = tpu.matmul %243, %244, %cst_70 {dimension_numbers = #tpu.dot_dimension_numbers<[1], [0], [0], [1], [0, 0, 1, 1], [], []>} : vector<2x32xf32>, vector<32x32xf32>, vector<2x32xf32> -> vector<2x32xf32>
    %c0_71 = arith.constant 0 : index
    %c0_72 = arith.constant 0 : index
    %246 = vector.load %arg7[%c0_71, %c0_72] : memref<1x32xf32, #tpu.memory_space<vmem>>, vector<1x32xf32>
    %247 = vector.broadcast %246 : vector<1x32xf32> to vector<2x32xf32>
    %248 = arith.addf %245, %247 : vector<2x32xf32>
    %cst_73 = arith.constant 0.000000e+00 : f32
    %249 = vector.broadcast %cst_73 : f32 to vector<2x32xf32>
    %250 = arith.maximumf %248, %249 : vector<2x32xf32>
    %c0_74 = arith.constant 0 : index
    %c0_75 = arith.constant 0 : index
    %251 = vector.load %arg8[%c0_74, %c0_75] : memref<32x64xf32, #tpu.memory_space<vmem>>, vector<32x64xf32>
    %cst_76 = arith.constant dense<0.000000e+00> : vector<2x64xf32>
    %252 = tpu.matmul %250, %251, %cst_76 {dimension_numbers = #tpu.dot_dimension_numbers<[1], [0], [0], [1], [0, 0, 1, 1], [], []>} : vector<2x32xf32>, vector<32x64xf32>, vector<2x64xf32> -> vector<2x64xf32>
    %253 = vector.extract_strided_slice %252 {offsets = [0, 0], sizes = [2, 32], strides = [1, 1]} : vector<2x64xf32> to vector<2x32xf32>
    %254 = vector.extract_strided_slice %252 {offsets = [0, 32], sizes = [2, 32], strides = [1, 1]} : vector<2x64xf32> to vector<2x32xf32>
    %255 = arith.subf %254, %253 : vector<2x32xf32>
    %256 = math.exp %255 : vector<2x32xf32>
    %cst_77 = arith.constant 1.000000e+00 : f32
    %257 = vector.broadcast %cst_77 : f32 to vector<2x32xf32>
    %258 = arith.addf %257, %256 : vector<2x32xf32>
    %cst_78 = arith.constant 1.000000e+00 : f32
    %259 = vector.broadcast %cst_78 : f32 to vector<2x32xf32>
    %260 = arith.divf %259, %258 : vector<2x32xf32>
    %cst_79 = arith.constant 1.000000e+00 : f32
    %261 = vector.broadcast %cst_79 : f32 to vector<2x32xf32>
    %262 = arith.subf %261, %260 : vector<2x32xf32>
    %263 = vector.shape_cast %126 : vector<128x32xf32> to vector<2x64x32xf32>
    %264 = vector.shape_cast %260 : vector<2x32xf32> to vector<2x1x32xf32>
    %265 = vector.broadcast %264 : vector<2x1x32xf32> to vector<2x64x32xf32>
    %266 = arith.mulf %263, %265 : vector<2x64x32xf32>
    %267 = vector.shape_cast %238 : vector<128x32xf32> to vector<2x64x32xf32>
    %268 = vector.shape_cast %262 : vector<2x32xf32> to vector<2x1x32xf32>
    %269 = vector.broadcast %268 : vector<2x1x32xf32> to vector<2x64x32xf32>
    %270 = arith.mulf %267, %269 : vector<2x64x32xf32>
    %271 = arith.addf %266, %270 : vector<2x64x32xf32>
    %272 = vector.shape_cast %271 : vector<2x64x32xf32> to vector<128x32xf32>
    %273 = arith.truncf %272 : vector<128x32xf32> to vector<128x32xbf16>
    %c0_80 = arith.constant 0 : index
    %c0_81 = arith.constant 0 : index
    %274 = vector.load %arg9[%c0_80, %c0_81] : memref<32x64xbf16, #tpu.memory_space<vmem>>, vector<32x64xbf16>
    %cst_82 = arith.constant dense<0.000000e+00> : vector<128x64xf32>
    %275 = tpu.matmul %273, %274, %cst_82 {dimension_numbers = #tpu.dot_dimension_numbers<[1], [0], [0], [1], [0, 0, 1, 1], [], []>} : vector<128x32xbf16>, vector<32x64xbf16>, vector<128x64xf32> -> vector<128x64xf32>
    %c0_83 = arith.constant 0 : index
    %c0_84 = arith.constant 0 : index
    %276 = vector.load %arg10[%c0_83, %c0_84] : memref<1x64xf32, #tpu.memory_space<vmem>>, vector<1x64xf32>
    %277 = vector.broadcast %276 : vector<1x64xf32> to vector<128x64xf32>
    %278 = arith.addf %275, %277 : vector<128x64xf32>
    %279 = arith.addf %278, %0 : vector<128x64xf32>
    %cst_85 = arith.constant 0.000000e+00 : f32
    %280 = vector.broadcast %cst_85 : f32 to vector<128x64xf32>
    %281 = arith.maximumf %279, %280 : vector<128x64xf32>
    %c0_86 = arith.constant 0 : index
    %c0_87 = arith.constant 0 : index
    %282 = vector.load %arg11[%c0_86, %c0_87] : memref<128x64xf32, #tpu.memory_space<vmem>>, vector<128x64xf32>
    tpu.vector_store %arg11[%c0_86, %c0_87], %281 {strides = array<i32>} : memref<128x64xf32, #tpu.memory_space<vmem>>, vector<128x64xf32>,
    return
  }
  func.func @transform_0(%arg0: i32) -> (i32, i32) {
    %c0_i32 = arith.constant 0 : i32
    %c0_i32_0 = arith.constant 0 : i32
    return %arg0, %c0_i32 : i32, i32
  }
  func.func @transform_1(%arg0: i32) -> (i32, i32) {
    %c0_i32 = arith.constant 0 : i32
    %c0_i32_0 = arith.constant 0 : i32
    %c0_i32_1 = arith.constant 0 : i32
    return %c0_i32, %c0_i32_0 : i32, i32
  }
  func.func @transform_2(%arg0: i32) -> (i32, i32) {
    %c0_i32 = arith.constant 0 : i32
    %c0_i32_0 = arith.constant 0 : i32
    %c0_i32_1 = arith.constant 0 : i32
    return %c0_i32, %c0_i32_0 : i32, i32
  }
  func.func @transform_3(%arg0: i32) -> (i32, i32, i32) {
    %c0_i32 = arith.constant 0 : i32
    %c0_i32_0 = arith.constant 0 : i32
    %c0_i32_1 = arith.constant 0 : i32
    %c0_i32_2 = arith.constant 0 : i32
    return %c0_i32, %c0_i32_0, %c0_i32_1 : i32, i32, i32
  }
  func.func @transform_4(%arg0: i32) -> (i32, i32, i32) {
    %c0_i32 = arith.constant 0 : i32
    %c0_i32_0 = arith.constant 0 : i32
    %c0_i32_1 = arith.constant 0 : i32
    %c0_i32_2 = arith.constant 0 : i32
    return %c0_i32, %c0_i32_0, %c0_i32_1 : i32, i32, i32
  }
  func.func @transform_5(%arg0: i32) -> (i32, i32) {
    %c0_i32 = arith.constant 0 : i32
    %c0_i32_0 = arith.constant 0 : i32
    %c0_i32_1 = arith.constant 0 : i32
    return %c0_i32, %c0_i32_0 : i32, i32
  }
  func.func @transform_6(%arg0: i32) -> (i32, i32) {
    %c0_i32 = arith.constant 0 : i32
    %c0_i32_0 = arith.constant 0 : i32
    %c0_i32_1 = arith.constant 0 : i32
    return %c0_i32, %c0_i32_0 : i32, i32
  }
  func.func @transform_7(%arg0: i32) -> (i32, i32) {
    %c0_i32 = arith.constant 0 : i32
    %c0_i32_0 = arith.constant 0 : i32
    %c0_i32_1 = arith.constant 0 : i32
    return %c0_i32, %c0_i32_0 : i32, i32
  }
  func.func @transform_8(%arg0: i32) -> (i32, i32) {
    %c0_i32 = arith.constant 0 : i32
    %c0_i32_0 = arith.constant 0 : i32
    %c0_i32_1 = arith.constant 0 : i32
    return %c0_i32, %c0_i32_0 : i32, i32
  }
  func.func @transform_9(%arg0: i32) -> (i32, i32) {
    %c0_i32 = arith.constant 0 : i32
    %c0_i32_0 = arith.constant 0 : i32
    %c0_i32_1 = arith.constant 0 : i32
    return %c0_i32, %c0_i32_0 : i32, i32
  }
  func.func @transform_10(%arg0: i32) -> (i32, i32) {
    %c0_i32 = arith.constant 0 : i32
    %c0_i32_0 = arith.constant 0 : i32
    return %arg0, %c0_i32 : i32, i32
  }
}

</mosaic_0001>

<llo_original>
// kernel: skblock_forward.1
$region0: #{skblock_forward.1}
  #allocation0 [shape = 'u32[]', space=smem, size = 0x4, offset = 0x4, fixed_abs, tag = 'smem constant byte address 0x4 - core index']
  #allocation1 [shape = 'u32[144,128]{1,0:T(1,128)}', space=vmem, size = 0x12000, scoped, tag = 'internal scratch']
  %s0 = inlined_call_operand.vmem [shape: f32[256,64], index: 0, kind: input, shape index: {}, may-alias: {0,10}]
  %s1 = inlined_call_operand.vmem [shape: bf16[64,32], index: 1, kind: input, shape index: {}]
  %s2 = inlined_call_operand.vmem [shape: f32[1,32], index: 2, kind: input, shape index: {}]
  %s3 = inlined_call_operand.vmem [shape: f32[2,9,32], index: 3, kind: input, shape index: {}]
  %s4 = inlined_call_operand.vmem [shape: f32[2,1,32], index: 4, kind: input, shape index: {}]
  %s5 = inlined_call_operand.vmem [shape: f32[32,32], index: 5, kind: input, shape index: {}]
  %s6 = inlined_call_operand.vmem [shape: f32[1,32], index: 6, kind: input, shape index: {}]
  %s7 = inlined_call_operand.vmem [shape: f32[32,64], index: 7, kind: input, shape index: {}]
  %s8 = inlined_call_operand.vmem [shape: bf16[32,64], index: 8, kind: input, shape index: {}]
  %s9 = inlined_call_operand.vmem [shape: f32[1,64], index: 9, kind: input, shape index: {}]
  %s10 = inlined_call_operand.vmem [shape: f32[256,64], index: 10, kind: output, shape index: {}, may-alias: {0,10}]
  %s11 = sld [smem:[#allocation0]]
  $region73: #{skblock_forward.1} parent=0
    _
  %s13 = ssub.s32 1, %s11
  %s14 = scalar_select 0, %s13, %s11
  loop: start=0, step=1, limit=4
  $region2: #{skblock_forward.1} parent=0 // loop_pre_header
    _
  $region3: #{skblock_forward.1} parent=0 // loop_header
    %s16 = sphi 0, %s20
    %p17 = scmp.ge.s32.totalorder %s16, 4
    %s26 = sphi 0, %s28
    %s29 = sphi 0, %s26
    %s30 = sphi 0, %s29
    %s46 = sphi 0, %s30
    %s50 = sphi 0, %s50
    %s52 = sphi 0, %s50
    %s53 = sphi 0, %s52
    %s67 = sphi 0, %s53
    %s71 = sphi 0, %s71
    %s73 = sphi 0, %s71
    %s74 = sphi 0, %s73
    %s88 = sphi 0, %s74
    %s92 = sphi 0, %s92
    %s94 = sphi 0, %s92
    %s95 = sphi 0, %s94
    %s109 = sphi 0, %s95
    %s113 = sphi 0, %s113
    %s115 = sphi 0, %s113
    %s116 = sphi 0, %s115
    %s130 = sphi 0, %s116
    %s134 = sphi 0, %s134
    %s136 = sphi 0, %s134
    %s137 = sphi 0, %s136
    %s151 = sphi 0, %s137
    %s155 = sphi 0, %s155
    %s157 = sphi 0, %s155
    %s158 = sphi 0, %s157
    %s172 = sphi 0, %s158
    %s176 = sphi 0, %s176
    %s178 = sphi 0, %s176
    %s179 = sphi 0, %s178
    %s193 = sphi 0, %s179
    %s197 = sphi 0, %s197
    %s199 = sphi 0, %s197
    %s200 = sphi 0, %s199
    %s214 = sphi 0, %s200
    %s218 = sphi 0, %s218
    %s220 = sphi 0, %s218
    %s221 = sphi 0, %s220
    %s235 = sphi 0, %s221
    %s241 = sphi 0, %s243
    %s244 = sphi 0, %s241
    %s245 = sphi 0, %s244
    %s261 = sphi 0, %s245
  $region4: #{skblock_forward.1} parent=0 // loop_header_branch
    %19 = sbr.rel (%p17) target = $region8
  $region5: #{skblock_forward.1} parent=0 // loop_body
    %s21 = ssub.s32 %s16, 1
    %s22 = ssub.s32 %s16, 2
    %s23 = sadd.s32 %s16, 1
    %s24 = ssub.s32 %s16, %s23
    %p25 = scmp.eq.s32.totalorder %s24, 0
    %s27 = sadd.s32 %s26, 1
    %s28 = scalar_select %p25, %s26, %s27
    %p31 = pneg %p25
    %p32 = scmp.eq.s32.totalorder %s16, 1
    %p33 = por %p31, %p32
    %p34 = scmp.ne.s32.totalorder %s26, %s29
    %p35 = scmp.eq.s32.totalorder %s16, 0
    %p36 = por %p34, %p35
    %p37 = scmp.ne.s32.totalorder %s26, %s29
    %p38 = scmp.eq.s32.totalorder %s21, 1
    %p39 = por %p37, %p38
    %p40 = scmp.ne.s32.totalorder %s29, %s30
    %p41 = scmp.eq.s32.totalorder %s21, 0
    %p42 = por %p40, %p41
    %p43 = scmp.ne.s32.totalorder %s29, %s30
    %p44 = scmp.eq.s32.totalorder %s22, 1
    %p45 = por %p43, %p44
    %p47 = scmp.ne.s32.totalorder %s30, %s46
    %p48 = scmp.eq.s32.totalorder %s22, 0
    %p49 = por %p47, %p48
    %s51 = sadd.s32 %s50, 1
    %p54 = scmp.eq.s32.totalorder %s16, 1
    %p55 = scmp.ne.s32.totalorder %s50, %s52
    %p56 = scmp.eq.s32.totalorder %s16, 0
    %p57 = por %p55, %p56
    %p58 = scmp.ne.s32.totalorder %s50, %s52
    %p59 = scmp.eq.s32.totalorder %s21, 1
    %p60 = por %p58, %p59
    %p61 = scmp.ne.s32.totalorder %s52, %s53
    %p62 = scmp.eq.s32.totalorder %s21, 0
    %p63 = por %p61, %p62
    %p64 = scmp.ne.s32.totalorder %s52, %s53
    %p65 = scmp.eq.s32.totalorder %s22, 1
    %p66 = por %p64, %p65
    %p68 = scmp.ne.s32.totalorder %s53, %s67
    %p69 = scmp.eq.s32.totalorder %s22, 0
    %p70 = por %p68, %p69
    %s72 = sadd.s32 %s71, 1
    %p75 = scmp.eq.s32.totalorder %s16, 1
    %p76 = scmp.ne.s32.totalorder %s71, %s73
    %p77 = scmp.eq.s32.totalorder %s16, 0
    %p78 = por %p76, %p77
    %p79 = scmp.ne.s32.totalorder %s71, %s73
    %p80 = scmp.eq.s32.totalorder %s21, 1
    %p81 = por %p79, %p80
    %p82 = scmp.ne.s32.totalorder %s73, %s74
    %p83 = scmp.eq.s32.totalorder %s21, 0
    %p84 = por %p82, %p83
    %p85 = scmp.ne.s32.totalorder %s73, %s74
    %p86 = scmp.eq.s32.totalorder %s22, 1
    %p87 = por %p85, %p86
    %p89 = scmp.ne.s32.totalorder %s74, %s88
    %p90 = scmp.eq.s32.totalorder %s22, 0
    %p91 = por %p89, %p90
    %s93 = sadd.s32 %s92, 1
    %p96 = scmp.eq.s32.totalorder %s16, 1
    %p97 = scmp.ne.s32.totalorder %s92, %s94
    %p98 = scmp.eq.s32.totalorder %s16, 0
    %p99 = por %p97, %p98
    %p100 = scmp.ne.s32.totalorder %s92, %s94
    %p101 = scmp.eq.s32.totalorder %s21, 1
    %p102 = por %p100, %p101
    %p103 = scmp.ne.s32.totalorder %s94, %s95
    %p104 = scmp.eq.s32.totalorder %s21, 0
    %p105 = por %p103, %p104
    %p106 = scmp.ne.s32.totalorder %s94, %s95
    %p107 = scmp.eq.s32.totalorder %s22, 1
    %p108 = por %p106, %p107
    %p110 = scmp.ne.s32.totalorder %s95, %s109
    %p111 = scmp.eq.s32.totalorder %s22, 0
    %p112 = por %p110, %p111
    %s114 = sadd.s32 %s113, 1
    %p117 = scmp.eq.s32.totalorder %s16, 1
    %p118 = scmp.ne.s32.totalorder %s113, %s115
    %p119 = scmp.eq.s32.totalorder %s16, 0
    %p120 = por %p118, %p119
    %p121 = scmp.ne.s32.totalorder %s113, %s115
    %p122 = scmp.eq.s32.totalorder %s21, 1
    %p123 = por %p121, %p122
    %p124 = scmp.ne.s32.totalorder %s115, %s116
    %p125 = scmp.eq.s32.totalorder %s21, 0
    %p126 = por %p124, %p125
    %p127 = scmp.ne.s32.totalorder %s115, %s116
    %p128 = scmp.eq.s32.totalorder %s22, 1
    %p129 = por %p127, %p128
    %p131 = scmp.ne.s32.totalorder %s116, %s130
    %p132 = scmp.eq.s32.totalorder %s22, 0
    %p133 = por %p131, %p132
    %s135 = sadd.s32 %s134, 1
    %p138 = scmp.eq.s32.totalorder %s16, 1
    %p139 = scmp.ne.s32.totalorder %s134, %s136
    %p140 = scmp.eq.s32.totalorder %s16, 0
    %p141 = por %p139, %p140
    %p142 = scmp.ne.s32.totalorder %s134, %s136
    %p143 = scmp.eq.s32.totalorder %s21, 1
    %p144 = por %p142, %p143
    %p145 = scmp.ne.s32.totalorder %s136, %s137
    %p146 = scmp.eq.s32.totalorder %s21, 0
    %p147 = por %p145, %p146
    %p148 = scmp.ne.s32.totalorder %s136, %s137
    %p149 = scmp.eq.s32.totalorder %s22, 1
    %p150 = por %p148, %p149
    %p152 = scmp.ne.s32.totalorder %s137, %s151
    %p153 = scmp.eq.s32.totalorder %s22, 0
    %p154 = por %p152, %p153
    %s156 = sadd.s32 %s155, 1
    %p159 = scmp.eq.s32.totalorder %s16, 1
    %p160 = scmp.ne.s32.totalorder %s155, %s157
    %p161 = scmp.eq.s32.totalorder %s16, 0
    %p162 = por %p160, %p161
    %p163 = scmp.ne.s32.totalorder %s155, %s157
    %p164 = scmp.eq.s32.totalorder %s21, 1
    %p165 = por %p163, %p164
    %p166 = scmp.ne.s32.totalorder %s157, %s158
    %p167 = scmp.eq.s32.totalorder %s21, 0
    %p168 = por %p166, %p167
    %p169 = scmp.ne.s32.totalorder %s157, %s158
    %p170 = scmp.eq.s32.totalorder %s22, 1
    %p171 = por %p169, %p170
    %p173 = scmp.ne.s32.totalorder %s158, %s172
    %p174 = scmp.eq.s32.totalorder %s22, 0
    %p175 = por %p173, %p174
    %s177 = sadd.s32 %s176, 1
    %p180 = scmp.eq.s32.totalorder %s16, 1
    %p181 = scmp.ne.s32.totalorder %s176, %s178
    %p182 = scmp.eq.s32.totalorder %s16, 0
    %p183 = por %p181, %p182
    %p184 = scmp.ne.s32.totalorder %s176, %s178
    %p185 = scmp.eq.s32.totalorder %s21, 1
    %p186 = por %p184, %p185
    %p187 = scmp.ne.s32.totalorder %s178, %s179
    %p188 = scmp.eq.s32.totalorder %s21, 0
    %p189 = por %p187, %p188
    %p190 = scmp.ne.s32.totalorder %s178, %s179
    %p191 = scmp.eq.s32.totalorder %s22, 1
    %p192 = por %p190, %p191
    %p194 = scmp.ne.s32.totalorder %s179, %s193
    %p195 = scmp.eq.s32.totalorder %s22, 0
    %p196 = por %p194, %p195
    %s198 = sadd.s32 %s197, 1
    %p201 = scmp.eq.s32.totalorder %s16, 1
    %p202 = scmp.ne.s32.totalorder %s197, %s199
    %p203 = scmp.eq.s32.totalorder %s16, 0
    %p204 = por %p202, %p203
    %p205 = scmp.ne.s32.totalorder %s197, %s199
    %p206 = scmp.eq.s32.totalorder %s21, 1
    %p207 = por %p205, %p206
    %p208 = scmp.ne.s32.totalorder %s199, %s200
    %p209 = scmp.eq.s32.totalorder %s21, 0
    %p210 = por %p208, %p209
    %p211 = scmp.ne.s32.totalorder %s199, %s200
    %p212 = scmp.eq.s32.totalorder %s22, 1
    %p213 = por %p211, %p212
    %p215 = scmp.ne.s32.totalorder %s200, %s214
    %p216 = scmp.eq.s32.totalorder %s22, 0
    %p217 = por %p215, %p216
    %s219 = sadd.s32 %s218, 1
    %p222 = scmp.eq.s32.totalorder %s16, 1
    %p223 = scmp.ne.s32.totalorder %s218, %s220
    %p224 = scmp.eq.s32.totalorder %s16, 0
    %p225 = por %p223, %p224
    %p226 = scmp.ne.s32.totalorder %s218, %s220
    %p227 = scmp.eq.s32.totalorder %s21, 1
    %p228 = por %p226, %p227
    %p229 = scmp.ne.s32.totalorder %s220, %s221
    %p230 = scmp.eq.s32.totalorder %s21, 0
    %p231 = por %p229, %p230
    %p232 = scmp.ne.s32.totalorder %s220, %s221
    %p233 = scmp.eq.s32.totalorder %s22, 1
    %p234 = por %p232, %p233
    %p236 = scmp.ne.s32.totalorder %s221, %s235
    %p237 = scmp.eq.s32.totalorder %s22, 0
    %p238 = por %p236, %p237
    %s239 = ssub.s32 %s16, %s23
    %p240 = scmp.eq.s32.totalorder %s239, 0
    %s242 = sadd.s32 %s241, 1
    %s243 = scalar_select %p240, %s241, %s242
    %p246 = pneg %p240
    %p247 = scmp.eq.s32.totalorder %s16, 1
    %p248 = por %p246, %p247
    %p249 = scmp.ne.s32.totalorder %s241, %s244
    %p250 = scmp.eq.s32.totalorder %s16, 0
    %p251 = por %p249, %p250
    %p252 = scmp.ne.s32.totalorder %s241, %s244
    %p253 = scmp.eq.s32.totalorder %s21, 1
    %p254 = por %p252, %p253
    %p255 = scmp.ne.s32.totalorder %s244, %s245
    %p256 = scmp.eq.s32.totalorder %s21, 0
    %p257 = por %p255, %p256
    %p258 = scmp.ne.s32.totalorder %s244, %s245
    %p259 = scmp.eq.s32.totalorder %s22, 1
    %p260 = por %p258, %p259
    %p262 = scmp.ne.s32.totalorder %s245, %s261
    %p263 = scmp.eq.s32.totalorder %s22, 0
    %p264 = por %p262, %p263
    %p265 = scmp.le.s32.totalorder 1, %s16
    %p266 = scmp.lt.s32.totalorder %s16, 3
    %p267 = pnand %p265, %p266
    %p268 = pneg %p267
    // Predicated region
    $region9: #{skblock_forward.1} parent=5 // pred_check
      _
    $region10: #{skblock_forward.1} parent=5 // pred_check_branch
      %270 = sbr.rel (%p267) target = $region12
    $region11: #{skblock_forward.1} parent=5 // pred_region
      %s271 = ssub.s32 %s16, 1
      // Predicated region
      $region13: #{skblock_forward.1} parent=11 // pred_check
        %p272 = pneg %p63
      $region14: #{skblock_forward.1} parent=11 // pred_check_branch
        %274 = sbr.rel (%p272) target = $region16
      $region15: #{skblock_forward.1} parent=11 // pred_region
        _
      $region16: #{skblock_forward.1} parent=11 // pred_fallthru
        _
      // Predicated region
      $region17: #{skblock_forward.1} parent=11 // pred_check
        %p275 = pneg %p84
      $region18: #{skblock_forward.1} parent=11 // pred_check_branch
        %277 = sbr.rel (%p275) target = $region20
      $region19: #{skblock_forward.1} parent=11 // pred_region
        _
      $region20: #{skblock_forward.1} parent=11 // pred_fallthru
        _
      // Predicated region
      $region21: #{skblock_forward.1} parent=11 // pred_check
        %p278 = pneg %p105
      $region22: #{skblock_forward.1} parent=11 // pred_check_branch
        %280 = sbr.rel (%p278) target = $region24
      $region23: #{skblock_forward.1} parent=11 // pred_region
        _
      $region24: #{skblock_forward.1} parent=11 // pred_fallthru
        _
      // Predicated region
      $region25: #{skblock_forward.1} parent=11 // pred_check
        %p281 = pneg %p126
      $region26: #{skblock_forward.1} parent=11 // pred_check_branch
        %283 = sbr.rel (%p281) target = $region28
      $region27: #{skblock_forward.1} parent=11 // pred_region
        _
      $region28: #{skblock_forward.1} parent=11 // pred_fallthru
        _
      // Predicated region
      $region29: #{skblock_forward.1} parent=11 // pred_check
        %p284 = pneg %p147
      $region30: #{skblock_forward.1} parent=11 // pred_check_branch
        %286 = sbr.rel (%p284) target = $region32
      $region31: #{skblock_forward.1} parent=11 // pred_region
        _
      $region32: #{skblock_forward.1} parent=11 // pred_fallthru
        _
      // Predicated region
      $region33: #{skblock_forward.1} parent=11 // pred_check
        %p287 = pneg %p168
      $region34: #{skblock_forward.1} parent=11 // pred_check_branch
        %289 = sbr.rel (%p287) target = $region36
      $region35: #{skblock_forward.1} parent=11 // pred_region
        _
      $region36: #{skblock_forward.1} parent=11 // pred_fallthru
        _
      // Predicated region
      $region37: #{skblock_forward.1} parent=11 // pred_check
        %p290 = pneg %p189
      $region38: #{skblock_forward.1} parent=11 // pred_check_branch
        %292 = sbr.rel (%p290) target = $region40
      $region39: #{skblock_forward.1} parent=11 // pred_region
        _
      $region40: #{skblock_forward.1} parent=11 // pred_fallthru
        _
      // Predicated region
      $region41: #{skblock_forward.1} parent=11 // pred_check
        %p293 = pneg %p210
      $region42: #{skblock_forward.1} parent=11 // pred_check_branch
        %295 = sbr.rel (%p293) target = $region44
      $region43: #{skblock_forward.1} parent=11 // pred_region
        _
      $region44: #{skblock_forward.1} parent=11 // pred_fallthru
        _
      // Predicated region
      $region45: #{skblock_forward.1} parent=11 // pred_check
        %p296 = pneg %p231
      $region46: #{skblock_forward.1} parent=11 // pred_check_branch
        %298 = sbr.rel (%p296) target = $region48
      $region47: #{skblock_forward.1} parent=11 // pred_region
        _
      $region48: #{skblock_forward.1} parent=11 // pred_fallthru
        _
    $region12: #{skblock_forward.1} parent=5 // pred_fallthru
      _
    %p299 = scmp.lt.s32.totalorder %s16, 2
    // Predicated region
    $region49: #{skblock_forward.1} parent=5 // pred_check
      %p300 = pneg %p299
    $region50: #{skblock_forward.1} parent=5 // pred_check_branch
      %302 = sbr.rel (%p300) target = $region52
    $region51: #{skblock_forward.1} parent=5 // pred_region
      // Predicated region
      $region53: #{skblock_forward.1} parent=51 // pred_check
        %p303 = pneg %p36
      $region54: #{skblock_forward.1} parent=51 // pred_check_branch
        %305 = sbr.rel (%p303) target = $region56
      $region55: #{skblock_forward.1} parent=51 // pred_region
        %s306 = smul.u32 16, %s16
        %p307 = scmp.lt.s32.totalorder %s306, 31
        %s308 = scalar_select %p307, %s306, 31
        %s309 = smul.addr %s308, 8
        %s310 = scalar_lea.vmem %s0, %s309
        %s311 = smul.u32 16, %s16
      $region56: #{skblock_forward.1} parent=51 // pred_fallthru
        _
    $region52: #{skblock_forward.1} parent=5 // pred_fallthru
      _
    %p312 = scmp.le.s32.totalorder 1, %s16
    %p313 = scmp.lt.s32.totalorder %s16, 3
    %p314 = pnand %p312, %p313
    %p315 = pneg %p314
    // Predicated region
    $region57: #{skblock_forward.1} parent=5 // pred_check
      _
    $region58: #{skblock_forward.1} parent=5 // pred_check_branch
      %317 = sbr.rel (%p314) target = $region60
    $region59: #{skblock_forward.1} parent=5 // pred_region
      %s318 = ssub.s32 %s16, 1
      %s319 = smul.u32 16, %s21
      %p320 = scmp.lt.s32.totalorder %s319, 31
      %s321 = scalar_select %p320, %s319, 31
      %s322 = smul.addr %s321, 8
      %s323 = scalar_lea.vmem %s0, %s322
      %p324 = pneg %p42
      %p325 = pneg %p39
      %p326 = pneg %p63
      %p327 = pneg %p60
      %p328 = pneg %p84
      %p329 = pneg %p81
      %p330 = pneg %p105
      %p331 = pneg %p102
      %p332 = pneg %p126
      %p333 = pneg %p123
      %p334 = pneg %p147
      %p335 = pneg %p144
      %p336 = pneg %p168
      %p337 = pneg %p165
      %p338 = pneg %p189
      %p339 = pneg %p186
      %p340 = pneg %p210
      %p341 = pneg %p207
      %p342 = pneg %p231
      %p343 = pneg %p228
      %p344 = pneg %p257
      %p345 = pneg %p254
      %s346 = smul.u32 16, %s21
      %p347 = scmp.lt.s32.totalorder %s346, 31
      %s348 = scalar_select %p347, %s346, 31
      %s349 = smul.addr %s348, 8
      %s350 = scalar_lea.vmem %s10, %s349
      %s351 = smul.u32 16, %s21
      %p352 = scmp.lt.s32.totalorder %s351, 31
      %s353 = scalar_select %p352, %s351, 31
      %s354 = smul.addr %s353, 8
      %s355 = scalar_lea.vmem %s0, %s354
      %s356 = smul.u32 16, %s21
      %s357 = smul.u32 16, %s21
      %p358 = scmp.lt.s32.totalorder %s357, 31
      %s359 = scalar_select %p358, %s357, 31
      %s360 = smul.addr %s359, 8
      %s361 = scalar_lea.vmem %s10, %s360
      %s362 = smul.u32 16, %s21
      %v364 = vld [vmem:[%s355] sm:$0xff]
      %v365 = vld [vmem:[%s355 + $0x8] sm:$0xff]
      %v366 = vld [vmem:[%s355 + $0x10] sm:$0xff]
      %v367 = vld [vmem:[%s355 + $0x18] sm:$0xff]
      %v368 = vld [vmem:[%s355 + $0x20] sm:$0xff]
      %v369 = vld [vmem:[%s355 + $0x28] sm:$0xff]
      %v370 = vld [vmem:[%s355 + $0x30] sm:$0xff]
      %v371 = vld [vmem:[%s355 + $0x38] sm:$0xff]
      %v372 = vld [vmem:[%s355 + $0x40] sm:$0xff]
      %v373 = vld [vmem:[%s355 + $0x48] sm:$0xff]
      %v374 = vld [vmem:[%s355 + $0x50] sm:$0xff]
      %v375 = vld [vmem:[%s355 + $0x58] sm:$0xff]
      %v376 = vld [vmem:[%s355 + $0x60] sm:$0xff]
      %v377 = vld [vmem:[%s355 + $0x68] sm:$0xff]
      %v378 = vld [vmem:[%s355 + $0x70] sm:$0xff]
      %v379 = vld [vmem:[%s355 + $0x78] sm:$0xff]
      %v380 = vpack.c.bf16 %v365, %v364
      %v381 = vpack.c.bf16 %v367, %v366
      %v382 = vpack.c.bf16 %v369, %v368
      %v383 = vpack.c.bf16 %v371, %v370
      %v384 = vpack.c.bf16 %v373, %v372
      %v385 = vpack.c.bf16 %v375, %v374
      %v386 = vpack.c.bf16 %v377, %v376
      %v387 = vpack.c.bf16 %v379, %v378
      %v388 = vld [vmem:[%s1] sm:$0xf]
      %v389 = vld [vmem:[%s1 + $0x4] sm:$0xf]
      %v390 = vld [vmem:[%s1 + $0x8] sm:$0xf]
      %v391 = vld [vmem:[%s1 + $0xc] sm:$0xf]
      %v392 = vld [vmem:[%s1 + $0x10] sm:$0xf]
      %v393 = vld [vmem:[%s1 + $0x14] sm:$0xf]
      %v394 = vld [vmem:[%s1 + $0x18] sm:$0xf]
      %v395 = vld [vmem:[%s1 + $0x1c] sm:$0xf]
      %v396 = vld [vmem:[%s2] sm:$0x1]
      %v398 = vlaneseq
      %v399 = vshrl.u32 %v398, 7
      %v400 = vsub.s32 0, %v399
      %v401 = vrot.slane %v396, %v400
      %v411 = vunpack.c.l.b16 %v388
      %v412 = vunpack.c.l.b16 %v389
      %v413 = vunpack.c.l.b16 %v390
      %v414 = vunpack.c.l.b16 %v391
      %v415 = vunpack.c.l.b16 %v392
      %v416 = vunpack.c.l.b16 %v393
      %v417 = vunpack.c.l.b16 %v394
      %v418 = vunpack.c.l.b16 %v395
      %v419 = vpack.c.b16 %v412, %v411
      %v420 = vpack.c.b16 %v414, %v413
      %v421 = vpack.c.b16 %v416, %v415
      %v422 = vpack.c.b16 %v418, %v417
      %vm427 = vcmask 523264
      %v429 = vsel %vm427, %v380, 0
      %v432 = vsel %vm427, %v381, 0
      %v435 = vsel %vm427, %v382, 0
      %v438 = vsel %vm427, %v383, 0
      %v441 = vsel %vm427, %v384, 0
      %v444 = vsel %vm427, %v385, 0
      %v447 = vsel %vm427, %v386, 0
      %v450 = vsel %vm427, %v387, 0
      %452 = vmatprep.subr.bf16.mxu0 0
      %453 = vmatpush1.bf16.msra.mxu0 %v419
      %454 = vmatprep.subr.bf16.mxu0 0
      %455 = vmatpush1.bf16.msra.mxu0 %v420
      %456 = vmatprep.subr.bf16.mxu0 0
      %457 = vmatpush1.bf16.msra.mxu0 %v421
      %458 = vmatprep.subr.bf16.mxu0 0
      %459 = vmatpush1.bf16.msra.mxu0 %v422
      %460 = vmatprep.subr.bf16.mxu0 0
      %461 = vmatpush1.bf16.msra.mxu0 0
      %462 = vmatprep.subr.bf16.mxu0 0
      %463 = vmatpush1.bf16.msra.mxu0 0
      %464 = vmatprep.subr.bf16.mxu0 0
      %465 = vmatpush1.bf16.msra.mxu0 0
      %466 = vmatprep.subr.bf16.mxu0 0
      %467 = vmatpush1.bf16.msra.mxu0 0
      %468 = vmatprep.subr.bf16.mxu0 0
      %469 = vmatpush1.bf16.msra.mxu0 0
      %470 = vmatprep.subr.bf16.mxu0 0
      %471 = vmatpush1.bf16.msra.mxu0 0
      %472 = vmatprep.subr.bf16.mxu0 0
      %473 = vmatpush1.bf16.msra.mxu0 0
      %474 = vmatprep.subr.bf16.mxu0 0
      %475 = vmatpush1.bf16.msra.mxu0 0
      %476 = vmatprep.subr.bf16.mxu0 0
      %477 = vmatpush1.bf16.msra.mxu0 0
      %478 = vmatprep.subr.bf16.mxu0 0
      %479 = vmatpush1.bf16.msra.mxu0 0
      %480 = vmatprep.subr.bf16.mxu0 0
      %481 = vmatpush1.bf16.msra.mxu0 0
      %482 = vmatprep.subr.bf16.mxu0 0
      %483 = vmatpush1.bf16.msra.mxu0 0
      %484 = vmatprep.mubr.bf16.mxu0 0
      %485 = vmatmul.mubr.bf16.gmra.mrb[0].mxu0 %v429
      %v486 = vpop.f32.mrb[0].mxu0
      %v487 = vadd.f32 %v401, %v486
      %v488 = vpop.f32.mrb[0].mxu0
      %v489 = vpop.f32.mrb[0].mxu0
      %v490 = vadd.f32 %v401, %v489
      %v491 = vpop.f32.mrb[0].mxu0
      %492 = vmatprep.mubr.bf16.mxu0 0
      %493 = vmatmul.mubr.bf16.gmra.mrb[0].mxu0 %v432
      %v494 = vpop.f32.mrb[0].mxu0
      %v495 = vadd.f32 %v401, %v494
      %v496 = vpop.f32.mrb[0].mxu0
      %v497 = vpop.f32.mrb[0].mxu0
      %v498 = vadd.f32 %v401, %v497
      %v499 = vpop.f32.mrb[0].mxu0
      %500 = vmatprep.mubr.bf16.mxu0 0
      %501 = vmatmul.mubr.bf16.gmra.mrb[0].mxu0 %v435
      %v502 = vpop.f32.mrb[0].mxu0
      %v503 = vadd.f32 %v401, %v502
      %v504 = vpop.f32.mrb[0].mxu0
      %v505 = vpop.f32.mrb[0].mxu0
      %v506 = vadd.f32 %v401, %v505
      %v507 = vpop.f32.mrb[0].mxu0
      %508 = vmatprep.mubr.bf16.mxu0 0
      %509 = vmatmul.mubr.bf16.gmra.mrb[0].mxu0 %v438
      %v510 = vpop.f32.mrb[0].mxu0
      %v511 = vadd.f32 %v401, %v510
      %v512 = vpop.f32.mrb[0].mxu0
      %v513 = vpop.f32.mrb[0].mxu0
      %v514 = vadd.f32 %v401, %v513
      %v515 = vpop.f32.mrb[0].mxu0
      %516 = vmatprep.mubr.bf16.mxu0 0
      %517 = vmatmul.mubr.bf16.gmra.mrb[0].mxu0 %v441
      %v518 = vpop.f32.mrb[0].mxu0
      %v519 = vadd.f32 %v401, %v518
      %v520 = vpop.f32.mrb[0].mxu0
      %v521 = vpop.f32.mrb[0].mxu0
      %v522 = vadd.f32 %v401, %v521
      %v523 = vpop.f32.mrb[0].mxu0
      %524 = vmatprep.mubr.bf16.mxu0 0
      %525 = vmatmul.mubr.bf16.gmra.mrb[0].mxu0 %v444
      %v526 = vpop.f32.mrb[0].mxu0
      %v527 = vadd.f32 %v401, %v526
      %v528 = vpop.f32.mrb[0].mxu0
      %v529 = vpop.f32.mrb[0].mxu0
      %v530 = vadd.f32 %v401, %v529
      %v531 = vpop.f32.mrb[0].mxu0
      %532 = vmatprep.mubr.bf16.mxu0 0
      %533 = vmatmul.mubr.bf16.gmra.mrb[0].mxu0 %v447
      %v534 = vpop.f32.mrb[0].mxu0
      %v535 = vadd.f32 %v401, %v534
      %v536 = vpop.f32.mrb[0].mxu0
      %v537 = vpop.f32.mrb[0].mxu0
      %v538 = vadd.f32 %v401, %v537
      %v539 = vpop.f32.mrb[0].mxu0
      %540 = vmatprep.mubr.bf16.mxu0 0
      %541 = vmatmul.mubr.bf16.gmra.mrb[0].mxu0 %v450
      %v542 = vpop.f32.mrb[0].mxu0
      %v543 = vadd.f32 %v401, %v542
      %v544 = vpop.f32.mrb[0].mxu0
      %v545 = vpop.f32.mrb[0].mxu0
      %v546 = vadd.f32 %v401, %v545
      %v547 = vpop.f32.mrb[0].mxu0
      %548 = vdwg.mxu0
      %v549 = vmax.f32 %v487, 0.0
      %v550 = vmax.f32 %v490, 0.0
      %v551 = vmax.f32 %v495, 0.0
      %v552 = vmax.f32 %v498, 0.0
      %v553 = vmax.f32 %v503, 0.0
      %v554 = vmax.f32 %v506, 0.0
      %v555 = vmax.f32 %v511, 0.0
      %v556 = vmax.f32 %v514, 0.0
      %v557 = vmax.f32 %v519, 0.0
      %v558 = vmax.f32 %v522, 0.0
      %v559 = vmax.f32 %v527, 0.0
      %v560 = vmax.f32 %v530, 0.0
      %v561 = vmax.f32 %v535, 0.0
      %v562 = vmax.f32 %v538, 0.0
      %v563 = vmax.f32 %v543, 0.0
      %v564 = vmax.f32 %v546, 0.0
      %v565 = vlaneseq
      %v566 = vshrl.u32 %v565, 7
      %v567 = vadd.s32 %v566, 8
      %v568 = vadd.s32 %v566, 16
      %v569 = vadd.s32 %v566, 24
      %v570 = vadd.s32 %v566, 32
      %v571 = vadd.s32 %v566, 40
      %v572 = vadd.s32 %v566, 48
      %v573 = vadd.s32 %v566, 56
      %v574 = vld [vmem:[%s3] sm:$0xff]
      %v575 = vld [vmem:[%s3 + $0x8] sm:$0x1]
      %v576 = vld [vmem:[%s3 + $0x10] sm:$0xff]
      %v577 = vld [vmem:[%s3 + $0x18] sm:$0x1]
      %v578 = vld [vmem:[%s4] sm:$0x1]
      %v579 = vld [vmem:[%s4 + $0x1] sm:$0x1]
      %v580 = vadd.s32 %v566, 4294967288
      %v581 = vadd.s32 %v567, 4294967288
      %v582 = vadd.s32 %v568, 4294967288
      %v583 = vadd.s32 %v569, 4294967288
      %v584 = vadd.s32 %v570, 4294967288
      %v585 = vadd.s32 %v571, 4294967288
      %v586 = vadd.s32 %v572, 4294967288
      %v587 = vadd.s32 %v573, 4294967288
      %vm588 = vcmp.ge.s32.totalorder %v580, 0
      %vm589 = vcmp.ge.s32.totalorder %v581, 0
      %vm590 = vcmp.ge.s32.totalorder %v582, 0
      %vm591 = vcmp.ge.s32.totalorder %v583, 0
      %vm592 = vcmp.ge.s32.totalorder %v584, 0
      %vm593 = vcmp.ge.s32.totalorder %v585, 0
      %vm594 = vcmp.ge.s32.totalorder %v586, 0
      %vm595 = vcmp.ge.s32.totalorder %v587, 0
      %vm596 = vcmp.lt.s32.totalorder %v580, 64
      %vm597 = vcmp.lt.s32.totalorder %v581, 64
      %vm598 = vcmp.lt.s32.totalorder %v582, 64
      %vm599 = vcmp.lt.s32.totalorder %v583, 64
      %vm600 = vcmp.lt.s32.totalorder %v584, 64
      %vm601 = vcmp.lt.s32.totalorder %v585, 64
      %vm602 = vcmp.lt.s32.totalorder %v586, 64
      %vm603 = vcmp.lt.s32.totalorder %v587, 64
      %vm604 = vmand %vm588, %vm596
      %vm605 = vmand %vm589, %vm597
      %vm606 = vmand %vm590, %vm598
      %vm607 = vmand %vm591, %vm599
      %vm608 = vmand %vm592, %vm600
      %vm609 = vmand %vm593, %vm601
      %vm610 = vmand %vm594, %vm602
      %vm611 = vmand %vm595, %vm603
      %v612 = vadd.s32 %v567, 8
      %v613 = vadd.s32 %v568, 8
      %v614 = vadd.s32 %v569, 8
      %v615 = vadd.s32 %v570, 8
      %v616 = vadd.s32 %v571, 8
      %v617 = vadd.s32 %v572, 8
      %v618 = vadd.s32 %v573, 8
      %vm619 = vcmp.ge.s32.totalorder %v567, 0
      %vm620 = vcmp.ge.s32.totalorder %v612, 0
      %vm621 = vcmp.ge.s32.totalorder %v613, 0
      %vm622 = vcmp.ge.s32.totalorder %v614, 0
      %vm623 = vcmp.ge.s32.totalorder %v615, 0
      %vm624 = vcmp.ge.s32.totalorder %v616, 0
      %vm625 = vcmp.ge.s32.totalorder %v617, 0
      %vm626 = vcmp.ge.s32.totalorder %v618, 0
      %vm627 = vcmp.lt.s32.totalorder %v567, 64
      %vm628 = vcmp.lt.s32.totalorder %v612, 64
      %vm629 = vcmp.lt.s32.totalorder %v613, 64
      %vm630 = vcmp.lt.s32.totalorder %v614, 64
      %vm631 = vcmp.lt.s32.totalorder %v615, 64
      %vm632 = vcmp.lt.s32.totalorder %v616, 64
      %vm633 = vcmp.lt.s32.totalorder %v617, 64
      %vm634 = vcmp.lt.s32.totalorder %v618, 64
      %vm635 = vmand %vm619, %vm627
      %vm636 = vmand %vm620, %vm628
      %vm637 = vmand %vm621, %vm629
      %vm638 = vmand %vm622, %vm630
      %vm639 = vmand %vm623, %vm631
      %vm640 = vmand %vm624, %vm632
      %vm641 = vmand %vm625, %vm633
      %vm642 = vmand %vm626, %vm634
      %v643 = vadd.s32 %v566, 4294967295
      %vm644 = vcmp.ge.s32.totalorder %v643, 0
      %vm645 = vcmp.lt.s32.totalorder %v643, 8
      %vm646 = vmand %vm644, %vm645
      %v647 = vadd.s32 %v566, 1
      %vm648 = vcmp.ge.s32.totalorder %v647, 0
      %vm649 = vcmp.lt.s32.totalorder %v647, 8
      %vm650 = vmand %vm648, %vm649
      %v651 = vsel %vm604, %v564, 0.0
      %v652 = vsel %vm605, %v549, 0.0
      %v653 = vsel %vm606, %v550, 0.0
      %v654 = vsel %vm607, %v551, 0.0
      %v655 = vsel %vm608, %v552, 0.0
      %v656 = vsel %vm609, %v553, 0.0
      %v657 = vsel %vm610, %v554, 0.0
      %v658 = vsel %vm611, %v555, 0.0
      %v659 = vsel %vm604, %v556, 0.0
      %v660 = vsel %vm605, %v557, 0.0
      %v661 = vsel %vm606, %v558, 0.0
      %v662 = vsel %vm607, %v559, 0.0
      %v663 = vsel %vm608, %v560, 0.0
      %v664 = vsel %vm609, %v561, 0.0
      %v665 = vsel %vm610, %v562, 0.0
      %v666 = vsel %vm611, %v563, 0.0
      %v667 = vrot.slane %v651, 7
      %v668 = vrot.slane %v652, 7
      %v669 = vrot.slane %v653, 7
      %v670 = vrot.slane %v654, 7
      %v671 = vrot.slane %v655, 7
      %v672 = vrot.slane %v656, 7
      %v673 = vrot.slane %v657, 7
      %v674 = vrot.slane %v658, 7
      %v675 = vrot.slane %v659, 7
      %v676 = vrot.slane %v660, 7
      %v677 = vrot.slane %v661, 7
      %v678 = vrot.slane %v662, 7
      %v679 = vrot.slane %v663, 7
      %v680 = vrot.slane %v664, 7
      %v681 = vrot.slane %v665, 7
      %v682 = vrot.slane %v666, 7
      %vm683 = vcmp.lt.s32.totalorder %v566, 1
      %v684 = vsel %vm683, %v681, %v682
      %v685 = vsel %vm683, %v680, %v681
      %v686 = vsel %vm683, %v679, %v680
      %v687 = vsel %vm683, %v678, %v679
      %v688 = vsel %vm683, %v677, %v678
      %v689 = vsel %vm683, %v676, %v677
      %v690 = vsel %vm683, %v675, %v676
      %v691 = vsel %vm683, %v674, %v675
      %v692 = vsel %vm683, %v673, %v674
      %v693 = vsel %vm683, %v672, %v673
      %v694 = vsel %vm683, %v671, %v672
      %v695 = vsel %vm683, %v670, %v671
      %v696 = vsel %vm683, %v669, %v670
      %v697 = vsel %vm683, %v668, %v669
      %v698 = vsel %vm683, %v667, %v668
      %v699 = vsel %vm683, %v682, %v667
      %v700 = vsel %vm646, %v699, 0.0
      %v701 = vsel %vm646, %v698, 0.0
      %v702 = vsel %vm646, %v697, 0.0
      %v703 = vsel %vm646, %v696, 0.0
      %v704 = vsel %vm646, %v695, 0.0
      %v705 = vsel %vm646, %v694, 0.0
      %v706 = vsel %vm646, %v693, 0.0
      %v707 = vsel %vm646, %v692, 0.0
      %v708 = vsel %vm646, %v691, 0.0
      %v709 = vsel %vm646, %v690, 0.0
      %v710 = vsel %vm646, %v689, 0.0
      %v711 = vsel %vm646, %v688, 0.0
      %v712 = vsel %vm646, %v687, 0.0
      %v713 = vsel %vm646, %v686, 0.0
      %v714 = vsel %vm646, %v685, 0.0
      %v715 = vsel %vm646, %v684, 0.0
      %v716 = vlaneseq
      %v717 = vshrl.u32 %v716, 7
      %v718 = vsub.s32 0, %v717
      %v719 = vrot.slane %v574, %v718
      %v720 = vmul.f32 %v700, %v719
      %v721 = vmul.f32 %v701, %v719
      %v722 = vmul.f32 %v702, %v719
      %v723 = vmul.f32 %v703, %v719
      %v724 = vmul.f32 %v704, %v719
      %v725 = vmul.f32 %v705, %v719
      %v726 = vmul.f32 %v706, %v719
      %v727 = vmul.f32 %v707, %v719
      %v728 = vmul.f32 %v708, %v719
      %v729 = vmul.f32 %v709, %v719
      %v730 = vmul.f32 %v710, %v719
      %v731 = vmul.f32 %v711, %v719
      %v732 = vmul.f32 %v712, %v719
      %v733 = vmul.f32 %v713, %v719
      %v734 = vmul.f32 %v714, %v719
      %v735 = vmul.f32 %v715, %v719
      %v736 = vadd.f32 %v720, 0.0
      %v737 = vadd.f32 %v721, 0.0
      %v738 = vadd.f32 %v722, 0.0
      %v739 = vadd.f32 %v723, 0.0
      %v740 = vadd.f32 %v724, 0.0
      %v741 = vadd.f32 %v725, 0.0
      %v742 = vadd.f32 %v726, 0.0
      %v743 = vadd.f32 %v727, 0.0
      %v744 = vadd.f32 %v728, 0.0
      %v745 = vadd.f32 %v729, 0.0
      %v746 = vadd.f32 %v730, 0.0
      %v747 = vadd.f32 %v731, 0.0
      %v748 = vadd.f32 %v732, 0.0
      %v749 = vadd.f32 %v733, 0.0
      %v750 = vadd.f32 %v734, 0.0
      %v751 = vadd.f32 %v735, 0.0
      %v752 = vlaneseq
      %v753 = vshrl.u32 %v752, 7
      %v754 = vsub.s32 1, %v753
      %v755 = vrot.slane %v574, %v754
      %v756 = vmul.f32 %v651, %v755
      %v757 = vmul.f32 %v652, %v755
      %v758 = vmul.f32 %v653, %v755
      %v759 = vmul.f32 %v654, %v755
      %v760 = vmul.f32 %v655, %v755
      %v761 = vmul.f32 %v656, %v755
      %v762 = vmul.f32 %v657, %v755
      %v763 = vmul.f32 %v658, %v755
      %v764 = vmul.f32 %v659, %v755
      %v765 = vmul.f32 %v660, %v755
      %v766 = vmul.f32 %v661, %v755
      %v767 = vmul.f32 %v662, %v755
      %v768 = vmul.f32 %v663, %v755
      %v769 = vmul.f32 %v664, %v755
      %v770 = vmul.f32 %v665, %v755
      %v771 = vmul.f32 %v666, %v755
      %v772 = vadd.f32 %v736, %v756
      %v773 = vadd.f32 %v737, %v757
      %v774 = vadd.f32 %v738, %v758
      %v775 = vadd.f32 %v739, %v759
      %v776 = vadd.f32 %v740, %v760
      %v777 = vadd.f32 %v741, %v761
      %v778 = vadd.f32 %v742, %v762
      %v779 = vadd.f32 %v743, %v763
      %v780 = vadd.f32 %v744, %v764
      %v781 = vadd.f32 %v745, %v765
      %v782 = vadd.f32 %v746, %v766
      %v783 = vadd.f32 %v747, %v767
      %v784 = vadd.f32 %v748, %v768
      %v785 = vadd.f32 %v749, %v769
      %v786 = vadd.f32 %v750, %v770
      %v787 = vadd.f32 %v751, %v771
      %v788 = vrot.slane %v651, 1
      %v789 = vrot.slane %v652, 1
      %v790 = vrot.slane %v653, 1
      %v791 = vrot.slane %v654, 1
      %v792 = vrot.slane %v655, 1
      %v793 = vrot.slane %v656, 1
      %v794 = vrot.slane %v657, 1
      %v795 = vrot.slane %v658, 1
      %v796 = vrot.slane %v659, 1
      %v797 = vrot.slane %v660, 1
      %v798 = vrot.slane %v661, 1
      %v799 = vrot.slane %v662, 1
      %v800 = vrot.slane %v663, 1
      %v801 = vrot.slane %v664, 1
      %v802 = vrot.slane %v665, 1
      %v803 = vrot.slane %v666, 1
      %vm804 = vcmp.lt.s32.totalorder %v566, 7
      %v805 = vsel %vm804, %v802, %v803
      %v806 = vsel %vm804, %v801, %v802
      %v807 = vsel %vm804, %v800, %v801
      %v808 = vsel %vm804, %v799, %v800
      %v809 = vsel %vm804, %v798, %v799
      %v810 = vsel %vm804, %v797, %v798
      %v811 = vsel %vm804, %v796, %v797
      %v812 = vsel %vm804, %v795, %v796
      %v813 = vsel %vm804, %v794, %v795
      %v814 = vsel %vm804, %v793, %v794
      %v815 = vsel %vm804, %v792, %v793
      %v816 = vsel %vm804, %v791, %v792
      %v817 = vsel %vm804, %v790, %v791
      %v818 = vsel %vm804, %v789, %v790
      %v819 = vsel %vm804, %v788, %v789
      %v820 = vsel %vm804, %v803, %v788
      %v821 = vsel %vm650, %v819, 0.0
      %v822 = vsel %vm650, %v818, 0.0
      %v823 = vsel %vm650, %v817, 0.0
      %v824 = vsel %vm650, %v816, 0.0
      %v825 = vsel %vm650, %v815, 0.0
      %v826 = vsel %vm650, %v814, 0.0
      %v827 = vsel %vm650, %v813, 0.0
      %v828 = vsel %vm650, %v812, 0.0
      %v829 = vsel %vm650, %v811, 0.0
      %v830 = vsel %vm650, %v810, 0.0
      %v831 = vsel %vm650, %v809, 0.0
      %v832 = vsel %vm650, %v808, 0.0
      %v833 = vsel %vm650, %v807, 0.0
      %v834 = vsel %vm650, %v806, 0.0
      %v835 = vsel %vm650, %v805, 0.0
      %v836 = vsel %vm650, %v820, 0.0
      %v837 = vlaneseq
      %v838 = vshrl.u32 %v837, 7
      %v839 = vsub.s32 2, %v838
      %v840 = vrot.slane %v574, %v839
      %v841 = vmul.f32 %v821, %v840
      %v842 = vmul.f32 %v822, %v840
      %v843 = vmul.f32 %v823, %v840
      %v844 = vmul.f32 %v824, %v840
      %v845 = vmul.f32 %v825, %v840
      %v846 = vmul.f32 %v826, %v840
      %v847 = vmul.f32 %v827, %v840
      %v848 = vmul.f32 %v828, %v840
      %v849 = vmul.f32 %v829, %v840
      %v850 = vmul.f32 %v830, %v840
      %v851 = vmul.f32 %v831, %v840
      %v852 = vmul.f32 %v832, %v840
      %v853 = vmul.f32 %v833, %v840
      %v854 = vmul.f32 %v834, %v840
      %v855 = vmul.f32 %v835, %v840
      %v856 = vmul.f32 %v836, %v840
      %v857 = vadd.f32 %v772, %v841
      %v858 = vadd.f32 %v773, %v842
      %v859 = vadd.f32 %v774, %v843
      %v860 = vadd.f32 %v775, %v844
      %v861 = vadd.f32 %v776, %v845
      %v862 = vadd.f32 %v777, %v846
      %v863 = vadd.f32 %v778, %v847
      %v864 = vadd.f32 %v779, %v848
      %v865 = vadd.f32 %v780, %v849
      %v866 = vadd.f32 %v781, %v850
      %v867 = vadd.f32 %v782, %v851
      %v868 = vadd.f32 %v783, %v852
      %v869 = vadd.f32 %v784, %v853
      %v870 = vadd.f32 %v785, %v854
      %v871 = vadd.f32 %v786, %v855
      %v872 = vadd.f32 %v787, %v856
      %v873 = vrot.slane %v549, 7
      %v874 = vrot.slane %v550, 7
      %v875 = vrot.slane %v551, 7
      %v876 = vrot.slane %v552, 7
      %v877 = vrot.slane %v553, 7
      %v878 = vrot.slane %v554, 7
      %v879 = vrot.slane %v555, 7
      %v880 = vrot.slane %v556, 7
      %v881 = vrot.slane %v557, 7
      %v882 = vrot.slane %v558, 7
      %v883 = vrot.slane %v559, 7
      %v884 = vrot.slane %v560, 7
      %v885 = vrot.slane %v561, 7
      %v886 = vrot.slane %v562, 7
      %v887 = vrot.slane %v563, 7
      %v888 = vrot.slane %v564, 7
      %v889 = vsel %vm683, %v887, %v888
      %v890 = vsel %vm683, %v886, %v887
      %v891 = vsel %vm683, %v885, %v886
      %v892 = vsel %vm683, %v884, %v885
      %v893 = vsel %vm683, %v883, %v884
      %v894 = vsel %vm683, %v882, %v883
      %v895 = vsel %vm683, %v881, %v882
      %v896 = vsel %vm683, %v880, %v881
      %v897 = vsel %vm683, %v879, %v880
      %v898 = vsel %vm683, %v878, %v879
      %v899 = vsel %vm683, %v877, %v878
      %v900 = vsel %vm683, %v876, %v877
      %v901 = vsel %vm683, %v875, %v876
      %v902 = vsel %vm683, %v874, %v875
      %v903 = vsel %vm683, %v873, %v874
      %v904 = vsel %vm683, %v888, %v873
      %v905 = vsel %vm646, %v904, 0.0
      %v906 = vsel %vm646, %v903, 0.0
      %v907 = vsel %vm646, %v902, 0.0
      %v908 = vsel %vm646, %v901, 0.0
      %v909 = vsel %vm646, %v900, 0.0
      %v910 = vsel %vm646, %v899, 0.0
      %v911 = vsel %vm646, %v898, 0.0
      %v912 = vsel %vm646, %v897, 0.0
      %v913 = vsel %vm646, %v896, 0.0
      %v914 = vsel %vm646, %v895, 0.0
      %v915 = vsel %vm646, %v894, 0.0
      %v916 = vsel %vm646, %v893, 0.0
      %v917 = vsel %vm646, %v892, 0.0
      %v918 = vsel %vm646, %v891, 0.0
      %v919 = vsel %vm646, %v890, 0.0
      %v920 = vsel %vm646, %v889, 0.0
      %v921 = vlaneseq
      %v922 = vshrl.u32 %v921, 7
      %v923 = vsub.s32 3, %v922
      %v924 = vrot.slane %v574, %v923
      %v925 = vmul.f32 %v905, %v924
      %v926 = vmul.f32 %v906, %v924
      %v927 = vmul.f32 %v907, %v924
      %v928 = vmul.f32 %v908, %v924
      %v929 = vmul.f32 %v909, %v924
      %v930 = vmul.f32 %v910, %v924
      %v931 = vmul.f32 %v911, %v924
      %v932 = vmul.f32 %v912, %v924
      %v933 = vmul.f32 %v913, %v924
      %v934 = vmul.f32 %v914, %v924
      %v935 = vmul.f32 %v915, %v924
      %v936 = vmul.f32 %v916, %v924
      %v937 = vmul.f32 %v917, %v924
      %v938 = vmul.f32 %v918, %v924
      %v939 = vmul.f32 %v919, %v924
      %v940 = vmul.f32 %v920, %v924
      %v941 = vadd.f32 %v857, %v925
      %v942 = vadd.f32 %v858, %v926
      %v943 = vadd.f32 %v859, %v927
      %v944 = vadd.f32 %v860, %v928
      %v945 = vadd.f32 %v861, %v929
      %v946 = vadd.f32 %v862, %v930
      %v947 = vadd.f32 %v863, %v931
      %v948 = vadd.f32 %v864, %v932
      %v949 = vadd.f32 %v865, %v933
      %v950 = vadd.f32 %v866, %v934
      %v951 = vadd.f32 %v867, %v935
      %v952 = vadd.f32 %v868, %v936
      %v953 = vadd.f32 %v869, %v937
      %v954 = vadd.f32 %v870, %v938
      %v955 = vadd.f32 %v871, %v939
      %v956 = vadd.f32 %v872, %v940
      %v957 = vlaneseq
      %v958 = vshrl.u32 %v957, 7
      %v959 = vsub.s32 4, %v958
      %v960 = vrot.slane %v574, %v959
      %v961 = vmul.f32 %v549, %v960
      %v962 = vmul.f32 %v550, %v960
      %v963 = vmul.f32 %v551, %v960
      %v964 = vmul.f32 %v552, %v960
      %v965 = vmul.f32 %v553, %v960
      %v966 = vmul.f32 %v554, %v960
      %v967 = vmul.f32 %v555, %v960
      %v968 = vmul.f32 %v556, %v960
      %v969 = vmul.f32 %v557, %v960
      %v970 = vmul.f32 %v558, %v960
      %v971 = vmul.f32 %v559, %v960
      %v972 = vmul.f32 %v560, %v960
      %v973 = vmul.f32 %v561, %v960
      %v974 = vmul.f32 %v562, %v960
      %v975 = vmul.f32 %v563, %v960
      %v976 = vmul.f32 %v564, %v960
      %v977 = vadd.f32 %v941, %v961
      %v978 = vadd.f32 %v942, %v962
      %v979 = vadd.f32 %v943, %v963
      %v980 = vadd.f32 %v944, %v964
      %v981 = vadd.f32 %v945, %v965
      %v982 = vadd.f32 %v946, %v966
      %v983 = vadd.f32 %v947, %v967
      %v984 = vadd.f32 %v948, %v968
      %v985 = vadd.f32 %v949, %v969
      %v986 = vadd.f32 %v950, %v970
      %v987 = vadd.f32 %v951, %v971
      %v988 = vadd.f32 %v952, %v972
      %v989 = vadd.f32 %v953, %v973
      %v990 = vadd.f32 %v954, %v974
      %v991 = vadd.f32 %v955, %v975
      %v992 = vadd.f32 %v956, %v976
      %v993 = vrot.slane %v549, 1
      %v994 = vrot.slane %v550, 1
      %v995 = vrot.slane %v551, 1
      %v996 = vrot.slane %v552, 1
      %v997 = vrot.slane %v553, 1
      %v998 = vrot.slane %v554, 1
      %v999 = vrot.slane %v555, 1
      %v1000 = vrot.slane %v556, 1
      %v1001 = vrot.slane %v557, 1
      %v1002 = vrot.slane %v558, 1
      %v1003 = vrot.slane %v559, 1
      %v1004 = vrot.slane %v560, 1
      %v1005 = vrot.slane %v561, 1
      %v1006 = vrot.slane %v562, 1
      %v1007 = vrot.slane %v563, 1
      %v1008 = vrot.slane %v564, 1
      %v1009 = vsel %vm804, %v1007, %v1008
      %v1010 = vsel %vm804, %v1006, %v1007
      %v1011 = vsel %vm804, %v1005, %v1006
      %v1012 = vsel %vm804, %v1004, %v1005
      %v1013 = vsel %vm804, %v1003, %v1004
      %v1014 = vsel %vm804, %v1002, %v1003
      %v1015 = vsel %vm804, %v1001, %v1002
      %v1016 = vsel %vm804, %v1000, %v1001
      %v1017 = vsel %vm804, %v999, %v1000
      %v1018 = vsel %vm804, %v998, %v999
      %v1019 = vsel %vm804, %v997, %v998
      %v1020 = vsel %vm804, %v996, %v997
      %v1021 = vsel %vm804, %v995, %v996
      %v1022 = vsel %vm804, %v994, %v995
      %v1023 = vsel %vm804, %v993, %v994
      %v1024 = vsel %vm804, %v1008, %v993
      %v1025 = vsel %vm650, %v1023, 0.0
      %v1026 = vsel %vm650, %v1022, 0.0
      %v1027 = vsel %vm650, %v1021, 0.0
      %v1028 = vsel %vm650, %v1020, 0.0
      %v1029 = vsel %vm650, %v1019, 0.0
      %v1030 = vsel %vm650, %v1018, 0.0
      %v1031 = vsel %vm650, %v1017, 0.0
      %v1032 = vsel %vm650, %v1016, 0.0
      %v1033 = vsel %vm650, %v1015, 0.0
      %v1034 = vsel %vm650, %v1014, 0.0
      %v1035 = vsel %vm650, %v1013, 0.0
      %v1036 = vsel %vm650, %v1012, 0.0
      %v1037 = vsel %vm650, %v1011, 0.0
      %v1038 = vsel %vm650, %v1010, 0.0
      %v1039 = vsel %vm650, %v1009, 0.0
      %v1040 = vsel %vm650, %v1024, 0.0
      %v1041 = vlaneseq
      %v1042 = vshrl.u32 %v1041, 7
      %v1043 = vsub.s32 5, %v1042
      %v1044 = vrot.slane %v574, %v1043
      %v1045 = vmul.f32 %v1025, %v1044
      %v1046 = vmul.f32 %v1026, %v1044
      %v1047 = vmul.f32 %v1027, %v1044
      %v1048 = vmul.f32 %v1028, %v1044
      %v1049 = vmul.f32 %v1029, %v1044
      %v1050 = vmul.f32 %v1030, %v1044
      %v1051 = vmul.f32 %v1031, %v1044
      %v1052 = vmul.f32 %v1032, %v1044
      %v1053 = vmul.f32 %v1033, %v1044
      %v1054 = vmul.f32 %v1034, %v1044
      %v1055 = vmul.f32 %v1035, %v1044
      %v1056 = vmul.f32 %v1036, %v1044
      %v1057 = vmul.f32 %v1037, %v1044
      %v1058 = vmul.f32 %v1038, %v1044
      %v1059 = vmul.f32 %v1039, %v1044
      %v1060 = vmul.f32 %v1040, %v1044
      %v1061 = vadd.f32 %v977, %v1045
      %v1062 = vadd.f32 %v978, %v1046
      %v1063 = vadd.f32 %v979, %v1047
      %v1064 = vadd.f32 %v980, %v1048
      %v1065 = vadd.f32 %v981, %v1049
      %v1066 = vadd.f32 %v982, %v1050
      %v1067 = vadd.f32 %v983, %v1051
      %v1068 = vadd.f32 %v984, %v1052
      %v1069 = vadd.f32 %v985, %v1053
      %v1070 = vadd.f32 %v986, %v1054
      %v1071 = vadd.f32 %v987, %v1055
      %v1072 = vadd.f32 %v988, %v1056
      %v1073 = vadd.f32 %v989, %v1057
      %v1074 = vadd.f32 %v990, %v1058
      %v1075 = vadd.f32 %v991, %v1059
      %v1076 = vadd.f32 %v992, %v1060
      %v1077 = vsel %vm635, %v550, 0.0
      %v1078 = vsel %vm636, %v551, 0.0
      %v1079 = vsel %vm637, %v552, 0.0
      %v1080 = vsel %vm638, %v553, 0.0
      %v1081 = vsel %vm639, %v554, 0.0
      %v1082 = vsel %vm640, %v555, 0.0
      %v1083 = vsel %vm641, %v556, 0.0
      %v1084 = vsel %vm642, %v557, 0.0
      %v1085 = vsel %vm635, %v558, 0.0
      %v1086 = vsel %vm636, %v559, 0.0
      %v1087 = vsel %vm637, %v560, 0.0
      %v1088 = vsel %vm638, %v561, 0.0
      %v1089 = vsel %vm639, %v562, 0.0
      %v1090 = vsel %vm640, %v563, 0.0
      %v1091 = vsel %vm641, %v564, 0.0
      %v1092 = vsel %vm642, %v549, 0.0
      %v1093 = vrot.slane %v1077, 7
      %v1094 = vrot.slane %v1078, 7
      %v1095 = vrot.slane %v1079, 7
      %v1096 = vrot.slane %v1080, 7
      %v1097 = vrot.slane %v1081, 7
      %v1098 = vrot.slane %v1082, 7
      %v1099 = vrot.slane %v1083, 7
      %v1100 = vrot.slane %v1084, 7
      %v1101 = vrot.slane %v1085, 7
      %v1102 = vrot.slane %v1086, 7
      %v1103 = vrot.slane %v1087, 7
      %v1104 = vrot.slane %v1088, 7
      %v1105 = vrot.slane %v1089, 7
      %v1106 = vrot.slane %v1090, 7
      %v1107 = vrot.slane %v1091, 7
      %v1108 = vrot.slane %v1092, 7
      %v1109 = vsel %vm683, %v1107, %v1108
      %v1110 = vsel %vm683, %v1106, %v1107
      %v1111 = vsel %vm683, %v1105, %v1106
      %v1112 = vsel %vm683, %v1104, %v1105
      %v1113 = vsel %vm683, %v1103, %v1104
      %v1114 = vsel %vm683, %v1102, %v1103
      %v1115 = vsel %vm683, %v1101, %v1102
      %v1116 = vsel %vm683, %v1100, %v1101
      %v1117 = vsel %vm683, %v1099, %v1100
      %v1118 = vsel %vm683, %v1098, %v1099
      %v1119 = vsel %vm683, %v1097, %v1098
      %v1120 = vsel %vm683, %v1096, %v1097
      %v1121 = vsel %vm683, %v1095, %v1096
      %v1122 = vsel %vm683, %v1094, %v1095
      %v1123 = vsel %vm683, %v1093, %v1094
      %v1124 = vsel %vm683, %v1108, %v1093
      %v1125 = vsel %vm646, %v1124, 0.0
      %v1126 = vsel %vm646, %v1123, 0.0
      %v1127 = vsel %vm646, %v1122, 0.0
      %v1128 = vsel %vm646, %v1121, 0.0
      %v1129 = vsel %vm646, %v1120, 0.0
      %v1130 = vsel %vm646, %v1119, 0.0
      %v1131 = vsel %vm646, %v1118, 0.0
      %v1132 = vsel %vm646, %v1117, 0.0
      %v1133 = vsel %vm646, %v1116, 0.0
      %v1134 = vsel %vm646, %v1115, 0.0
      %v1135 = vsel %vm646, %v1114, 0.0
      %v1136 = vsel %vm646, %v1113, 0.0
      %v1137 = vsel %vm646, %v1112, 0.0
      %v1138 = vsel %vm646, %v1111, 0.0
      %v1139 = vsel %vm646, %v1110, 0.0
      %v1140 = vsel %vm646, %v1109, 0.0
      %v1141 = vlaneseq
      %v1142 = vshrl.u32 %v1141, 7
      %v1143 = vsub.s32 6, %v1142
      %v1144 = vrot.slane %v574, %v1143
      %v1145 = vmul.f32 %v1125, %v1144
      %v1146 = vmul.f32 %v1126, %v1144
      %v1147 = vmul.f32 %v1127, %v1144
      %v1148 = vmul.f32 %v1128, %v1144
      %v1149 = vmul.f32 %v1129, %v1144
      %v1150 = vmul.f32 %v1130, %v1144
      %v1151 = vmul.f32 %v1131, %v1144
      %v1152 = vmul.f32 %v1132, %v1144
      %v1153 = vmul.f32 %v1133, %v1144
      %v1154 = vmul.f32 %v1134, %v1144
      %v1155 = vmul.f32 %v1135, %v1144
      %v1156 = vmul.f32 %v1136, %v1144
      %v1157 = vmul.f32 %v1137, %v1144
      %v1158 = vmul.f32 %v1138, %v1144
      %v1159 = vmul.f32 %v1139, %v1144
      %v1160 = vmul.f32 %v1140, %v1144
      %v1161 = vadd.f32 %v1061, %v1145
      %v1162 = vadd.f32 %v1062, %v1146
      %v1163 = vadd.f32 %v1063, %v1147
      %v1164 = vadd.f32 %v1064, %v1148
      %v1165 = vadd.f32 %v1065, %v1149
      %v1166 = vadd.f32 %v1066, %v1150
      %v1167 = vadd.f32 %v1067, %v1151
      %v1168 = vadd.f32 %v1068, %v1152
      %v1169 = vadd.f32 %v1069, %v1153
      %v1170 = vadd.f32 %v1070, %v1154
      %v1171 = vadd.f32 %v1071, %v1155
      %v1172 = vadd.f32 %v1072, %v1156
      %v1173 = vadd.f32 %v1073, %v1157
      %v1174 = vadd.f32 %v1074, %v1158
      %v1175 = vadd.f32 %v1075, %v1159
      %v1176 = vadd.f32 %v1076, %v1160
      %v1177 = vlaneseq
      %v1178 = vshrl.u32 %v1177, 7
      %v1179 = vsub.s32 7, %v1178
      %v1180 = vrot.slane %v574, %v1179
      %v1181 = vmul.f32 %v1077, %v1180
      %v1182 = vmul.f32 %v1078, %v1180
      %v1183 = vmul.f32 %v1079, %v1180
      %v1184 = vmul.f32 %v1080, %v1180
      %v1185 = vmul.f32 %v1081, %v1180
      %v1186 = vmul.f32 %v1082, %v1180
      %v1187 = vmul.f32 %v1083, %v1180
      %v1188 = vmul.f32 %v1084, %v1180
      %v1189 = vmul.f32 %v1085, %v1180
      %v1190 = vmul.f32 %v1086, %v1180
      %v1191 = vmul.f32 %v1087, %v1180
      %v1192 = vmul.f32 %v1088, %v1180
      %v1193 = vmul.f32 %v1089, %v1180
      %v1194 = vmul.f32 %v1090, %v1180
      %v1195 = vmul.f32 %v1091, %v1180
      %v1196 = vmul.f32 %v1092, %v1180
      %v1197 = vadd.f32 %v1161, %v1181
      %v1198 = vadd.f32 %v1162, %v1182
      %v1199 = vadd.f32 %v1163, %v1183
      %v1200 = vadd.f32 %v1164, %v1184
      %v1201 = vadd.f32 %v1165, %v1185
      %v1202 = vadd.f32 %v1166, %v1186
      %v1203 = vadd.f32 %v1167, %v1187
      %v1204 = vadd.f32 %v1168, %v1188
      %v1205 = vadd.f32 %v1169, %v1189
      %v1206 = vadd.f32 %v1170, %v1190
      %v1207 = vadd.f32 %v1171, %v1191
      %v1208 = vadd.f32 %v1172, %v1192
      %v1209 = vadd.f32 %v1173, %v1193
      %v1210 = vadd.f32 %v1174, %v1194
      %v1211 = vadd.f32 %v1175, %v1195
      %v1212 = vadd.f32 %v1176, %v1196
      %v1213 = vrot.slane %v1077, 1
      %v1214 = vrot.slane %v1078, 1
      %v1215 = vrot.slane %v1079, 1
      %v1216 = vrot.slane %v1080, 1
      %v1217 = vrot.slane %v1081, 1
      %v1218 = vrot.slane %v1082, 1
      %v1219 = vrot.slane %v1083, 1
      %v1220 = vrot.slane %v1084, 1
      %v1221 = vrot.slane %v1085, 1
      %v1222 = vrot.slane %v1086, 1
      %v1223 = vrot.slane %v1087, 1
      %v1224 = vrot.slane %v1088, 1
      %v1225 = vrot.slane %v1089, 1
      %v1226 = vrot.slane %v1090, 1
      %v1227 = vrot.slane %v1091, 1
      %v1228 = vrot.slane %v1092, 1
      %v1229 = vsel %vm804, %v1227, %v1228
      %v1230 = vsel %vm804, %v1226, %v1227
      %v1231 = vsel %vm804, %v1225, %v1226
      %v1232 = vsel %vm804, %v1224, %v1225
      %v1233 = vsel %vm804, %v1223, %v1224
      %v1234 = vsel %vm804, %v1222, %v1223
      %v1235 = vsel %vm804, %v1221, %v1222
      %v1236 = vsel %vm804, %v1220, %v1221
      %v1237 = vsel %vm804, %v1219, %v1220
      %v1238 = vsel %vm804, %v1218, %v1219
      %v1239 = vsel %vm804, %v1217, %v1218
      %v1240 = vsel %vm804, %v1216, %v1217
      %v1241 = vsel %vm804, %v1215, %v1216
      %v1242 = vsel %vm804, %v1214, %v1215
      %v1243 = vsel %vm804, %v1213, %v1214
      %v1244 = vsel %vm804, %v1228, %v1213
      %v1245 = vsel %vm650, %v1243, 0.0
      %v1246 = vsel %vm650, %v1242, 0.0
      %v1247 = vsel %vm650, %v1241, 0.0
      %v1248 = vsel %vm650, %v1240, 0.0
      %v1249 = vsel %vm650, %v1239, 0.0
      %v1250 = vsel %vm650, %v1238, 0.0
      %v1251 = vsel %vm650, %v1237, 0.0
      %v1252 = vsel %vm650, %v1236, 0.0
      %v1253 = vsel %vm650, %v1235, 0.0
      %v1254 = vsel %vm650, %v1234, 0.0
      %v1255 = vsel %vm650, %v1233, 0.0
      %v1256 = vsel %vm650, %v1232, 0.0
      %v1257 = vsel %vm650, %v1231, 0.0
      %v1258 = vsel %vm650, %v1230, 0.0
      %v1259 = vsel %vm650, %v1229, 0.0
      %v1260 = vsel %vm650, %v1244, 0.0
      %v1261 = vlaneseq
      %v1262 = vshrl.u32 %v1261, 7
      %v1263 = vsub.s32 0, %v1262
      %v1264 = vrot.slane %v575, %v1263
      %v1265 = vmul.f32 %v1245, %v1264
      %v1266 = vmul.f32 %v1246, %v1264
      %v1267 = vmul.f32 %v1247, %v1264
      %v1268 = vmul.f32 %v1248, %v1264
      %v1269 = vmul.f32 %v1249, %v1264
      %v1270 = vmul.f32 %v1250, %v1264
      %v1271 = vmul.f32 %v1251, %v1264
      %v1272 = vmul.f32 %v1252, %v1264
      %v1273 = vmul.f32 %v1253, %v1264
      %v1274 = vmul.f32 %v1254, %v1264
      %v1275 = vmul.f32 %v1255, %v1264
      %v1276 = vmul.f32 %v1256, %v1264
      %v1277 = vmul.f32 %v1257, %v1264
      %v1278 = vmul.f32 %v1258, %v1264
      %v1279 = vmul.f32 %v1259, %v1264
      %v1280 = vmul.f32 %v1260, %v1264
      %v1281 = vadd.f32 %v1197, %v1265
      %v1282 = vadd.f32 %v1198, %v1266
      %v1283 = vadd.f32 %v1199, %v1267
      %v1284 = vadd.f32 %v1200, %v1268
      %v1285 = vadd.f32 %v1201, %v1269
      %v1286 = vadd.f32 %v1202, %v1270
      %v1287 = vadd.f32 %v1203, %v1271
      %v1288 = vadd.f32 %v1204, %v1272
      %v1289 = vadd.f32 %v1205, %v1273
      %v1290 = vadd.f32 %v1206, %v1274
      %v1291 = vadd.f32 %v1207, %v1275
      %v1292 = vadd.f32 %v1208, %v1276
      %v1293 = vadd.f32 %v1209, %v1277
      %v1294 = vadd.f32 %v1210, %v1278
      %v1295 = vadd.f32 %v1211, %v1279
      %v1296 = vadd.f32 %v1212, %v1280
      %v1298 = vlaneseq
      %v1299 = vshrl.u32 %v1298, 7
      %v1300 = vsub.s32 0, %v1299
      %v1301 = vrot.slane %v578, %v1300
      %v1303 = vadd.f32 %v1281, %v1301
      %v1304 = vadd.f32 %v1282, %v1301
      %v1305 = vadd.f32 %v1283, %v1301
      %v1306 = vadd.f32 %v1284, %v1301
      %v1307 = vadd.f32 %v1285, %v1301
      %v1308 = vadd.f32 %v1286, %v1301
      %v1309 = vadd.f32 %v1287, %v1301
      %v1310 = vadd.f32 %v1288, %v1301
      %v1311 = vadd.f32 %v1289, %v1301
      %v1312 = vadd.f32 %v1290, %v1301
      %v1313 = vadd.f32 %v1291, %v1301
      %v1314 = vadd.f32 %v1292, %v1301
      %v1315 = vadd.f32 %v1293, %v1301
      %v1316 = vadd.f32 %v1294, %v1301
      %v1317 = vadd.f32 %v1295, %v1301
      %v1318 = vadd.f32 %v1296, %v1301
      %v1319 = vmax.f32 %v1303, 0.0
      %v1320 = vmax.f32 %v1304, 0.0
      %v1321 = vmax.f32 %v1305, 0.0
      %v1322 = vmax.f32 %v1306, 0.0
      %v1323 = vmax.f32 %v1307, 0.0
      %v1324 = vmax.f32 %v1308, 0.0
      %v1325 = vmax.f32 %v1309, 0.0
      %v1326 = vmax.f32 %v1310, 0.0
      %v1327 = vmax.f32 %v1311, 0.0
      %v1328 = vmax.f32 %v1312, 0.0
      %v1329 = vmax.f32 %v1313, 0.0
      %v1330 = vmax.f32 %v1314, 0.0
      %v1331 = vmax.f32 %v1315, 0.0
      %v1332 = vmax.f32 %v1316, 0.0
      %v1333 = vmax.f32 %v1317, 0.0
      %v1334 = vmax.f32 %v1318, 0.0
      %v1335 = vadd.s32 %v566, 4294967280
      %v1336 = vadd.s32 %v567, 4294967280
      %v1337 = vadd.s32 %v568, 4294967280
      %v1338 = vadd.s32 %v569, 4294967280
      %v1339 = vadd.s32 %v570, 4294967280
      %v1340 = vadd.s32 %v571, 4294967280
      %v1341 = vadd.s32 %v572, 4294967280
      %v1342 = vadd.s32 %v573, 4294967280
      %vm1343 = vcmp.ge.s32.totalorder %v1335, 0
      %vm1344 = vcmp.ge.s32.totalorder %v1336, 0
      %vm1345 = vcmp.ge.s32.totalorder %v1337, 0
      %vm1346 = vcmp.ge.s32.totalorder %v1338, 0
      %vm1347 = vcmp.ge.s32.totalorder %v1339, 0
      %vm1348 = vcmp.ge.s32.totalorder %v1340, 0
      %vm1349 = vcmp.ge.s32.totalorder %v1341, 0
      %vm1350 = vcmp.ge.s32.totalorder %v1342, 0
      %vm1351 = vcmp.lt.s32.totalorder %v1335, 64
      %vm1352 = vcmp.lt.s32.totalorder %v1336, 64
      %vm1353 = vcmp.lt.s32.totalorder %v1337, 64
      %vm1354 = vcmp.lt.s32.totalorder %v1338, 64
      %vm1355 = vcmp.lt.s32.totalorder %v1339, 64
      %vm1356 = vcmp.lt.s32.totalorder %v1340, 64
      %vm1357 = vcmp.lt.s32.totalorder %v1341, 64
      %vm1358 = vcmp.lt.s32.totalorder %v1342, 64
      %vm1359 = vmand %vm1343, %vm1351
      %vm1360 = vmand %vm1344, %vm1352
      %vm1361 = vmand %vm1345, %vm1353
      %vm1362 = vmand %vm1346, %vm1354
      %vm1363 = vmand %vm1347, %vm1355
      %vm1364 = vmand %vm1348, %vm1356
      %vm1365 = vmand %vm1349, %vm1357
      %vm1366 = vmand %vm1350, %vm1358
      %v1367 = vadd.s32 %v567, 16
      %v1368 = vadd.s32 %v568, 16
      %v1369 = vadd.s32 %v569, 16
      %v1370 = vadd.s32 %v570, 16
      %v1371 = vadd.s32 %v571, 16
      %v1372 = vadd.s32 %v572, 16
      %v1373 = vadd.s32 %v573, 16
      %vm1374 = vcmp.ge.s32.totalorder %v568, 0
      %vm1375 = vcmp.ge.s32.totalorder %v1367, 0
      %vm1376 = vcmp.ge.s32.totalorder %v1368, 0
      %vm1377 = vcmp.ge.s32.totalorder %v1369, 0
      %vm1378 = vcmp.ge.s32.totalorder %v1370, 0
      %vm1379 = vcmp.ge.s32.totalorder %v1371, 0
      %vm1380 = vcmp.ge.s32.totalorder %v1372, 0
      %vm1381 = vcmp.ge.s32.totalorder %v1373, 0
      %vm1382 = vcmp.lt.s32.totalorder %v568, 64
      %vm1383 = vcmp.lt.s32.totalorder %v1367, 64
      %vm1384 = vcmp.lt.s32.totalorder %v1368, 64
      %vm1385 = vcmp.lt.s32.totalorder %v1369, 64
      %vm1386 = vcmp.lt.s32.totalorder %v1370, 64
      %vm1387 = vcmp.lt.s32.totalorder %v1371, 64
      %vm1388 = vcmp.lt.s32.totalorder %v1372, 64
      %vm1389 = vcmp.lt.s32.totalorder %v1373, 64
      %vm1390 = vmand %vm1374, %vm1382
      %vm1391 = vmand %vm1375, %vm1383
      %vm1392 = vmand %vm1376, %vm1384
      %vm1393 = vmand %vm1377, %vm1385
      %vm1394 = vmand %vm1378, %vm1386
      %vm1395 = vmand %vm1379, %vm1387
      %vm1396 = vmand %vm1380, %vm1388
      %vm1397 = vmand %vm1381, %vm1389
      %v1398 = vadd.s32 %v566, 4294967294
      %vm1399 = vcmp.ge.s32.totalorder %v1398, 0
      %vm1400 = vcmp.lt.s32.totalorder %v1398, 8
      %vm1401 = vmand %vm1399, %vm1400
      %v1402 = vadd.s32 %v566, 2
      %vm1403 = vcmp.ge.s32.totalorder %v1402, 0
      %vm1404 = vcmp.lt.s32.totalorder %v1402, 8
      %vm1405 = vmand %vm1403, %vm1404
      %v1406 = vsel %vm1359, %v563, 0.0
      %v1407 = vsel %vm1360, %v564, 0.0
      %v1408 = vsel %vm1361, %v549, 0.0
      %v1409 = vsel %vm1362, %v550, 0.0
      %v1410 = vsel %vm1363, %v551, 0.0
      %v1411 = vsel %vm1364, %v552, 0.0
      %v1412 = vsel %vm1365, %v553, 0.0
      %v1413 = vsel %vm1366, %v554, 0.0
      %v1414 = vsel %vm1359, %v555, 0.0
      %v1415 = vsel %vm1360, %v556, 0.0
      %v1416 = vsel %vm1361, %v557, 0.0
      %v1417 = vsel %vm1362, %v558, 0.0
      %v1418 = vsel %vm1363, %v559, 0.0
      %v1419 = vsel %vm1364, %v560, 0.0
      %v1420 = vsel %vm1365, %v561, 0.0
      %v1421 = vsel %vm1366, %v562, 0.0
      %v1422 = vrot.slane %v1406, 6
      %v1423 = vrot.slane %v1407, 6
      %v1424 = vrot.slane %v1408, 6
      %v1425 = vrot.slane %v1409, 6
      %v1426 = vrot.slane %v1410, 6
      %v1427 = vrot.slane %v1411, 6
      %v1428 = vrot.slane %v1412, 6
      %v1429 = vrot.slane %v1413, 6
      %v1430 = vrot.slane %v1414, 6
      %v1431 = vrot.slane %v1415, 6
      %v1432 = vrot.slane %v1416, 6
      %v1433 = vrot.slane %v1417, 6
      %v1434 = vrot.slane %v1418, 6
      %v1435 = vrot.slane %v1419, 6
      %v1436 = vrot.slane %v1420, 6
      %v1437 = vrot.slane %v1421, 6
      %vm1438 = vcmp.lt.s32.totalorder %v566, 2
      %v1439 = vsel %vm1438, %v1436, %v1437
      %v1440 = vsel %vm1438, %v1435, %v1436
      %v1441 = vsel %vm1438, %v1434, %v1435
      %v1442 = vsel %vm1438, %v1433, %v1434
      %v1443 = vsel %vm1438, %v1432, %v1433
      %v1444 = vsel %vm1438, %v1431, %v1432
      %v1445 = vsel %vm1438, %v1430, %v1431
      %v1446 = vsel %vm1438, %v1429, %v1430
      %v1447 = vsel %vm1438, %v1428, %v1429
      %v1448 = vsel %vm1438, %v1427, %v1428
      %v1449 = vsel %vm1438, %v1426, %v1427
      %v1450 = vsel %vm1438, %v1425, %v1426
      %v1451 = vsel %vm1438, %v1424, %v1425
      %v1452 = vsel %vm1438, %v1423, %v1424
      %v1453 = vsel %vm1438, %v1422, %v1423
      %v1454 = vsel %vm1438, %v1437, %v1422
      %v1455 = vsel %vm1401, %v1454, 0.0
      %v1456 = vsel %vm1401, %v1453, 0.0
      %v1457 = vsel %vm1401, %v1452, 0.0
      %v1458 = vsel %vm1401, %v1451, 0.0
      %v1459 = vsel %vm1401, %v1450, 0.0
      %v1460 = vsel %vm1401, %v1449, 0.0
      %v1461 = vsel %vm1401, %v1448, 0.0
      %v1462 = vsel %vm1401, %v1447, 0.0
      %v1463 = vsel %vm1401, %v1446, 0.0
      %v1464 = vsel %vm1401, %v1445, 0.0
      %v1465 = vsel %vm1401, %v1444, 0.0
      %v1466 = vsel %vm1401, %v1443, 0.0
      %v1467 = vsel %vm1401, %v1442, 0.0
      %v1468 = vsel %vm1401, %v1441, 0.0
      %v1469 = vsel %vm1401, %v1440, 0.0
      %v1470 = vsel %vm1401, %v1439, 0.0
      %v1471 = vlaneseq
      %v1472 = vshrl.u32 %v1471, 7
      %v1473 = vsub.s32 0, %v1472
      %v1474 = vrot.slane %v576, %v1473
      %v1475 = vmul.f32 %v1455, %v1474
      %v1476 = vmul.f32 %v1456, %v1474
      %v1477 = vmul.f32 %v1457, %v1474
      %v1478 = vmul.f32 %v1458, %v1474
      %v1479 = vmul.f32 %v1459, %v1474
      %v1480 = vmul.f32 %v1460, %v1474
      %v1481 = vmul.f32 %v1461, %v1474
      %v1482 = vmul.f32 %v1462, %v1474
      %v1483 = vmul.f32 %v1463, %v1474
      %v1484 = vmul.f32 %v1464, %v1474
      %v1485 = vmul.f32 %v1465, %v1474
      %v1486 = vmul.f32 %v1466, %v1474
      %v1487 = vmul.f32 %v1467, %v1474
      %v1488 = vmul.f32 %v1468, %v1474
      %v1489 = vmul.f32 %v1469, %v1474
      %v1490 = vmul.f32 %v1470, %v1474
      %v1491 = vadd.f32 %v1475, 0.0
      %v1492 = vadd.f32 %v1476, 0.0
      %v1493 = vadd.f32 %v1477, 0.0
      %v1494 = vadd.f32 %v1478, 0.0
      %v1495 = vadd.f32 %v1479, 0.0
      %v1496 = vadd.f32 %v1480, 0.0
      %v1497 = vadd.f32 %v1481, 0.0
      %v1498 = vadd.f32 %v1482, 0.0
      %v1499 = vadd.f32 %v1483, 0.0
      %v1500 = vadd.f32 %v1484, 0.0
      %v1501 = vadd.f32 %v1485, 0.0
      %v1502 = vadd.f32 %v1486, 0.0
      %v1503 = vadd.f32 %v1487, 0.0
      %v1504 = vadd.f32 %v1488, 0.0
      %v1505 = vadd.f32 %v1489, 0.0
      %v1506 = vadd.f32 %v1490, 0.0
      %v1507 = vlaneseq
      %v1508 = vshrl.u32 %v1507, 7
      %v1509 = vsub.s32 1, %v1508
      %v1510 = vrot.slane %v576, %v1509
      %v1511 = vmul.f32 %v1406, %v1510
      %v1512 = vmul.f32 %v1407, %v1510
      %v1513 = vmul.f32 %v1408, %v1510
      %v1514 = vmul.f32 %v1409, %v1510
      %v1515 = vmul.f32 %v1410, %v1510
      %v1516 = vmul.f32 %v1411, %v1510
      %v1517 = vmul.f32 %v1412, %v1510
      %v1518 = vmul.f32 %v1413, %v1510
      %v1519 = vmul.f32 %v1414, %v1510
      %v1520 = vmul.f32 %v1415, %v1510
      %v1521 = vmul.f32 %v1416, %v1510
      %v1522 = vmul.f32 %v1417, %v1510
      %v1523 = vmul.f32 %v1418, %v1510
      %v1524 = vmul.f32 %v1419, %v1510
      %v1525 = vmul.f32 %v1420, %v1510
      %v1526 = vmul.f32 %v1421, %v1510
      %v1527 = vadd.f32 %v1491, %v1511
      %v1528 = vadd.f32 %v1492, %v1512
      %v1529 = vadd.f32 %v1493, %v1513
      %v1530 = vadd.f32 %v1494, %v1514
      %v1531 = vadd.f32 %v1495, %v1515
      %v1532 = vadd.f32 %v1496, %v1516
      %v1533 = vadd.f32 %v1497, %v1517
      %v1534 = vadd.f32 %v1498, %v1518
      %v1535 = vadd.f32 %v1499, %v1519
      %v1536 = vadd.f32 %v1500, %v1520
      %v1537 = vadd.f32 %v1501, %v1521
      %v1538 = vadd.f32 %v1502, %v1522
      %v1539 = vadd.f32 %v1503, %v1523
      %v1540 = vadd.f32 %v1504, %v1524
      %v1541 = vadd.f32 %v1505, %v1525
      %v1542 = vadd.f32 %v1506, %v1526
      %v1543 = vrot.slane %v1406, 2
      %v1544 = vrot.slane %v1407, 2
      %v1545 = vrot.slane %v1408, 2
      %v1546 = vrot.slane %v1409, 2
      %v1547 = vrot.slane %v1410, 2
      %v1548 = vrot.slane %v1411, 2
      %v1549 = vrot.slane %v1412, 2
      %v1550 = vrot.slane %v1413, 2
      %v1551 = vrot.slane %v1414, 2
      %v1552 = vrot.slane %v1415, 2
      %v1553 = vrot.slane %v1416, 2
      %v1554 = vrot.slane %v1417, 2
      %v1555 = vrot.slane %v1418, 2
      %v1556 = vrot.slane %v1419, 2
      %v1557 = vrot.slane %v1420, 2
      %v1558 = vrot.slane %v1421, 2
      %vm1559 = vcmp.lt.s32.totalorder %v566, 6
      %v1560 = vsel %vm1559, %v1557, %v1558
      %v1561 = vsel %vm1559, %v1556, %v1557
      %v1562 = vsel %vm1559, %v1555, %v1556
      %v1563 = vsel %vm1559, %v1554, %v1555
      %v1564 = vsel %vm1559, %v1553, %v1554
      %v1565 = vsel %vm1559, %v1552, %v1553
      %v1566 = vsel %vm1559, %v1551, %v1552
      %v1567 = vsel %vm1559, %v1550, %v1551
      %v1568 = vsel %vm1559, %v1549, %v1550
      %v1569 = vsel %vm1559, %v1548, %v1549
      %v1570 = vsel %vm1559, %v1547, %v1548
      %v1571 = vsel %vm1559, %v1546, %v1547
      %v1572 = vsel %vm1559, %v1545, %v1546
      %v1573 = vsel %vm1559, %v1544, %v1545
      %v1574 = vsel %vm1559, %v1543, %v1544
      %v1575 = vsel %vm1559, %v1558, %v1543
      %v1576 = vsel %vm1405, %v1574, 0.0
      %v1577 = vsel %vm1405, %v1573, 0.0
      %v1578 = vsel %vm1405, %v1572, 0.0
      %v1579 = vsel %vm1405, %v1571, 0.0
      %v1580 = vsel %vm1405, %v1570, 0.0
      %v1581 = vsel %vm1405, %v1569, 0.0
      %v1582 = vsel %vm1405, %v1568, 0.0
      %v1583 = vsel %vm1405, %v1567, 0.0
      %v1584 = vsel %vm1405, %v1566, 0.0
      %v1585 = vsel %vm1405, %v1565, 0.0
      %v1586 = vsel %vm1405, %v1564, 0.0
      %v1587 = vsel %vm1405, %v1563, 0.0
      %v1588 = vsel %vm1405, %v1562, 0.0
      %v1589 = vsel %vm1405, %v1561, 0.0
      %v1590 = vsel %vm1405, %v1560, 0.0
      %v1591 = vsel %vm1405, %v1575, 0.0
      %v1592 = vlaneseq
      %v1593 = vshrl.u32 %v1592, 7
      %v1594 = vsub.s32 2, %v1593
      %v1595 = vrot.slane %v576, %v1594
      %v1596 = vmul.f32 %v1576, %v1595
      %v1597 = vmul.f32 %v1577, %v1595
      %v1598 = vmul.f32 %v1578, %v1595
      %v1599 = vmul.f32 %v1579, %v1595
      %v1600 = vmul.f32 %v1580, %v1595
      %v1601 = vmul.f32 %v1581, %v1595
      %v1602 = vmul.f32 %v1582, %v1595
      %v1603 = vmul.f32 %v1583, %v1595
      %v1604 = vmul.f32 %v1584, %v1595
      %v1605 = vmul.f32 %v1585, %v1595
      %v1606 = vmul.f32 %v1586, %v1595
      %v1607 = vmul.f32 %v1587, %v1595
      %v1608 = vmul.f32 %v1588, %v1595
      %v1609 = vmul.f32 %v1589, %v1595
      %v1610 = vmul.f32 %v1590, %v1595
      %v1611 = vmul.f32 %v1591, %v1595
      %v1612 = vadd.f32 %v1527, %v1596
      %v1613 = vadd.f32 %v1528, %v1597
      %v1614 = vadd.f32 %v1529, %v1598
      %v1615 = vadd.f32 %v1530, %v1599
      %v1616 = vadd.f32 %v1531, %v1600
      %v1617 = vadd.f32 %v1532, %v1601
      %v1618 = vadd.f32 %v1533, %v1602
      %v1619 = vadd.f32 %v1534, %v1603
      %v1620 = vadd.f32 %v1535, %v1604
      %v1621 = vadd.f32 %v1536, %v1605
      %v1622 = vadd.f32 %v1537, %v1606
      %v1623 = vadd.f32 %v1538, %v1607
      %v1624 = vadd.f32 %v1539, %v1608
      %v1625 = vadd.f32 %v1540, %v1609
      %v1626 = vadd.f32 %v1541, %v1610
      %v1627 = vadd.f32 %v1542, %v1611
      %v1628 = vrot.slane %v549, 6
      %v1629 = vrot.slane %v550, 6
      %v1630 = vrot.slane %v551, 6
      %v1631 = vrot.slane %v552, 6
      %v1632 = vrot.slane %v553, 6
      %v1633 = vrot.slane %v554, 6
      %v1634 = vrot.slane %v555, 6
      %v1635 = vrot.slane %v556, 6
      %v1636 = vrot.slane %v557, 6
      %v1637 = vrot.slane %v558, 6
      %v1638 = vrot.slane %v559, 6
      %v1639 = vrot.slane %v560, 6
      %v1640 = vrot.slane %v561, 6
      %v1641 = vrot.slane %v562, 6
      %v1642 = vrot.slane %v563, 6
      %v1643 = vrot.slane %v564, 6
      %v1644 = vsel %vm1438, %v1642, %v1643
      %v1645 = vsel %vm1438, %v1641, %v1642
      %v1646 = vsel %vm1438, %v1640, %v1641
      %v1647 = vsel %vm1438, %v1639, %v1640
      %v1648 = vsel %vm1438, %v1638, %v1639
      %v1649 = vsel %vm1438, %v1637, %v1638
      %v1650 = vsel %vm1438, %v1636, %v1637
      %v1651 = vsel %vm1438, %v1635, %v1636
      %v1652 = vsel %vm1438, %v1634, %v1635
      %v1653 = vsel %vm1438, %v1633, %v1634
      %v1654 = vsel %vm1438, %v1632, %v1633
      %v1655 = vsel %vm1438, %v1631, %v1632
      %v1656 = vsel %vm1438, %v1630, %v1631
      %v1657 = vsel %vm1438, %v1629, %v1630
      %v1658 = vsel %vm1438, %v1628, %v1629
      %v1659 = vsel %vm1438, %v1643, %v1628
      %v1660 = vsel %vm1401, %v1659, 0.0
      %v1661 = vsel %vm1401, %v1658, 0.0
      %v1662 = vsel %vm1401, %v1657, 0.0
      %v1663 = vsel %vm1401, %v1656, 0.0
      %v1664 = vsel %vm1401, %v1655, 0.0
      %v1665 = vsel %vm1401, %v1654, 0.0
      %v1666 = vsel %vm1401, %v1653, 0.0
      %v1667 = vsel %vm1401, %v1652, 0.0
      %v1668 = vsel %vm1401, %v1651, 0.0
      %v1669 = vsel %vm1401, %v1650, 0.0
      %v1670 = vsel %vm1401, %v1649, 0.0
      %v1671 = vsel %vm1401, %v1648, 0.0
      %v1672 = vsel %vm1401, %v1647, 0.0
      %v1673 = vsel %vm1401, %v1646, 0.0
      %v1674 = vsel %vm1401, %v1645, 0.0
      %v1675 = vsel %vm1401, %v1644, 0.0
      %v1676 = vlaneseq
      %v1677 = vshrl.u32 %v1676, 7
      %v1678 = vsub.s32 3, %v1677
      %v1679 = vrot.slane %v576, %v1678
      %v1680 = vmul.f32 %v1660, %v1679
      %v1681 = vmul.f32 %v1661, %v1679
      %v1682 = vmul.f32 %v1662, %v1679
      %v1683 = vmul.f32 %v1663, %v1679
      %v1684 = vmul.f32 %v1664, %v1679
      %v1685 = vmul.f32 %v1665, %v1679
      %v1686 = vmul.f32 %v1666, %v1679
      %v1687 = vmul.f32 %v1667, %v1679
      %v1688 = vmul.f32 %v1668, %v1679
      %v1689 = vmul.f32 %v1669, %v1679
      %v1690 = vmul.f32 %v1670, %v1679
      %v1691 = vmul.f32 %v1671, %v1679
      %v1692 = vmul.f32 %v1672, %v1679
      %v1693 = vmul.f32 %v1673, %v1679
      %v1694 = vmul.f32 %v1674, %v1679
      %v1695 = vmul.f32 %v1675, %v1679
      %v1696 = vadd.f32 %v1612, %v1680
      %v1697 = vadd.f32 %v1613, %v1681
      %v1698 = vadd.f32 %v1614, %v1682
      %v1699 = vadd.f32 %v1615, %v1683
      %v1700 = vadd.f32 %v1616, %v1684
      %v1701 = vadd.f32 %v1617, %v1685
      %v1702 = vadd.f32 %v1618, %v1686
      %v1703 = vadd.f32 %v1619, %v1687
      %v1704 = vadd.f32 %v1620, %v1688
      %v1705 = vadd.f32 %v1621, %v1689
      %v1706 = vadd.f32 %v1622, %v1690
      %v1707 = vadd.f32 %v1623, %v1691
      %v1708 = vadd.f32 %v1624, %v1692
      %v1709 = vadd.f32 %v1625, %v1693
      %v1710 = vadd.f32 %v1626, %v1694
      %v1711 = vadd.f32 %v1627, %v1695
      %v1712 = vlaneseq
      %v1713 = vshrl.u32 %v1712, 7
      %v1714 = vsub.s32 4, %v1713
      %v1715 = vrot.slane %v576, %v1714
      %v1716 = vmul.f32 %v549, %v1715
      %v1717 = vmul.f32 %v550, %v1715
      %v1718 = vmul.f32 %v551, %v1715
      %v1719 = vmul.f32 %v552, %v1715
      %v1720 = vmul.f32 %v553, %v1715
      %v1721 = vmul.f32 %v554, %v1715
      %v1722 = vmul.f32 %v555, %v1715
      %v1723 = vmul.f32 %v556, %v1715
      %v1724 = vmul.f32 %v557, %v1715
      %v1725 = vmul.f32 %v558, %v1715
      %v1726 = vmul.f32 %v559, %v1715
      %v1727 = vmul.f32 %v560, %v1715
      %v1728 = vmul.f32 %v561, %v1715
      %v1729 = vmul.f32 %v562, %v1715
      %v1730 = vmul.f32 %v563, %v1715
      %v1731 = vmul.f32 %v564, %v1715
      %v1732 = vadd.f32 %v1696, %v1716
      %v1733 = vadd.f32 %v1697, %v1717
      %v1734 = vadd.f32 %v1698, %v1718
      %v1735 = vadd.f32 %v1699, %v1719
      %v1736 = vadd.f32 %v1700, %v1720
      %v1737 = vadd.f32 %v1701, %v1721
      %v1738 = vadd.f32 %v1702, %v1722
      %v1739 = vadd.f32 %v1703, %v1723
      %v1740 = vadd.f32 %v1704, %v1724
      %v1741 = vadd.f32 %v1705, %v1725
      %v1742 = vadd.f32 %v1706, %v1726
      %v1743 = vadd.f32 %v1707, %v1727
      %v1744 = vadd.f32 %v1708, %v1728
      %v1745 = vadd.f32 %v1709, %v1729
      %v1746 = vadd.f32 %v1710, %v1730
      %v1747 = vadd.f32 %v1711, %v1731
      %v1748 = vrot.slane %v549, 2
      %v1749 = vrot.slane %v550, 2
      %v1750 = vrot.slane %v551, 2
      %v1751 = vrot.slane %v552, 2
      %v1752 = vrot.slane %v553, 2
      %v1753 = vrot.slane %v554, 2
      %v1754 = vrot.slane %v555, 2
      %v1755 = vrot.slane %v556, 2
      %v1756 = vrot.slane %v557, 2
      %v1757 = vrot.slane %v558, 2
      %v1758 = vrot.slane %v559, 2
      %v1759 = vrot.slane %v560, 2
      %v1760 = vrot.slane %v561, 2
      %v1761 = vrot.slane %v562, 2
      %v1762 = vrot.slane %v563, 2
      %v1763 = vrot.slane %v564, 2
      %v1764 = vsel %vm1559, %v1762, %v1763
      %v1765 = vsel %vm1559, %v1761, %v1762
      %v1766 = vsel %vm1559, %v1760, %v1761
      %v1767 = vsel %vm1559, %v1759, %v1760
      %v1768 = vsel %vm1559, %v1758, %v1759
      %v1769 = vsel %vm1559, %v1757, %v1758
      %v1770 = vsel %vm1559, %v1756, %v1757
      %v1771 = vsel %vm1559, %v1755, %v1756
      %v1772 = vsel %vm1559, %v1754, %v1755
      %v1773 = vsel %vm1559, %v1753, %v1754
      %v1774 = vsel %vm1559, %v1752, %v1753
      %v1775 = vsel %vm1559, %v1751, %v1752
      %v1776 = vsel %vm1559, %v1750, %v1751
      %v1777 = vsel %vm1559, %v1749, %v1750
      %v1778 = vsel %vm1559, %v1748, %v1749
      %v1779 = vsel %vm1559, %v1763, %v1748
      %v1780 = vsel %vm1405, %v1778, 0.0
      %v1781 = vsel %vm1405, %v1777, 0.0
      %v1782 = vsel %vm1405, %v1776, 0.0
      %v1783 = vsel %vm1405, %v1775, 0.0
      %v1784 = vsel %vm1405, %v1774, 0.0
      %v1785 = vsel %vm1405, %v1773, 0.0
      %v1786 = vsel %vm1405, %v1772, 0.0
      %v1787 = vsel %vm1405, %v1771, 0.0
      %v1788 = vsel %vm1405, %v1770, 0.0
      %v1789 = vsel %vm1405, %v1769, 0.0
      %v1790 = vsel %vm1405, %v1768, 0.0
      %v1791 = vsel %vm1405, %v1767, 0.0
      %v1792 = vsel %vm1405, %v1766, 0.0
      %v1793 = vsel %vm1405, %v1765, 0.0
      %v1794 = vsel %vm1405, %v1764, 0.0
      %v1795 = vsel %vm1405, %v1779, 0.0
      %v1796 = vlaneseq
      %v1797 = vshrl.u32 %v1796, 7
      %v1798 = vsub.s32 5, %v1797
      %v1799 = vrot.slane %v576, %v1798
      %v1800 = vmul.f32 %v1780, %v1799
      %v1801 = vmul.f32 %v1781, %v1799
      %v1802 = vmul.f32 %v1782, %v1799
      %v1803 = vmul.f32 %v1783, %v1799
      %v1804 = vmul.f32 %v1784, %v1799
      %v1805 = vmul.f32 %v1785, %v1799
      %v1806 = vmul.f32 %v1786, %v1799
      %v1807 = vmul.f32 %v1787, %v1799
      %v1808 = vmul.f32 %v1788, %v1799
      %v1809 = vmul.f32 %v1789, %v1799
      %v1810 = vmul.f32 %v1790, %v1799
      %v1811 = vmul.f32 %v1791, %v1799
      %v1812 = vmul.f32 %v1792, %v1799
      %v1813 = vmul.f32 %v1793, %v1799
      %v1814 = vmul.f32 %v1794, %v1799
      %v1815 = vmul.f32 %v1795, %v1799
      %v1816 = vadd.f32 %v1732, %v1800
      %v1817 = vadd.f32 %v1733, %v1801
      %v1818 = vadd.f32 %v1734, %v1802
      %v1819 = vadd.f32 %v1735, %v1803
      %v1820 = vadd.f32 %v1736, %v1804
      %v1821 = vadd.f32 %v1737, %v1805
      %v1822 = vadd.f32 %v1738, %v1806
      %v1823 = vadd.f32 %v1739, %v1807
      %v1824 = vadd.f32 %v1740, %v1808
      %v1825 = vadd.f32 %v1741, %v1809
      %v1826 = vadd.f32 %v1742, %v1810
      %v1827 = vadd.f32 %v1743, %v1811
      %v1828 = vadd.f32 %v1744, %v1812
      %v1829 = vadd.f32 %v1745, %v1813
      %v1830 = vadd.f32 %v1746, %v1814
      %v1831 = vadd.f32 %v1747, %v1815
      %v1832 = vsel %vm1390, %v551, 0.0
      %v1833 = vsel %vm1391, %v552, 0.0
      %v1834 = vsel %vm1392, %v553, 0.0
      %v1835 = vsel %vm1393, %v554, 0.0
      %v1836 = vsel %vm1394, %v555, 0.0
      %v1837 = vsel %vm1395, %v556, 0.0
      %v1838 = vsel %vm1396, %v557, 0.0
      %v1839 = vsel %vm1397, %v558, 0.0
      %v1840 = vsel %vm1390, %v559, 0.0
      %v1841 = vsel %vm1391, %v560, 0.0
      %v1842 = vsel %vm1392, %v561, 0.0
      %v1843 = vsel %vm1393, %v562, 0.0
      %v1844 = vsel %vm1394, %v563, 0.0
      %v1845 = vsel %vm1395, %v564, 0.0
      %v1846 = vsel %vm1396, %v549, 0.0
      %v1847 = vsel %vm1397, %v550, 0.0
      %v1848 = vrot.slane %v1832, 6
      %v1849 = vrot.slane %v1833, 6
      %v1850 = vrot.slane %v1834, 6
      %v1851 = vrot.slane %v1835, 6
      %v1852 = vrot.slane %v1836, 6
      %v1853 = vrot.slane %v1837, 6
      %v1854 = vrot.slane %v1838, 6
      %v1855 = vrot.slane %v1839, 6
      %v1856 = vrot.slane %v1840, 6
      %v1857 = vrot.slane %v1841, 6
      %v1858 = vrot.slane %v1842, 6
      %v1859 = vrot.slane %v1843, 6
      %v1860 = vrot.slane %v1844, 6
      %v1861 = vrot.slane %v1845, 6
      %v1862 = vrot.slane %v1846, 6
      %v1863 = vrot.slane %v1847, 6
      %v1864 = vsel %vm1438, %v1862, %v1863
      %v1865 = vsel %vm1438, %v1861, %v1862
      %v1866 = vsel %vm1438, %v1860, %v1861
      %v1867 = vsel %vm1438, %v1859, %v1860
      %v1868 = vsel %vm1438, %v1858, %v1859
      %v1869 = vsel %vm1438, %v1857, %v1858
      %v1870 = vsel %vm1438, %v1856, %v1857
      %v1871 = vsel %vm1438, %v1855, %v1856
      %v1872 = vsel %vm1438, %v1854, %v1855
      %v1873 = vsel %vm1438, %v1853, %v1854
      %v1874 = vsel %vm1438, %v1852, %v1853
      %v1875 = vsel %vm1438, %v1851, %v1852
      %v1876 = vsel %vm1438, %v1850, %v1851
      %v1877 = vsel %vm1438, %v1849, %v1850
      %v1878 = vsel %vm1438, %v1848, %v1849
      %v1879 = vsel %vm1438, %v1863, %v1848
      %v1880 = vsel %vm1401, %v1879, 0.0
      %v1881 = vsel %vm1401, %v1878, 0.0
      %v1882 = vsel %vm1401, %v1877, 0.0
      %v1883 = vsel %vm1401, %v1876, 0.0
      %v1884 = vsel %vm1401, %v1875, 0.0
      %v1885 = vsel %vm1401, %v1874, 0.0
      %v1886 = vsel %vm1401, %v1873, 0.0
      %v1887 = vsel %vm1401, %v1872, 0.0
      %v1888 = vsel %vm1401, %v1871, 0.0
      %v1889 = vsel %vm1401, %v1870, 0.0
      %v1890 = vsel %vm1401, %v1869, 0.0
      %v1891 = vsel %vm1401, %v1868, 0.0
      %v1892 = vsel %vm1401, %v1867, 0.0
      %v1893 = vsel %vm1401, %v1866, 0.0
      %v1894 = vsel %vm1401, %v1865, 0.0
      %v1895 = vsel %vm1401, %v1864, 0.0
      %v1896 = vlaneseq
      %v1897 = vshrl.u32 %v1896, 7
      %v1898 = vsub.s32 6, %v1897
      %v1899 = vrot.slane %v576, %v1898
      %v1900 = vmul.f32 %v1880, %v1899
      %v1901 = vmul.f32 %v1881, %v1899
      %v1902 = vmul.f32 %v1882, %v1899
      %v1903 = vmul.f32 %v1883, %v1899
      %v1904 = vmul.f32 %v1884, %v1899
      %v1905 = vmul.f32 %v1885, %v1899
      %v1906 = vmul.f32 %v1886, %v1899
      %v1907 = vmul.f32 %v1887, %v1899
      %v1908 = vmul.f32 %v1888, %v1899
      %v1909 = vmul.f32 %v1889, %v1899
      %v1910 = vmul.f32 %v1890, %v1899
      %v1911 = vmul.f32 %v1891, %v1899
      %v1912 = vmul.f32 %v1892, %v1899
      %v1913 = vmul.f32 %v1893, %v1899
      %v1914 = vmul.f32 %v1894, %v1899
      %v1915 = vmul.f32 %v1895, %v1899
      %v1916 = vadd.f32 %v1816, %v1900
      %v1917 = vadd.f32 %v1817, %v1901
      %v1918 = vadd.f32 %v1818, %v1902
      %v1919 = vadd.f32 %v1819, %v1903
      %v1920 = vadd.f32 %v1820, %v1904
      %v1921 = vadd.f32 %v1821, %v1905
      %v1922 = vadd.f32 %v1822, %v1906
      %v1923 = vadd.f32 %v1823, %v1907
      %v1924 = vadd.f32 %v1824, %v1908
      %v1925 = vadd.f32 %v1825, %v1909
      %v1926 = vadd.f32 %v1826, %v1910
      %v1927 = vadd.f32 %v1827, %v1911
      %v1928 = vadd.f32 %v1828, %v1912
      %v1929 = vadd.f32 %v1829, %v1913
      %v1930 = vadd.f32 %v1830, %v1914
      %v1931 = vadd.f32 %v1831, %v1915
      %v1932 = vlaneseq
      %v1933 = vshrl.u32 %v1932, 7
      %v1934 = vsub.s32 7, %v1933
      %v1935 = vrot.slane %v576, %v1934
      %v1936 = vmul.f32 %v1832, %v1935
      %v1937 = vmul.f32 %v1833, %v1935
      %v1938 = vmul.f32 %v1834, %v1935
      %v1939 = vmul.f32 %v1835, %v1935
      %v1940 = vmul.f32 %v1836, %v1935
      %v1941 = vmul.f32 %v1837, %v1935
      %v1942 = vmul.f32 %v1838, %v1935
      %v1943 = vmul.f32 %v1839, %v1935
      %v1944 = vmul.f32 %v1840, %v1935
      %v1945 = vmul.f32 %v1841, %v1935
      %v1946 = vmul.f32 %v1842, %v1935
      %v1947 = vmul.f32 %v1843, %v1935
      %v1948 = vmul.f32 %v1844, %v1935
      %v1949 = vmul.f32 %v1845, %v1935
      %v1950 = vmul.f32 %v1846, %v1935
      %v1951 = vmul.f32 %v1847, %v1935
      %v1952 = vadd.f32 %v1916, %v1936
      %v1953 = vadd.f32 %v1917, %v1937
      %v1954 = vadd.f32 %v1918, %v1938
      %v1955 = vadd.f32 %v1919, %v1939
      %v1956 = vadd.f32 %v1920, %v1940
      %v1957 = vadd.f32 %v1921, %v1941
      %v1958 = vadd.f32 %v1922, %v1942
      %v1959 = vadd.f32 %v1923, %v1943
      %v1960 = vadd.f32 %v1924, %v1944
      %v1961 = vadd.f32 %v1925, %v1945
      %v1962 = vadd.f32 %v1926, %v1946
      %v1963 = vadd.f32 %v1927, %v1947
      %v1964 = vadd.f32 %v1928, %v1948
      %v1965 = vadd.f32 %v1929, %v1949
      %v1966 = vadd.f32 %v1930, %v1950
      %v1967 = vadd.f32 %v1931, %v1951
      %v1968 = vrot.slane %v1832, 2
      %v1969 = vrot.slane %v1833, 2
      %v1970 = vrot.slane %v1834, 2
      %v1971 = vrot.slane %v1835, 2
      %v1972 = vrot.slane %v1836, 2
      %v1973 = vrot.slane %v1837, 2
      %v1974 = vrot.slane %v1838, 2
      %v1975 = vrot.slane %v1839, 2
      %v1976 = vrot.slane %v1840, 2
      %v1977 = vrot.slane %v1841, 2
      %v1978 = vrot.slane %v1842, 2
      %v1979 = vrot.slane %v1843, 2
      %v1980 = vrot.slane %v1844, 2
      %v1981 = vrot.slane %v1845, 2
      %v1982 = vrot.slane %v1846, 2
      %v1983 = vrot.slane %v1847, 2
      %v1984 = vsel %vm1559, %v1982, %v1983
      %v1985 = vsel %vm1559, %v1981, %v1982
      %v1986 = vsel %vm1559, %v1980, %v1981
      %v1987 = vsel %vm1559, %v1979, %v1980
      %v1988 = vsel %vm1559, %v1978, %v1979
      %v1989 = vsel %vm1559, %v1977, %v1978
      %v1990 = vsel %vm1559, %v1976, %v1977
      %v1991 = vsel %vm1559, %v1975, %v1976
      %v1992 = vsel %vm1559, %v1974, %v1975
      %v1993 = vsel %vm1559, %v1973, %v1974
      %v1994 = vsel %vm1559, %v1972, %v1973
      %v1995 = vsel %vm1559, %v1971, %v1972
      %v1996 = vsel %vm1559, %v1970, %v1971
      %v1997 = vsel %vm1559, %v1969, %v1970
      %v1998 = vsel %vm1559, %v1968, %v1969
      %v1999 = vsel %vm1559, %v1983, %v1968
      %v2000 = vsel %vm1405, %v1998, 0.0
      %v2001 = vsel %vm1405, %v1997, 0.0
      %v2002 = vsel %vm1405, %v1996, 0.0
      %v2003 = vsel %vm1405, %v1995, 0.0
      %v2004 = vsel %vm1405, %v1994, 0.0
      %v2005 = vsel %vm1405, %v1993, 0.0
      %v2006 = vsel %vm1405, %v1992, 0.0
      %v2007 = vsel %vm1405, %v1991, 0.0
      %v2008 = vsel %vm1405, %v1990, 0.0
      %v2009 = vsel %vm1405, %v1989, 0.0
      %v2010 = vsel %vm1405, %v1988, 0.0
      %v2011 = vsel %vm1405, %v1987, 0.0
      %v2012 = vsel %vm1405, %v1986, 0.0
      %v2013 = vsel %vm1405, %v1985, 0.0
      %v2014 = vsel %vm1405, %v1984, 0.0
      %v2015 = vsel %vm1405, %v1999, 0.0
      %v2016 = vlaneseq
      %v2017 = vshrl.u32 %v2016, 7
      %v2018 = vsub.s32 0, %v2017
      %v2019 = vrot.slane %v577, %v2018
      %v2020 = vmul.f32 %v2000, %v2019
      %v2021 = vmul.f32 %v2001, %v2019
      %v2022 = vmul.f32 %v2002, %v2019
      %v2023 = vmul.f32 %v2003, %v2019
      %v2024 = vmul.f32 %v2004, %v2019
      %v2025 = vmul.f32 %v2005, %v2019
      %v2026 = vmul.f32 %v2006, %v2019
      %v2027 = vmul.f32 %v2007, %v2019
      %v2028 = vmul.f32 %v2008, %v2019
      %v2029 = vmul.f32 %v2009, %v2019
      %v2030 = vmul.f32 %v2010, %v2019
      %v2031 = vmul.f32 %v2011, %v2019
      %v2032 = vmul.f32 %v2012, %v2019
      %v2033 = vmul.f32 %v2013, %v2019
      %v2034 = vmul.f32 %v2014, %v2019
      %v2035 = vmul.f32 %v2015, %v2019
      %v2036 = vadd.f32 %v1952, %v2020
      %v2037 = vadd.f32 %v1953, %v2021
      %v2038 = vadd.f32 %v1954, %v2022
      %v2039 = vadd.f32 %v1955, %v2023
      %v2040 = vadd.f32 %v1956, %v2024
      %v2041 = vadd.f32 %v1957, %v2025
      %v2042 = vadd.f32 %v1958, %v2026
      %v2043 = vadd.f32 %v1959, %v2027
      %v2044 = vadd.f32 %v1960, %v2028
      %v2045 = vadd.f32 %v1961, %v2029
      %v2046 = vadd.f32 %v1962, %v2030
      %v2047 = vadd.f32 %v1963, %v2031
      %v2048 = vadd.f32 %v1964, %v2032
      %v2049 = vadd.f32 %v1965, %v2033
      %v2050 = vadd.f32 %v1966, %v2034
      %v2051 = vadd.f32 %v1967, %v2035
      %v2053 = vlaneseq
      %v2054 = vshrl.u32 %v2053, 7
      %v2055 = vsub.s32 0, %v2054
      %v2056 = vrot.slane %v579, %v2055
      %v2058 = vadd.f32 %v2036, %v2056
      %v2059 = vadd.f32 %v2037, %v2056
      %v2060 = vadd.f32 %v2038, %v2056
      %v2061 = vadd.f32 %v2039, %v2056
      %v2062 = vadd.f32 %v2040, %v2056
      %v2063 = vadd.f32 %v2041, %v2056
      %v2064 = vadd.f32 %v2042, %v2056
      %v2065 = vadd.f32 %v2043, %v2056
      %v2066 = vadd.f32 %v2044, %v2056
      %v2067 = vadd.f32 %v2045, %v2056
      %v2068 = vadd.f32 %v2046, %v2056
      %v2069 = vadd.f32 %v2047, %v2056
      %v2070 = vadd.f32 %v2048, %v2056
      %v2071 = vadd.f32 %v2049, %v2056
      %v2072 = vadd.f32 %v2050, %v2056
      %v2073 = vadd.f32 %v2051, %v2056
      %v2074 = vmax.f32 %v2058, 0.0
      %v2075 = vmax.f32 %v2059, 0.0
      %v2076 = vmax.f32 %v2060, 0.0
      %v2077 = vmax.f32 %v2061, 0.0
      %v2078 = vmax.f32 %v2062, 0.0
      %v2079 = vmax.f32 %v2063, 0.0
      %v2080 = vmax.f32 %v2064, 0.0
      %v2081 = vmax.f32 %v2065, 0.0
      %v2082 = vmax.f32 %v2066, 0.0
      %v2083 = vmax.f32 %v2067, 0.0
      %v2084 = vmax.f32 %v2068, 0.0
      %v2085 = vmax.f32 %v2069, 0.0
      %v2086 = vmax.f32 %v2070, 0.0
      %v2087 = vmax.f32 %v2071, 0.0
      %v2088 = vmax.f32 %v2072, 0.0
      %v2089 = vmax.f32 %v2073, 0.0
      %v2090 = vadd.f32 %v1319, %v2074
      %v2091 = vadd.f32 %v1320, %v2075
      %v2092 = vadd.f32 %v1321, %v2076
      %v2093 = vadd.f32 %v1322, %v2077
      %v2094 = vadd.f32 %v1323, %v2078
      %v2095 = vadd.f32 %v1324, %v2079
      %v2096 = vadd.f32 %v1325, %v2080
      %v2097 = vadd.f32 %v1326, %v2081
      %v2098 = vadd.f32 %v1327, %v2082
      %v2099 = vadd.f32 %v1328, %v2083
      %v2100 = vadd.f32 %v1329, %v2084
      %v2101 = vadd.f32 %v1330, %v2085
      %v2102 = vadd.f32 %v1331, %v2086
      %v2103 = vadd.f32 %v1332, %v2087
      %v2104 = vadd.f32 %v1333, %v2088
      %v2105 = vadd.f32 %v1334, %v2089
      %vm2106 = vcmask 261120
      %v2107 = vsel %vm2106, %v2090, 0.0
      %v2108 = vsel %vm2106, %v2091, 0.0
      %v2109 = vadd.f32 %v2107, %v2108
      %v2110 = vsel %vm2106, %v2092, 0.0
      %v2111 = vadd.f32 %v2109, %v2110
      %v2112 = vsel %vm2106, %v2093, 0.0
      %v2113 = vadd.f32 %v2111, %v2112
      %v2114 = vsel %vm2106, %v2094, 0.0
      %v2115 = vadd.f32 %v2113, %v2114
      %v2116 = vsel %vm2106, %v2095, 0.0
      %v2117 = vadd.f32 %v2115, %v2116
      %v2118 = vsel %vm2106, %v2096, 0.0
      %v2119 = vadd.f32 %v2117, %v2118
      %v2120 = vsel %vm2106, %v2097, 0.0
      %v2121 = vadd.f32 %v2119, %v2120
      %v2122 = vrot.slane %v2121, 4
      %v2123 = vadd.f32 %v2121, %v2122
      %v2124 = vrot.slane %v2123, 2
      %v2125 = vadd.f32 %v2123, %v2124
      %v2126 = vrot.slane %v2125, 1
      %v2127 = vadd.f32 %v2125, %v2126
      %v2128 = vsel %vm2106, %v2098, 0.0
      %v2129 = vsel %vm2106, %v2099, 0.0
      %v2130 = vadd.f32 %v2128, %v2129
      %v2131 = vsel %vm2106, %v2100, 0.0
      %v2132 = vadd.f32 %v2130, %v2131
      %v2133 = vsel %vm2106, %v2101, 0.0
      %v2134 = vadd.f32 %v2132, %v2133
      %v2135 = vsel %vm2106, %v2102, 0.0
      %v2136 = vadd.f32 %v2134, %v2135
      %v2137 = vsel %vm2106, %v2103, 0.0
      %v2138 = vadd.f32 %v2136, %v2137
      %v2139 = vsel %vm2106, %v2104, 0.0
      %v2140 = vadd.f32 %v2138, %v2139
      %v2141 = vsel %vm2106, %v2105, 0.0
      %v2142 = vadd.f32 %v2140, %v2141
      %v2143 = vrot.slane %v2142, 4
      %v2144 = vadd.f32 %v2142, %v2143
      %v2145 = vrot.slane %v2144, 2
      %v2146 = vadd.f32 %v2144, %v2145
      %v2147 = vrot.slane %v2146, 1
      %v2148 = vadd.f32 %v2146, %v2147
      %v2149 = vmul.f32 %v2127, 0.015625
      %v2150 = vmul.f32 %v2148, 0.015625
      %v2151 = vld [vmem:[%s5] sm:$0xff]
      %v2152 = vld [vmem:[%s5 + $0x8] sm:$0xff]
      %v2153 = vld [vmem:[%s5 + $0x10] sm:$0xff]
      %v2154 = vld [vmem:[%s5 + $0x18] sm:$0xff]
      %v2155 = vld [vmem:[%s6] sm:$0x1]
      %v2157 = vlaneseq
      %v2158 = vshrl.u32 %v2157, 7
      %v2159 = vsub.s32 0, %v2158
      %v2160 = vrot.slane %v2155, %v2159
      %vm2164 = vcmask 1041409
      %v2165 = vsel %vm2164, %v2150, %v2149
      %v2166 = vsel %vm2106, %v2165, 0
      %2168 = vmatprep.subr.mxu0 0.0
      %2169 = vmatpush1.msra.mxu0 %v2151
      %2170 = vmatprep.subr.mxu0 0.0
      %2171 = vmatpush1.msra.mxu0 %v2152
      %2172 = vmatprep.subr.mxu0 0.0
      %2173 = vmatpush1.msra.mxu0 %v2153
      %2174 = vmatprep.subr.mxu0 0.0
      %2175 = vmatpush1.msra.mxu0 %v2154
      %2176 = vmatprep.subr.mxu0 0.0
      %2177 = vmatpush1.msra.mxu0 0.0
      %2178 = vmatprep.subr.mxu0 0.0
      %2179 = vmatpush1.msra.mxu0 0.0
      %2180 = vmatprep.subr.mxu0 0.0
      %2181 = vmatpush1.msra.mxu0 0.0
      %2182 = vmatprep.subr.mxu0 0.0
      %2183 = vmatpush1.msra.mxu0 0.0
      %2184 = vmatprep.subr.mxu0 0.0
      %2185 = vmatpush1.msra.mxu0 0.0
      %2186 = vmatprep.subr.mxu0 0.0
      %2187 = vmatpush1.msra.mxu0 0.0
      %2188 = vmatprep.subr.mxu0 0.0
      %2189 = vmatpush1.msra.mxu0 0.0
      %2190 = vmatprep.subr.mxu0 0.0
      %2191 = vmatpush1.msra.mxu0 0.0
      %2192 = vmatprep.subr.mxu0 0.0
      %2193 = vmatpush1.msra.mxu0 0.0
      %2194 = vmatprep.subr.mxu0 0.0
      %2195 = vmatpush1.msra.mxu0 0.0
      %2196 = vmatprep.subr.mxu0 0.0
      %2197 = vmatpush1.msra.mxu0 0.0
      %2198 = vmatprep.subr.mxu0 0.0
      %2199 = vmatpush1.msra.mxu0 0.0
      %2200 = vmatprep.subr.mxu0 0.0
      %2201 = vmatpush1.msra.mxu0 0.0
      %2202 = vmatprep.subr.mxu0 0.0
      %2203 = vmatpush1.msra.mxu0 0.0
      %2204 = vmatprep.subr.mxu0 0.0
      %2205 = vmatpush1.msra.mxu0 0.0
      %2206 = vmatprep.subr.mxu0 0.0
      %2207 = vmatpush1.msra.mxu0 0.0
      %2208 = vmatprep.subr.mxu0 0.0
      %2209 = vmatpush1.msra.mxu0 0.0
      %2210 = vmatprep.subr.mxu0 0.0
      %2211 = vmatpush1.msra.mxu0 0.0
      %2212 = vmatprep.subr.mxu0 0.0
      %2213 = vmatpush1.msra.mxu0 0.0
      %2214 = vmatprep.subr.mxu0 0.0
      %2215 = vmatpush1.msra.mxu0 0.0
      %2216 = vmatprep.subr.mxu0 0.0
      %2217 = vmatpush1.msra.mxu0 0.0
      %2218 = vmatprep.subr.mxu0 0.0
      %2219 = vmatpush1.msra.mxu0 0.0
      %2220 = vmatprep.subr.mxu0 0.0
      %2221 = vmatpush1.msra.mxu0 0.0
      %2222 = vmatprep.subr.mxu0 0.0
      %2223 = vmatpush1.msra.mxu0 0.0
      %2224 = vmatprep.subr.mxu0 0.0
      %2225 = vmatpush1.msra.mxu0 0.0
      %2226 = vmatprep.subr.mxu0 0.0
      %2227 = vmatpush1.msra.mxu0 0.0
      %2228 = vmatprep.subr.mxu0 0.0
      %2229 = vmatpush1.msra.mxu0 0.0
      %2230 = vmatprep.subr.mxu0 0.0
      %2231 = vmatpush1.msra.mxu0 0.0
      %2232 = vmatprep.mubr.f32.mxu0 0.0
      %2233 = vmatmul.mubr.f32.gmra.mrb[0].mxu0 %v2166
      %v2234 = vpop.f32.mrb[0].mxu0
      %v2235 = vadd.f32 %v2160, %v2234
      %v2236 = vpop.f32.mrb[0].mxu0
      %2237 = vdwg.mxu0
      %v2238 = vmax.f32 %v2235, 0.0
      %v2239 = vld [vmem:[%s7] sm:$0xff]
      %v2240 = vld [vmem:[%s7 + $0x8] sm:$0xff]
      %v2241 = vld [vmem:[%s7 + $0x10] sm:$0xff]
      %v2242 = vld [vmem:[%s7 + $0x18] sm:$0xff]
      %v2244 = vsel %vm2106, %v2238, 0
      %2246 = vmatprep.subr.mxu0 0.0
      %2247 = vmatpush1.msra.mxu0 %v2239
      %2248 = vmatprep.subr.mxu0 0.0
      %2249 = vmatpush1.msra.mxu0 %v2240
      %2250 = vmatprep.subr.mxu0 0.0
      %2251 = vmatpush1.msra.mxu0 %v2241
      %2252 = vmatprep.subr.mxu0 0.0
      %2253 = vmatpush1.msra.mxu0 %v2242
      %2254 = vmatprep.subr.mxu0 0.0
      %2255 = vmatpush1.msra.mxu0 0.0
      %2256 = vmatprep.subr.mxu0 0.0
      %2257 = vmatpush1.msra.mxu0 0.0
      %2258 = vmatprep.subr.mxu0 0.0
      %2259 = vmatpush1.msra.mxu0 0.0
      %2260 = vmatprep.subr.mxu0 0.0
      %2261 = vmatpush1.msra.mxu0 0.0
      %2262 = vmatprep.subr.mxu0 0.0
      %2263 = vmatpush1.msra.mxu0 0.0
      %2264 = vmatprep.subr.mxu0 0.0
      %2265 = vmatpush1.msra.mxu0 0.0
      %2266 = vmatprep.subr.mxu0 0.0
      %2267 = vmatpush1.msra.mxu0 0.0
      %2268 = vmatprep.subr.mxu0 0.0
      %2269 = vmatpush1.msra.mxu0 0.0
      %2270 = vmatprep.subr.mxu0 0.0
      %2271 = vmatpush1.msra.mxu0 0.0
      %2272 = vmatprep.subr.mxu0 0.0
      %2273 = vmatpush1.msra.mxu0 0.0
      %2274 = vmatprep.subr.mxu0 0.0
      %2275 = vmatpush1.msra.mxu0 0.0
      %2276 = vmatprep.subr.mxu0 0.0
      %2277 = vmatpush1.msra.mxu0 0.0
      %2278 = vmatprep.subr.mxu0 0.0
      %2279 = vmatpush1.msra.mxu0 0.0
      %2280 = vmatprep.subr.mxu0 0.0
      %2281 = vmatpush1.msra.mxu0 0.0
      %2282 = vmatprep.subr.mxu0 0.0
      %2283 = vmatpush1.msra.mxu0 0.0
      %2284 = vmatprep.subr.mxu0 0.0
      %2285 = vmatpush1.msra.mxu0 0.0
      %2286 = vmatprep.subr.mxu0 0.0
      %2287 = vmatpush1.msra.mxu0 0.0
      %2288 = vmatprep.subr.mxu0 0.0
      %2289 = vmatpush1.msra.mxu0 0.0
      %2290 = vmatprep.subr.mxu0 0.0
      %2291 = vmatpush1.msra.mxu0 0.0
      %2292 = vmatprep.subr.mxu0 0.0
      %2293 = vmatpush1.msra.mxu0 0.0
      %2294 = vmatprep.subr.mxu0 0.0
      %2295 = vmatpush1.msra.mxu0 0.0
      %2296 = vmatprep.subr.mxu0 0.0
      %2297 = vmatpush1.msra.mxu0 0.0
      %2298 = vmatprep.subr.mxu0 0.0
      %2299 = vmatpush1.msra.mxu0 0.0
      %2300 = vmatprep.subr.mxu0 0.0
      %2301 = vmatpush1.msra.mxu0 0.0
      %2302 = vmatprep.subr.mxu0 0.0
      %2303 = vmatpush1.msra.mxu0 0.0
      %2304 = vmatprep.subr.mxu0 0.0
      %2305 = vmatpush1.msra.mxu0 0.0
      %2306 = vmatprep.subr.mxu0 0.0
      %2307 = vmatpush1.msra.mxu0 0.0
      %2308 = vmatprep.subr.mxu0 0.0
      %2309 = vmatpush1.msra.mxu0 0.0
      %2310 = vmatprep.mubr.f32.mxu0 0.0
      %2311 = vmatmul.mubr.f32.gmra.mrb[0].mxu0 %v2244
      %v2312 = vpop.f32.mrb[0].mxu0
      %v2313 = vadd.f32 0.0, %v2312
      %v2314 = vpop.f32.mrb[0].mxu0
      %2315 = vdwg.mxu0
      %2317 = vrot.lane.b32.xlu0 %v2313, 32
      %v2318 = vpop.permute.xlu0 %2317
      %v2320 = vsub.f32 %v2313, %v2318
      %v2321 = vmul.f32 %v2320, 1.442695
      %v2322 = vpow.pop %v2321
      %v2323 = vadd.f32 %v2322, 1.0
      %v2324 = vrcp.pop %v2323
      %v2325 = vmul.f32 1.0, %v2324
      %v2326 = vsub.f32 1.0, %v2325
      %v2329 = vunpack.c.l.s4 1966171168
      %v2330 = vunpack.c.0.s8 %v2329
      %v2331 = vlaneseq
      %v2332 = vshrl.u32 %v2331, 7
      %v2333 = vsub.s32 %v2330, %v2332
      %v2334 = vrot.slane %v2325, %v2333
      %v2335 = vcombine.high %v2334, %v2334
      %v2337 = vunpack.c.l.s4 1966171168
      %v2338 = vunpack.c.0.s8 %v2337
      %v2339 = vlaneseq
      %v2340 = vshrl.u32 %v2339, 7
      %v2341 = vsub.s32 %v2338, %v2340
      %v2342 = vrot.slane %v2334, %v2341
      %v2344 = vunpack.c.l.s4 1966171168
      %v2345 = vunpack.c.0.s8 %v2344
      %v2346 = vlaneseq
      %v2347 = vshrl.u32 %v2346, 7
      %v2348 = vsub.s32 %v2345, %v2347
      %v2349 = vrot.slane %v2335, %v2348
      %v2350 = vlaneseq
      %v2351 = vshrl.u32 %v2350, 7
      %v2352 = vsub.s32 0, %v2351
      %v2353 = vrot.slane %v2342, %v2352
      %v2354 = vlaneseq
      %v2355 = vshrl.u32 %v2354, 7
      %v2356 = vsub.s32 0, %v2355
      %v2357 = vrot.slane %v2349, %v2356
      %2358 = vrot.lane.b32.xlu0 %v2353, 96
      %v2359 = vpop.permute.xlu0 %2358
      %2360 = vrot.lane.b32.xlu0 %v2357, 96
      %v2361 = vpop.permute.xlu0 %2360
      %v2364 = vmul.f32 %v1319, %v2359
      %v2365 = vmul.f32 %v1320, %v2359
      %v2366 = vmul.f32 %v1321, %v2359
      %v2367 = vmul.f32 %v1322, %v2359
      %v2368 = vmul.f32 %v1323, %v2359
      %v2369 = vmul.f32 %v1324, %v2359
      %v2370 = vmul.f32 %v1325, %v2359
      %v2371 = vmul.f32 %v1326, %v2359
      %v2372 = vmul.f32 %v1327, %v2361
      %v2373 = vmul.f32 %v1328, %v2361
      %v2374 = vmul.f32 %v1329, %v2361
      %v2375 = vmul.f32 %v1330, %v2361
      %v2376 = vmul.f32 %v1331, %v2361
      %v2377 = vmul.f32 %v1332, %v2361
      %v2378 = vmul.f32 %v1333, %v2361
      %v2379 = vmul.f32 %v1334, %v2361
      %v2382 = vunpack.c.l.s4 1966171168
      %v2383 = vunpack.c.0.s8 %v2382
      %v2384 = vlaneseq
      %v2385 = vshrl.u32 %v2384, 7
      %v2386 = vsub.s32 %v2383, %v2385
      %v2387 = vrot.slane %v2326, %v2386
      %v2388 = vcombine.high %v2387, %v2387
      %v2390 = vunpack.c.l.s4 1966171168
      %v2391 = vunpack.c.0.s8 %v2390
      %v2392 = vlaneseq
      %v2393 = vshrl.u32 %v2392, 7
      %v2394 = vsub.s32 %v2391, %v2393
      %v2395 = vrot.slane %v2387, %v2394
      %v2397 = vunpack.c.l.s4 1966171168
      %v2398 = vunpack.c.0.s8 %v2397
      %v2399 = vlaneseq
      %v2400 = vshrl.u32 %v2399, 7
      %v2401 = vsub.s32 %v2398, %v2400
      %v2402 = vrot.slane %v2388, %v2401
      %v2403 = vlaneseq
      %v2404 = vshrl.u32 %v2403, 7
      %v2405 = vsub.s32 0, %v2404
      %v2406 = vrot.slane %v2395, %v2405
      %v2407 = vlaneseq
      %v2408 = vshrl.u32 %v2407, 7
      %v2409 = vsub.s32 0, %v2408
      %v2410 = vrot.slane %v2402, %v2409
      %2411 = vrot.lane.b32.xlu0 %v2406, 96
      %v2412 = vpop.permute.xlu0 %2411
      %2413 = vrot.lane.b32.xlu0 %v2410, 96
      %v2414 = vpop.permute.xlu0 %2413
      %v2417 = vmul.f32 %v2074, %v2412
      %v2418 = vmul.f32 %v2075, %v2412
      %v2419 = vmul.f32 %v2076, %v2412
      %v2420 = vmul.f32 %v2077, %v2412
      %v2421 = vmul.f32 %v2078, %v2412
      %v2422 = vmul.f32 %v2079, %v2412
      %v2423 = vmul.f32 %v2080, %v2412
      %v2424 = vmul.f32 %v2081, %v2412
      %v2425 = vmul.f32 %v2082, %v2414
      %v2426 = vmul.f32 %v2083, %v2414
      %v2427 = vmul.f32 %v2084, %v2414
      %v2428 = vmul.f32 %v2085, %v2414
      %v2429 = vmul.f32 %v2086, %v2414
      %v2430 = vmul.f32 %v2087, %v2414
      %v2431 = vmul.f32 %v2088, %v2414
      %v2432 = vmul.f32 %v2089, %v2414
      %v2433 = vadd.f32 %v2364, %v2417
      %v2434 = vadd.f32 %v2365, %v2418
      %v2435 = vadd.f32 %v2366, %v2419
      %v2436 = vadd.f32 %v2367, %v2420
      %v2437 = vadd.f32 %v2368, %v2421
      %v2438 = vadd.f32 %v2369, %v2422
      %v2439 = vadd.f32 %v2370, %v2423
      %v2440 = vadd.f32 %v2371, %v2424
      %v2441 = vadd.f32 %v2372, %v2425
      %v2442 = vadd.f32 %v2373, %v2426
      %v2443 = vadd.f32 %v2374, %v2427
      %v2444 = vadd.f32 %v2375, %v2428
      %v2445 = vadd.f32 %v2376, %v2429
      %v2446 = vadd.f32 %v2377, %v2430
      %v2447 = vadd.f32 %v2378, %v2431
      %v2448 = vadd.f32 %v2379, %v2432
      %v2449 = vpack.c.bf16 %v2434, %v2433
      %v2450 = vpack.c.bf16 %v2436, %v2435
      %v2451 = vpack.c.bf16 %v2438, %v2437
      %v2452 = vpack.c.bf16 %v2440, %v2439
      %v2453 = vpack.c.bf16 %v2442, %v2441
      %v2454 = vpack.c.bf16 %v2444, %v2443
      %v2455 = vpack.c.bf16 %v2446, %v2445
      %v2456 = vpack.c.bf16 %v2448, %v2447
      %v2457 = vld [vmem:[%s8] sm:$0xf]
      %v2458 = vld [vmem:[%s8 + $0x4] sm:$0xf]
      %v2459 = vld [vmem:[%s8 + $0x8] sm:$0xf]
      %v2460 = vld [vmem:[%s8 + $0xc] sm:$0xf]
      %v2461 = vld [vmem:[%s9] sm:$0x1]
      %v2463 = vlaneseq
      %v2464 = vshrl.u32 %v2463, 7
      %v2465 = vsub.s32 0, %v2464
      %v2466 = vrot.slane %v2461, %v2465
      %v2472 = vunpack.c.l.b16 %v2457
      %v2473 = vunpack.c.l.b16 %v2458
      %v2474 = vunpack.c.l.b16 %v2459
      %v2475 = vunpack.c.l.b16 %v2460
      %v2476 = vpack.c.b16 %v2473, %v2472
      %v2477 = vpack.c.b16 %v2475, %v2474
      %v2481 = vsel %vm2106, %v2449, 0
      %v2484 = vsel %vm2106, %v2450, 0
      %v2487 = vsel %vm2106, %v2451, 0
      %v2490 = vsel %vm2106, %v2452, 0
      %v2493 = vsel %vm2106, %v2453, 0
      %v2496 = vsel %vm2106, %v2454, 0
      %v2499 = vsel %vm2106, %v2455, 0
      %v2502 = vsel %vm2106, %v2456, 0
      %2504 = vmatprep.subr.bf16.mxu0 0
      %2505 = vmatpush1.bf16.msra.mxu0 %v2476
      %2506 = vmatprep.subr.bf16.mxu0 0
      %2507 = vmatpush1.bf16.msra.mxu0 %v2477
      %2508 = vmatprep.subr.bf16.mxu0 0
      %2509 = vmatpush1.bf16.msra.mxu0 0
      %2510 = vmatprep.subr.bf16.mxu0 0
      %2511 = vmatpush1.bf16.msra.mxu0 0
      %2512 = vmatprep.subr.bf16.mxu0 0
      %2513 = vmatpush1.bf16.msra.mxu0 0
      %2514 = vmatprep.subr.bf16.mxu0 0
      %2515 = vmatpush1.bf16.msra.mxu0 0
      %2516 = vmatprep.subr.bf16.mxu0 0
      %2517 = vmatpush1.bf16.msra.mxu0 0
      %2518 = vmatprep.subr.bf16.mxu0 0
      %2519 = vmatpush1.bf16.msra.mxu0 0
      %2520 = vmatprep.subr.bf16.mxu0 0
      %2521 = vmatpush1.bf16.msra.mxu0 0
      %2522 = vmatprep.subr.bf16.mxu0 0
      %2523 = vmatpush1.bf16.msra.mxu0 0
      %2524 = vmatprep.subr.bf16.mxu0 0
      %2525 = vmatpush1.bf16.msra.mxu0 0
      %2526 = vmatprep.subr.bf16.mxu0 0
      %2527 = vmatpush1.bf16.msra.mxu0 0
      %2528 = vmatprep.subr.bf16.mxu0 0
      %2529 = vmatpush1.bf16.msra.mxu0 0
      %2530 = vmatprep.subr.bf16.mxu0 0
      %2531 = vmatpush1.bf16.msra.mxu0 0
      %2532 = vmatprep.subr.bf16.mxu0 0
      %2533 = vmatpush1.bf16.msra.mxu0 0
      %2534 = vmatprep.subr.bf16.mxu0 0
      %2535 = vmatpush1.bf16.msra.mxu0 0
      %2536 = vmatprep.mubr.bf16.mxu0 0
      %2537 = vmatmul.mubr.bf16.gmra.mrb[0].mxu0 %v2481
      %v2538 = vpop.f32.mrb[0].mxu0
      %v2539 = vadd.f32 %v2466, %v2538
      %v2540 = vpop.f32.mrb[0].mxu0
      %v2541 = vpop.f32.mrb[0].mxu0
      %v2542 = vadd.f32 %v2466, %v2541
      %v2543 = vpop.f32.mrb[0].mxu0
      %2544 = vmatprep.mubr.bf16.mxu0 0
      %2545 = vmatmul.mubr.bf16.gmra.mrb[0].mxu0 %v2484
      %v2546 = vpop.f32.mrb[0].mxu0
      %v2547 = vadd.f32 %v2466, %v2546
      %v2548 = vpop.f32.mrb[0].mxu0
      %v2549 = vpop.f32.mrb[0].mxu0
      %v2550 = vadd.f32 %v2466, %v2549
      %v2551 = vpop.f32.mrb[0].mxu0
      %2552 = vmatprep.mubr.bf16.mxu0 0
      %2553 = vmatmul.mubr.bf16.gmra.mrb[0].mxu0 %v2487
      %v2554 = vpop.f32.mrb[0].mxu0
      %v2555 = vadd.f32 %v2466, %v2554
      %v2556 = vpop.f32.mrb[0].mxu0
      %v2557 = vpop.f32.mrb[0].mxu0
      %v2558 = vadd.f32 %v2466, %v2557
      %v2559 = vpop.f32.mrb[0].mxu0
      %2560 = vmatprep.mubr.bf16.mxu0 0
      %2561 = vmatmul.mubr.bf16.gmra.mrb[0].mxu0 %v2490
      %v2562 = vpop.f32.mrb[0].mxu0
      %v2563 = vadd.f32 %v2466, %v2562
      %v2564 = vpop.f32.mrb[0].mxu0
      %v2565 = vpop.f32.mrb[0].mxu0
      %v2566 = vadd.f32 %v2466, %v2565
      %v2567 = vpop.f32.mrb[0].mxu0
      %2568 = vmatprep.mubr.bf16.mxu0 0
      %2569 = vmatmul.mubr.bf16.gmra.mrb[0].mxu0 %v2493
      %v2570 = vpop.f32.mrb[0].mxu0
      %v2571 = vadd.f32 %v2466, %v2570
      %v2572 = vpop.f32.mrb[0].mxu0
      %v2573 = vpop.f32.mrb[0].mxu0
      %v2574 = vadd.f32 %v2466, %v2573
      %v2575 = vpop.f32.mrb[0].mxu0
      %2576 = vmatprep.mubr.bf16.mxu0 0
      %2577 = vmatmul.mubr.bf16.gmra.mrb[0].mxu0 %v2496
      %v2578 = vpop.f32.mrb[0].mxu0
      %v2579 = vadd.f32 %v2466, %v2578
      %v2580 = vpop.f32.mrb[0].mxu0
      %v2581 = vpop.f32.mrb[0].mxu0
      %v2582 = vadd.f32 %v2466, %v2581
      %v2583 = vpop.f32.mrb[0].mxu0
      %2584 = vmatprep.mubr.bf16.mxu0 0
      %2585 = vmatmul.mubr.bf16.gmra.mrb[0].mxu0 %v2499
      %v2586 = vpop.f32.mrb[0].mxu0
      %v2587 = vadd.f32 %v2466, %v2586
      %v2588 = vpop.f32.mrb[0].mxu0
      %v2589 = vpop.f32.mrb[0].mxu0
      %v2590 = vadd.f32 %v2466, %v2589
      %v2591 = vpop.f32.mrb[0].mxu0
      %2592 = vmatprep.mubr.bf16.mxu0 0
      %2593 = vmatmul.mubr.bf16.gmra.mrb[0].mxu0 %v2502
      %v2594 = vpop.f32.mrb[0].mxu0
      %v2595 = vadd.f32 %v2466, %v2594
      %v2596 = vpop.f32.mrb[0].mxu0
      %v2597 = vpop.f32.mrb[0].mxu0
      %v2598 = vadd.f32 %v2466, %v2597
      %v2599 = vpop.f32.mrb[0].mxu0
      %2600 = vdwg.mxu0
      %v2601 = vadd.f32 %v2539, %v364
      %v2602 = vadd.f32 %v2542, %v365
      %v2603 = vadd.f32 %v2547, %v366
      %v2604 = vadd.f32 %v2550, %v367
      %v2605 = vadd.f32 %v2555, %v368
      %v2606 = vadd.f32 %v2558, %v369
      %v2607 = vadd.f32 %v2563, %v370
      %v2608 = vadd.f32 %v2566, %v371
      %v2609 = vadd.f32 %v2571, %v372
      %v2610 = vadd.f32 %v2574, %v373
      %v2611 = vadd.f32 %v2579, %v374
      %v2612 = vadd.f32 %v2582, %v375
      %v2613 = vadd.f32 %v2587, %v376
      %v2614 = vadd.f32 %v2590, %v377
      %v2615 = vadd.f32 %v2595, %v378
      %v2616 = vadd.f32 %v2598, %v379
      %v2617 = vmax.f32 %v2601, 0.0
      %v2618 = vmax.f32 %v2602, 0.0
      %v2619 = vmax.f32 %v2603, 0.0
      %v2620 = vmax.f32 %v2604, 0.0
      %v2621 = vmax.f32 %v2605, 0.0
      %v2622 = vmax.f32 %v2606, 0.0
      %v2623 = vmax.f32 %v2607, 0.0
      %v2624 = vmax.f32 %v2608, 0.0
      %v2625 = vmax.f32 %v2609, 0.0
      %v2626 = vmax.f32 %v2610, 0.0
      %v2627 = vmax.f32 %v2611, 0.0
      %v2628 = vmax.f32 %v2612, 0.0
      %v2629 = vmax.f32 %v2613, 0.0
      %v2630 = vmax.f32 %v2614, 0.0
      %v2631 = vmax.f32 %v2615, 0.0
      %v2632 = vmax.f32 %v2616, 0.0
      %2633 = vst.msk [vmem:[%s361] sm:$0xff] %vm427, %v2617
      %2634 = vst.msk [vmem:[%s361 + $0x8] sm:$0xff] %vm427, %v2618
      %2635 = vst.msk [vmem:[%s361 + $0x10] sm:$0xff] %vm427, %v2619
      %2636 = vst.msk [vmem:[%s361 + $0x18] sm:$0xff] %vm427, %v2620
      %2637 = vst.msk [vmem:[%s361 + $0x20] sm:$0xff] %vm427, %v2621
      %2638 = vst.msk [vmem:[%s361 + $0x28] sm:$0xff] %vm427, %v2622
      %2639 = vst.msk [vmem:[%s361 + $0x30] sm:$0xff] %vm427, %v2623
      %2640 = vst.msk [vmem:[%s361 + $0x38] sm:$0xff] %vm427, %v2624
      %2641 = vst.msk [vmem:[%s361 + $0x40] sm:$0xff] %vm427, %v2625
      %2642 = vst.msk [vmem:[%s361 + $0x48] sm:$0xff] %vm427, %v2626
      %2643 = vst.msk [vmem:[%s361 + $0x50] sm:$0xff] %vm427, %v2627
      %2644 = vst.msk [vmem:[%s361 + $0x58] sm:$0xff] %vm427, %v2628
      %2645 = vst.msk [vmem:[%s361 + $0x60] sm:$0xff] %vm427, %v2629
      %2646 = vst.msk [vmem:[%s361 + $0x68] sm:$0xff] %vm427, %v2630
      %2647 = vst.msk [vmem:[%s361 + $0x70] sm:$0xff] %vm427, %v2631
      %2648 = vst.msk [vmem:[%s361 + $0x78] sm:$0xff] %vm427, %v2632
      %s2649 = smul.u32 16, %s21
      %p2650 = scmp.lt.s32.totalorder %s2649, 31
      %s2651 = scalar_select %p2650, %s2649, 31
      %s2652 = smul.addr %s2651, 8
      %s2653 = scalar_lea.vmem %s10, %s2652
      // Predicated region
      $region61: #{skblock_forward.1} parent=59 // pred_check
        %p2654 = pneg %p254
      $region62: #{skblock_forward.1} parent=59 // pred_check_branch
        %2656 = sbr.rel (%p2654) target = $region64
      $region63: #{skblock_forward.1} parent=59 // pred_region
        %s2657 = smul.u32 16, %s21
      $region64: #{skblock_forward.1} parent=59 // pred_fallthru
        _
    $region60: #{skblock_forward.1} parent=5 // pred_fallthru
      _
    %p2658 = scmp.le.s32.totalorder 2, %s16
    // Predicated region
    $region65: #{skblock_forward.1} parent=5 // pred_check
      %p2659 = pneg %p2658
    $region66: #{skblock_forward.1} parent=5 // pred_check_branch
      %2661 = sbr.rel (%p2659) target = $region68
    $region67: #{skblock_forward.1} parent=5 // pred_region
      %s2662 = ssub.s32 %s16, 2
      // Predicated region
      $region69: #{skblock_forward.1} parent=67 // pred_check
        %p2663 = pneg %p260
      $region70: #{skblock_forward.1} parent=67 // pred_check_branch
        %2665 = sbr.rel (%p2663) target = $region72
      $region71: #{skblock_forward.1} parent=67 // pred_region
        %s2666 = smul.u32 16, %s22
        %p2667 = scmp.lt.s32.totalorder %s2666, 31
        %s2668 = scalar_select %p2667, %s2666, 31
        %s2669 = smul.addr %s2668, 8
        %s2670 = scalar_lea.vmem %s10, %s2669
      $region72: #{skblock_forward.1} parent=67 // pred_fallthru
        _
    $region68: #{skblock_forward.1} parent=5 // pred_fallthru
      _
  $region6: #{skblock_forward.1} parent=0 // loop_footer
    %s20 = sadd.s32 1, %s16
  $region7: #{skblock_forward.1} parent=0 // loop_footer_branch
    %15 = sbr.rel target = $region3
  $region8: #{skblock_forward.1} parent=0 // loop_exit
    _

</llo_original>
